<compile_context>
chip_gen: v6e
topology: v6e:2x2x1
jax: 0.10.0
libtpu: 0.0.40
codegen_flags: <defaults>
</compile_context>

<pallas_src>
import jax
import jax.numpy as jnp
from jax.experimental import pallas as pl
from jax.experimental.pallas import tpu as pltpu

C = 240          # channels (fixed by the module: groups=240 depthwise conv)
KH = KW = 5      # kernel size
STRIDE = 2
PAD = 2
EPS = 1e-5
LANES = 128      # channel block size (one lane-vreg)


def _dwconv_bn_relu_kernel(x_ref, w_ref, scale_ref, bias_ref, o_ref):
    """Fused ReLU -> depthwise 5x5 stride-2 conv -> BN(folded) -> ReLU
    for one 128-channel block (all batches folded into the block).

    x_ref:     (N, 4, Hp2, Wp2, CB)  stride-2 phase-decomposed, zero-padded
                                     input; phase index = (kw%2)*2 + (kh%2)
    w_ref:     (KH*KW, 1, CB)        depthwise taps, tap index = kh*KW + kw
    scale_ref: (1, CB)               gamma / sqrt(running_var + eps)
    bias_ref:  (1, CB)               beta - running_mean * scale
    o_ref:     (N, H_out, W_out, CB)
    """
    n, h_out, w_out, cb = o_ref.shape

    # Hoisted parameter loads.
    w = w_ref[...]                                      # (KH*KW, 1, CB)
    scale = scale_ref[...].reshape(1, 1, 1, cb)
    bias = bias_ref[...].reshape(1, 1, 1, cb)

    # Deduplicated W-axis (sublane) shifts: one shifted window per distinct
    # (pw = kw % 2, b = kw // 2) pair -- 5 total -- with relu16 fused in
    # (zero padding commutes with ReLU since relu(0) == 0).  The tap loop
    # below then only does free leading-dim addressing.
    shifted = {}
    for kw in range(KW):
        pw, b = kw % 2, kw // 2
        if (pw, b) not in shifted:
            shifted[(pw, b)] = jnp.maximum(
                x_ref[:, 2 * pw:2 * pw + 2, :, b:b + w_out, :], 0.0
            )                                           # (N, 2, Hp2, w_out, CB)

    # 25-tap depthwise accumulation; patch reads are pure leading-dim
    # addressing (unit stride, static offsets), multiply-add is VALU work.
    acc = jnp.zeros((n, h_out, w_out, cb), jnp.float32)
    for kh in range(KH):
        ph, a = kh % 2, kh // 2
        for kw in range(KW):
            pw, b = kw % 2, kw // 2
            patch = shifted[(pw, b)][:, ph, a:a + h_out, :, :]   # (N,h_out,w_out,CB)
            acc = acc + patch * w[kh * KW + kw, 0]

    # batchnorm2d25 (inference-folded) + relu17
    y = acc * scale + bias
    o_ref[...] = jnp.maximum(y, 0.0)


def relu_dwconv_bn_relu(x_nchw, weight_oihw, gamma, beta, running_mean, running_var):
    """Forward pass matching M.forward. Input/output are NCHW float32."""
    n, c, h, w = x_nchw.shape
    assert c == C
    h_pad = h + 2 * PAD
    w_pad = w + 2 * PAD
    # Stride-phase decomposition assumes even padded extents.
    assert h_pad % 2 == 0 and w_pad % 2 == 0, (h_pad, w_pad)
    h_out = (h_pad - KH) // STRIDE + 1
    w_out = (w_pad - KW) // STRIDE + 1
    hp2, wp2 = h_pad // 2, w_pad // 2
    assert KH // 2 + h_out <= hp2 and KW // 2 + w_out <= wp2
    c_pad = ((C + LANES - 1) // LANES) * LANES          # 240 -> 256 (lane-dense)

    # Glue (kept minimal; NCHW I/O is required to match PyTorch semantics):
    # spatial zero pad, then one relayout HLO doing the stride-2 phase split
    # and NCHW -> channels-last transpose, then the 240->256 channel pad.
    x_p = jnp.pad(x_nchw, ((0, 0), (0, 0), (PAD, PAD), (PAD, PAD)))
    # dims after reshape: 0=n, 1=C, 2=i(hp2), 3=ph, 4=j(wp2), 5=pw
    x_r = x_p.reshape(n, C, hp2, 2, wp2, 2)
    x_t = jnp.transpose(x_r, (0, 5, 3, 2, 4, 1))        # (n, pw, ph, hp2, wp2, C)
    x_phases = x_t.reshape(n, 4, hp2, wp2, C)           # phase = pw*2 + ph
    x_phases = jnp.pad(
        x_phases, ((0, 0), (0, 0), (0, 0), (0, 0), (0, c_pad - C)))

    # Depthwise weight (O=240, I=1, KH, KW) -> (KH*KW, 1, C_pad) so each tap
    # is a leading-dim row read (pure addressing + lane broadcast) in-kernel.
    w_taps = jnp.transpose(weight_oihw[:, 0, :, :].reshape(C, KH * KW), (1, 0))
    w_taps = jnp.pad(w_taps, ((0, 0), (0, c_pad - C)))[:, None, :]   # (25, 1, c_pad)

    # Fold BN (inference mode) into per-channel scale / bias; padded channels
    # get scale=0 / bias=0 so their outputs are exactly zero before slicing.
    scale = gamma / jnp.sqrt(running_var + EPS)
    bias = beta - running_mean * scale
    scale = jnp.pad(scale, (0, c_pad - C)).reshape(1, c_pad)
    bias = jnp.pad(bias, (0, c_pad - C)).reshape(1, c_pad)

    # Single grid axis over the two 128-channel blocks (batch folded into the
    # block): minimal per-step pipeline overhead on v5e/v6e, still 2-way
    # "parallel" so both v7x TensorCores get work.
    grid = (c_pad // LANES,)

    out_nhwc = pl.pallas_call(
        _dwconv_bn_relu_kernel,
        out_shape=jax.ShapeDtypeStruct((n, h_out, w_out, c_pad), jnp.float32),
        grid=grid,
        in_specs=[
            pl.BlockSpec((n, 4, hp2, wp2, LANES), lambda ci: (0, 0, 0, 0, ci)),
            pl.BlockSpec((KH * KW, 1, LANES), lambda ci: (0, 0, ci)),
            pl.BlockSpec((1, LANES), lambda ci: (0, ci)),
            pl.BlockSpec((1, LANES), lambda ci: (0, ci)),
        ],
        out_specs=pl.BlockSpec(
            (n, h_out, w_out, LANES), lambda ci: (0, 0, 0, ci)),
        compiler_params=pltpu.CompilerParams(
            dimension_semantics=("parallel",),
            vmem_limit_bytes=16 * 1024 * 1024),
    )(x_phases, w_taps, scale, bias)

    # Drop channel padding, back to NCHW to match the PyTorch convention.
    return jnp.transpose(out_nhwc[..., :C], (0, 3, 1, 2))


def _reference(x_nchw, weight_oihw, gamma, beta, running_mean, running_var):
    """Pure-JAX reference (for correctness check)."""
    x = jnp.maximum(x_nchw, 0.0)
    y = jax.lax.conv_general_dilated(
        x, weight_oihw,
        window_strides=(STRIDE, STRIDE),
        padding=((PAD, PAD), (PAD, PAD)),
        dimension_numbers=("NCHW", "OIHW", "NCHW"),
        feature_group_count=C)
    scale = gamma / jnp.sqrt(running_var + EPS)
    shift = beta - running_mean * scale
    y = y * scale[None, :, None, None] + shift[None, :, None, None]
    return jnp.maximum(y, 0.0)


if __name__ == "__main__":
    key = jax.random.PRNGKey(0)
    kx, kw_, kg, kb, km, kv = jax.random.split(key, 6)

    # Module's spatial size (28x28); channel count fixed at 240; batch=2 to
    # exercise the batch-folded block.
    x = jax.random.normal(kx, (2, C, 28, 28), dtype=jnp.float32)

    # Deterministic synthetic parameters (shapes from the module __init__).
    weight = 0.1 * jax.random.normal(kw_, (C, 1, KH, KW), dtype=jnp.float32)
    gamma = 1.0 + 0.1 * jax.random.normal(kg, (C,), dtype=jnp.float32)
    beta = 0.1 * jax.random.normal(kb, (C,), dtype=jnp.float32)
    running_mean = 0.1 * jax.random.normal(km, (C,), dtype=jnp.float32)
    running_var = 0.5 + jnp.abs(jax.random.normal(kv, (C,), dtype=jnp.float32))

    out = relu_dwconv_bn_relu(x, weight, gamma, beta, running_mean, running_var)
    out = jax.block_until_ready(out)

    ref = _reference(x, weight, gamma, beta, running_mean, running_var)
    assert out.shape == (2, C, 14, 14), out.shape
    assert jnp.allclose(out, ref, atol=1e-4, rtol=1e-4), "mismatch vs reference"

    print("KERNEL_OK")
</pallas_src>

<mosaic_0001>
module attributes {stable_mosaic.version = 11 : i64} {
  func.func @_dwconv_bn_relu_kernel(%arg0: i32, %arg1: memref<2x4x16x16x128xf32, #tpu.memory_space<vmem>>, %arg2: memref<25x1x128xf32, #tpu.memory_space<vmem>>, %arg3: memref<1x128xf32, #tpu.memory_space<vmem>>, %arg4: memref<1x128xf32, #tpu.memory_space<vmem>>, %arg5: memref<2x14x14x128xf32, #tpu.memory_space<vmem>>) attributes {dimension_semantics = [#tpu.dimension_semantics<parallel>], iteration_bounds = array<i64: 2>, scalar_prefetch = 0 : i64, scratch_operands = 0 : i64, tpu.core_type = #tpu.core_type<tc>, window_params = [{transform_indices = @transform_0, window_bounds = array<i64: 2, 4, 16, 16, 128>}, {transform_indices = @transform_1, window_bounds = array<i64: 25, 1, 128>}, {transform_indices = @transform_2, window_bounds = array<i64: 1, 128>}, {transform_indices = @transform_3, window_bounds = array<i64: 1, 128>}, {transform_indices = @transform_4, window_bounds = array<i64: 2, 14, 14, 128>}]} {
    %c0 = arith.constant 0 : index
    %c0_0 = arith.constant 0 : index
    %c0_1 = arith.constant 0 : index
    %0 = vector.load %arg2[%c0, %c0_0, %c0_1] : memref<25x1x128xf32, #tpu.memory_space<vmem>>, vector<25x1x128xf32>
    %c0_2 = arith.constant 0 : index
    %c0_3 = arith.constant 0 : index
    %1 = vector.load %arg3[%c0_2, %c0_3] : memref<1x128xf32, #tpu.memory_space<vmem>>, vector<1x128xf32>
    %2 = vector.shape_cast %1 : vector<1x128xf32> to vector<1x1x1x128xf32>
    %c0_4 = arith.constant 0 : index
    %c0_5 = arith.constant 0 : index
    %3 = vector.load %arg4[%c0_4, %c0_5] : memref<1x128xf32, #tpu.memory_space<vmem>>, vector<1x128xf32>
    %4 = vector.shape_cast %3 : vector<1x128xf32> to vector<1x1x1x128xf32>
    %c0_6 = arith.constant 0 : index
    %c0_7 = arith.constant 0 : index
    %c0_8 = arith.constant 0 : index
    %c0_9 = arith.constant 0 : index
    %c0_10 = arith.constant 0 : index
    %5 = vector.load %arg1[%c0_6, %c0_7, %c0_8, %c0_9, %c0_10] : memref<2x4x16x16x128xf32, #tpu.memory_space<vmem>>, vector<2x2x16x14x128xf32>
    %cst = arith.constant 0.000000e+00 : f32
    %6 = vector.broadcast %cst : f32 to vector<2x2x16x14x128xf32>
    %7 = arith.maximumf %5, %6 : vector<2x2x16x14x128xf32>
    %c0_11 = arith.constant 0 : index
    %c2 = arith.constant 2 : index
    %c0_12 = arith.constant 0 : index
    %c0_13 = arith.constant 0 : index
    %c0_14 = arith.constant 0 : index
    %8 = vector.load %arg1[%c0_11, %c2, %c0_12, %c0_13, %c0_14] : memref<2x4x16x16x128xf32, #tpu.memory_space<vmem>>, vector<2x2x16x14x128xf32>
    %cst_15 = arith.constant 0.000000e+00 : f32
    %9 = vector.broadcast %cst_15 : f32 to vector<2x2x16x14x128xf32>
    %10 = arith.maximumf %8, %9 : vector<2x2x16x14x128xf32>
    %c0_16 = arith.constant 0 : index
    %c0_17 = arith.constant 0 : index
    %c0_18 = arith.constant 0 : index
    %c1 = arith.constant 1 : index
    %c0_19 = arith.constant 0 : index
    %11 = vector.load %arg1[%c0_16, %c0_17, %c0_18, %c1, %c0_19] : memref<2x4x16x16x128xf32, #tpu.memory_space<vmem>>, vector<2x2x16x14x128xf32>
    %cst_20 = arith.constant 0.000000e+00 : f32
    %12 = vector.broadcast %cst_20 : f32 to vector<2x2x16x14x128xf32>
    %13 = arith.maximumf %11, %12 : vector<2x2x16x14x128xf32>
    %c0_21 = arith.constant 0 : index
    %c2_22 = arith.constant 2 : index
    %c0_23 = arith.constant 0 : index
    %c1_24 = arith.constant 1 : index
    %c0_25 = arith.constant 0 : index
    %14 = vector.load %arg1[%c0_21, %c2_22, %c0_23, %c1_24, %c0_25] : memref<2x4x16x16x128xf32, #tpu.memory_space<vmem>>, vector<2x2x16x14x128xf32>
    %cst_26 = arith.constant 0.000000e+00 : f32
    %15 = vector.broadcast %cst_26 : f32 to vector<2x2x16x14x128xf32>
    %16 = arith.maximumf %14, %15 : vector<2x2x16x14x128xf32>
    %c0_27 = arith.constant 0 : index
    %c0_28 = arith.constant 0 : index
    %c0_29 = arith.constant 0 : index
    %c2_30 = arith.constant 2 : index
    %c0_31 = arith.constant 0 : index
    %17 = vector.load %arg1[%c0_27, %c0_28, %c0_29, %c2_30, %c0_31] : memref<2x4x16x16x128xf32, #tpu.memory_space<vmem>>, vector<2x2x16x14x128xf32>
    %cst_32 = arith.constant 0.000000e+00 : f32
    %18 = vector.broadcast %cst_32 : f32 to vector<2x2x16x14x128xf32>
    %19 = arith.maximumf %17, %18 : vector<2x2x16x14x128xf32>
    %cst_33 = arith.constant 0.000000e+00 : f32
    %20 = vector.broadcast %cst_33 : f32 to vector<2x14x14x128xf32>
    %21 = vector.extract_strided_slice %7 {offsets = [0, 0, 0, 0, 0], sizes = [2, 1, 14, 14, 128], strides = [1, 1, 1, 1, 1]} : vector<2x2x16x14x128xf32> to vector<2x1x14x14x128xf32>
    %22 = vector.shape_cast %21 : vector<2x1x14x14x128xf32> to vector<2x14x14x128xf32>
    %23 = vector.extract_strided_slice %0 {offsets = [0, 0, 0], sizes = [1, 1, 128], strides = [1, 1, 1]} : vector<25x1x128xf32> to vector<1x1x128xf32>
    %24 = vector.shape_cast %23 : vector<1x1x128xf32> to vector<128xf32>
    %25 = vector.shape_cast %24 : vector<128xf32> to vector<1x1x1x128xf32>
    %26 = vector.broadcast %25 : vector<1x1x1x128xf32> to vector<2x14x14x128xf32>
    %27 = arith.mulf %22, %26 : vector<2x14x14x128xf32>
    %28 = arith.addf %20, %27 : vector<2x14x14x128xf32>
    %29 = vector.extract_strided_slice %10 {offsets = [0, 0, 0, 0, 0], sizes = [2, 1, 14, 14, 128], strides = [1, 1, 1, 1, 1]} : vector<2x2x16x14x128xf32> to vector<2x1x14x14x128xf32>
    %30 = vector.shape_cast %29 : vector<2x1x14x14x128xf32> to vector<2x14x14x128xf32>
    %31 = vector.extract_strided_slice %0 {offsets = [1, 0, 0], sizes = [1, 1, 128], strides = [1, 1, 1]} : vector<25x1x128xf32> to vector<1x1x128xf32>
    %32 = vector.shape_cast %31 : vector<1x1x128xf32> to vector<128xf32>
    %33 = vector.shape_cast %32 : vector<128xf32> to vector<1x1x1x128xf32>
    %34 = vector.broadcast %33 : vector<1x1x1x128xf32> to vector<2x14x14x128xf32>
    %35 = arith.mulf %30, %34 : vector<2x14x14x128xf32>
    %36 = arith.addf %28, %35 : vector<2x14x14x128xf32>
    %37 = vector.extract_strided_slice %13 {offsets = [0, 0, 0, 0, 0], sizes = [2, 1, 14, 14, 128], strides = [1, 1, 1, 1, 1]} : vector<2x2x16x14x128xf32> to vector<2x1x14x14x128xf32>
    %38 = vector.shape_cast %37 : vector<2x1x14x14x128xf32> to vector<2x14x14x128xf32>
    %39 = vector.extract_strided_slice %0 {offsets = [2, 0, 0], sizes = [1, 1, 128], strides = [1, 1, 1]} : vector<25x1x128xf32> to vector<1x1x128xf32>
    %40 = vector.shape_cast %39 : vector<1x1x128xf32> to vector<128xf32>
    %41 = vector.shape_cast %40 : vector<128xf32> to vector<1x1x1x128xf32>
    %42 = vector.broadcast %41 : vector<1x1x1x128xf32> to vector<2x14x14x128xf32>
    %43 = arith.mulf %38, %42 : vector<2x14x14x128xf32>
    %44 = arith.addf %36, %43 : vector<2x14x14x128xf32>
    %45 = vector.extract_strided_slice %16 {offsets = [0, 0, 0, 0, 0], sizes = [2, 1, 14, 14, 128], strides = [1, 1, 1, 1, 1]} : vector<2x2x16x14x128xf32> to vector<2x1x14x14x128xf32>
    %46 = vector.shape_cast %45 : vector<2x1x14x14x128xf32> to vector<2x14x14x128xf32>
    %47 = vector.extract_strided_slice %0 {offsets = [3, 0, 0], sizes = [1, 1, 128], strides = [1, 1, 1]} : vector<25x1x128xf32> to vector<1x1x128xf32>
    %48 = vector.shape_cast %47 : vector<1x1x128xf32> to vector<128xf32>
    %49 = vector.shape_cast %48 : vector<128xf32> to vector<1x1x1x128xf32>
    %50 = vector.broadcast %49 : vector<1x1x1x128xf32> to vector<2x14x14x128xf32>
    %51 = arith.mulf %46, %50 : vector<2x14x14x128xf32>
    %52 = arith.addf %44, %51 : vector<2x14x14x128xf32>
    %53 = vector.extract_strided_slice %19 {offsets = [0, 0, 0, 0, 0], sizes = [2, 1, 14, 14, 128], strides = [1, 1, 1, 1, 1]} : vector<2x2x16x14x128xf32> to vector<2x1x14x14x128xf32>
    %54 = vector.shape_cast %53 : vector<2x1x14x14x128xf32> to vector<2x14x14x128xf32>
    %55 = vector.extract_strided_slice %0 {offsets = [4, 0, 0], sizes = [1, 1, 128], strides = [1, 1, 1]} : vector<25x1x128xf32> to vector<1x1x128xf32>
    %56 = vector.shape_cast %55 : vector<1x1x128xf32> to vector<128xf32>
    %57 = vector.shape_cast %56 : vector<128xf32> to vector<1x1x1x128xf32>
    %58 = vector.broadcast %57 : vector<1x1x1x128xf32> to vector<2x14x14x128xf32>
    %59 = arith.mulf %54, %58 : vector<2x14x14x128xf32>
    %60 = arith.addf %52, %59 : vector<2x14x14x128xf32>
    %61 = vector.extract_strided_slice %7 {offsets = [0, 1, 0, 0, 0], sizes = [2, 1, 14, 14, 128], strides = [1, 1, 1, 1, 1]} : vector<2x2x16x14x128xf32> to vector<2x1x14x14x128xf32>
    %62 = vector.shape_cast %61 : vector<2x1x14x14x128xf32> to vector<2x14x14x128xf32>
    %63 = vector.extract_strided_slice %0 {offsets = [5, 0, 0], sizes = [1, 1, 128], strides = [1, 1, 1]} : vector<25x1x128xf32> to vector<1x1x128xf32>
    %64 = vector.shape_cast %63 : vector<1x1x128xf32> to vector<128xf32>
    %65 = vector.shape_cast %64 : vector<128xf32> to vector<1x1x1x128xf32>
    %66 = vector.broadcast %65 : vector<1x1x1x128xf32> to vector<2x14x14x128xf32>
    %67 = arith.mulf %62, %66 : vector<2x14x14x128xf32>
    %68 = arith.addf %60, %67 : vector<2x14x14x128xf32>
    %69 = vector.extract_strided_slice %10 {offsets = [0, 1, 0, 0, 0], sizes = [2, 1, 14, 14, 128], strides = [1, 1, 1, 1, 1]} : vector<2x2x16x14x128xf32> to vector<2x1x14x14x128xf32>
    %70 = vector.shape_cast %69 : vector<2x1x14x14x128xf32> to vector<2x14x14x128xf32>
    %71 = vector.extract_strided_slice %0 {offsets = [6, 0, 0], sizes = [1, 1, 128], strides = [1, 1, 1]} : vector<25x1x128xf32> to vector<1x1x128xf32>
    %72 = vector.shape_cast %71 : vector<1x1x128xf32> to vector<128xf32>
    %73 = vector.shape_cast %72 : vector<128xf32> to vector<1x1x1x128xf32>
    %74 = vector.broadcast %73 : vector<1x1x1x128xf32> to vector<2x14x14x128xf32>
    %75 = arith.mulf %70, %74 : vector<2x14x14x128xf32>
    %76 = arith.addf %68, %75 : vector<2x14x14x128xf32>
    %77 = vector.extract_strided_slice %13 {offsets = [0, 1, 0, 0, 0], sizes = [2, 1, 14, 14, 128], strides = [1, 1, 1, 1, 1]} : vector<2x2x16x14x128xf32> to vector<2x1x14x14x128xf32>
    %78 = vector.shape_cast %77 : vector<2x1x14x14x128xf32> to vector<2x14x14x128xf32>
    %79 = vector.extract_strided_slice %0 {offsets = [7, 0, 0], sizes = [1, 1, 128], strides = [1, 1, 1]} : vector<25x1x128xf32> to vector<1x1x128xf32>
    %80 = vector.shape_cast %79 : vector<1x1x128xf32> to vector<128xf32>
    %81 = vector.shape_cast %80 : vector<128xf32> to vector<1x1x1x128xf32>
    %82 = vector.broadcast %81 : vector<1x1x1x128xf32> to vector<2x14x14x128xf32>
    %83 = arith.mulf %78, %82 : vector<2x14x14x128xf32>
    %84 = arith.addf %76, %83 : vector<2x14x14x128xf32>
    %85 = vector.extract_strided_slice %16 {offsets = [0, 1, 0, 0, 0], sizes = [2, 1, 14, 14, 128], strides = [1, 1, 1, 1, 1]} : vector<2x2x16x14x128xf32> to vector<2x1x14x14x128xf32>
    %86 = vector.shape_cast %85 : vector<2x1x14x14x128xf32> to vector<2x14x14x128xf32>
    %87 = vector.extract_strided_slice %0 {offsets = [8, 0, 0], sizes = [1, 1, 128], strides = [1, 1, 1]} : vector<25x1x128xf32> to vector<1x1x128xf32>
    %88 = vector.shape_cast %87 : vector<1x1x128xf32> to vector<128xf32>
    %89 = vector.shape_cast %88 : vector<128xf32> to vector<1x1x1x128xf32>
    %90 = vector.broadcast %89 : vector<1x1x1x128xf32> to vector<2x14x14x128xf32>
    %91 = arith.mulf %86, %90 : vector<2x14x14x128xf32>
    %92 = arith.addf %84, %91 : vector<2x14x14x128xf32>
    %93 = vector.extract_strided_slice %19 {offsets = [0, 1, 0, 0, 0], sizes = [2, 1, 14, 14, 128], strides = [1, 1, 1, 1, 1]} : vector<2x2x16x14x128xf32> to vector<2x1x14x14x128xf32>
    %94 = vector.shape_cast %93 : vector<2x1x14x14x128xf32> to vector<2x14x14x128xf32>
    %95 = vector.extract_strided_slice %0 {offsets = [9, 0, 0], sizes = [1, 1, 128], strides = [1, 1, 1]} : vector<25x1x128xf32> to vector<1x1x128xf32>
    %96 = vector.shape_cast %95 : vector<1x1x128xf32> to vector<128xf32>
    %97 = vector.shape_cast %96 : vector<128xf32> to vector<1x1x1x128xf32>
    %98 = vector.broadcast %97 : vector<1x1x1x128xf32> to vector<2x14x14x128xf32>
    %99 = arith.mulf %94, %98 : vector<2x14x14x128xf32>
    %100 = arith.addf %92, %99 : vector<2x14x14x128xf32>
    %101 = vector.extract_strided_slice %7 {offsets = [0, 0, 1, 0, 0], sizes = [2, 1, 14, 14, 128], strides = [1, 1, 1, 1, 1]} : vector<2x2x16x14x128xf32> to vector<2x1x14x14x128xf32>
    %102 = vector.shape_cast %101 : vector<2x1x14x14x128xf32> to vector<2x14x14x128xf32>
    %103 = vector.extract_strided_slice %0 {offsets = [10, 0, 0], sizes = [1, 1, 128], strides = [1, 1, 1]} : vector<25x1x128xf32> to vector<1x1x128xf32>
    %104 = vector.shape_cast %103 : vector<1x1x128xf32> to vector<128xf32>
    %105 = vector.shape_cast %104 : vector<128xf32> to vector<1x1x1x128xf32>
    %106 = vector.broadcast %105 : vector<1x1x1x128xf32> to vector<2x14x14x128xf32>
    %107 = arith.mulf %102, %106 : vector<2x14x14x128xf32>
    %108 = arith.addf %100, %107 : vector<2x14x14x128xf32>
    %109 = vector.extract_strided_slice %10 {offsets = [0, 0, 1, 0, 0], sizes = [2, 1, 14, 14, 128], strides = [1, 1, 1, 1, 1]} : vector<2x2x16x14x128xf32> to vector<2x1x14x14x128xf32>
    %110 = vector.shape_cast %109 : vector<2x1x14x14x128xf32> to vector<2x14x14x128xf32>
    %111 = vector.extract_strided_slice %0 {offsets = [11, 0, 0], sizes = [1, 1, 128], strides = [1, 1, 1]} : vector<25x1x128xf32> to vector<1x1x128xf32>
    %112 = vector.shape_cast %111 : vector<1x1x128xf32> to vector<128xf32>
    %113 = vector.shape_cast %112 : vector<128xf32> to vector<1x1x1x128xf32>
    %114 = vector.broadcast %113 : vector<1x1x1x128xf32> to vector<2x14x14x128xf32>
    %115 = arith.mulf %110, %114 : vector<2x14x14x128xf32>
    %116 = arith.addf %108, %115 : vector<2x14x14x128xf32>
    %117 = vector.extract_strided_slice %13 {offsets = [0, 0, 1, 0, 0], sizes = [2, 1, 14, 14, 128], strides = [1, 1, 1, 1, 1]} : vector<2x2x16x14x128xf32> to vector<2x1x14x14x128xf32>
    %118 = vector.shape_cast %117 : vector<2x1x14x14x128xf32> to vector<2x14x14x128xf32>
    %119 = vector.extract_strided_slice %0 {offsets = [12, 0, 0], sizes = [1, 1, 128], strides = [1, 1, 1]} : vector<25x1x128xf32> to vector<1x1x128xf32>
    %120 = vector.shape_cast %119 : vector<1x1x128xf32> to vector<128xf32>
    %121 = vector.shape_cast %120 : vector<128xf32> to vector<1x1x1x128xf32>
    %122 = vector.broadcast %121 : vector<1x1x1x128xf32> to vector<2x14x14x128xf32>
    %123 = arith.mulf %118, %122 : vector<2x14x14x128xf32>
    %124 = arith.addf %116, %123 : vector<2x14x14x128xf32>
    %125 = vector.extract_strided_slice %16 {offsets = [0, 0, 1, 0, 0], sizes = [2, 1, 14, 14, 128], strides = [1, 1, 1, 1, 1]} : vector<2x2x16x14x128xf32> to vector<2x1x14x14x128xf32>
    %126 = vector.shape_cast %125 : vector<2x1x14x14x128xf32> to vector<2x14x14x128xf32>
    %127 = vector.extract_strided_slice %0 {offsets = [13, 0, 0], sizes = [1, 1, 128], strides = [1, 1, 1]} : vector<25x1x128xf32> to vector<1x1x128xf32>
    %128 = vector.shape_cast %127 : vector<1x1x128xf32> to vector<128xf32>
    %129 = vector.shape_cast %128 : vector<128xf32> to vector<1x1x1x128xf32>
    %130 = vector.broadcast %129 : vector<1x1x1x128xf32> to vector<2x14x14x128xf32>
    %131 = arith.mulf %126, %130 : vector<2x14x14x128xf32>
    %132 = arith.addf %124, %131 : vector<2x14x14x128xf32>
    %133 = vector.extract_strided_slice %19 {offsets = [0, 0, 1, 0, 0], sizes = [2, 1, 14, 14, 128], strides = [1, 1, 1, 1, 1]} : vector<2x2x16x14x128xf32> to vector<2x1x14x14x128xf32>
    %134 = vector.shape_cast %133 : vector<2x1x14x14x128xf32> to vector<2x14x14x128xf32>
    %135 = vector.extract_strided_slice %0 {offsets = [14, 0, 0], sizes = [1, 1, 128], strides = [1, 1, 1]} : vector<25x1x128xf32> to vector<1x1x128xf32>
    %136 = vector.shape_cast %135 : vector<1x1x128xf32> to vector<128xf32>
    %137 = vector.shape_cast %136 : vector<128xf32> to vector<1x1x1x128xf32>
    %138 = vector.broadcast %137 : vector<1x1x1x128xf32> to vector<2x14x14x128xf32>
    %139 = arith.mulf %134, %138 : vector<2x14x14x128xf32>
    %140 = arith.addf %132, %139 : vector<2x14x14x128xf32>
    %141 = vector.extract_strided_slice %7 {offsets = [0, 1, 1, 0, 0], sizes = [2, 1, 14, 14, 128], strides = [1, 1, 1, 1, 1]} : vector<2x2x16x14x128xf32> to vector<2x1x14x14x128xf32>
    %142 = vector.shape_cast %141 : vector<2x1x14x14x128xf32> to vector<2x14x14x128xf32>
    %143 = vector.extract_strided_slice %0 {offsets = [15, 0, 0], sizes = [1, 1, 128], strides = [1, 1, 1]} : vector<25x1x128xf32> to vector<1x1x128xf32>
    %144 = vector.shape_cast %143 : vector<1x1x128xf32> to vector<128xf32>
    %145 = vector.shape_cast %144 : vector<128xf32> to vector<1x1x1x128xf32>
    %146 = vector.broadcast %145 : vector<1x1x1x128xf32> to vector<2x14x14x128xf32>
    %147 = arith.mulf %142, %146 : vector<2x14x14x128xf32>
    %148 = arith.addf %140, %147 : vector<2x14x14x128xf32>
    %149 = vector.extract_strided_slice %10 {offsets = [0, 1, 1, 0, 0], sizes = [2, 1, 14, 14, 128], strides = [1, 1, 1, 1, 1]} : vector<2x2x16x14x128xf32> to vector<2x1x14x14x128xf32>
    %150 = vector.shape_cast %149 : vector<2x1x14x14x128xf32> to vector<2x14x14x128xf32>
    %151 = vector.extract_strided_slice %0 {offsets = [16, 0, 0], sizes = [1, 1, 128], strides = [1, 1, 1]} : vector<25x1x128xf32> to vector<1x1x128xf32>
    %152 = vector.shape_cast %151 : vector<1x1x128xf32> to vector<128xf32>
    %153 = vector.shape_cast %152 : vector<128xf32> to vector<1x1x1x128xf32>
    %154 = vector.broadcast %153 : vector<1x1x1x128xf32> to vector<2x14x14x128xf32>
    %155 = arith.mulf %150, %154 : vector<2x14x14x128xf32>
    %156 = arith.addf %148, %155 : vector<2x14x14x128xf32>
    %157 = vector.extract_strided_slice %13 {offsets = [0, 1, 1, 0, 0], sizes = [2, 1, 14, 14, 128], strides = [1, 1, 1, 1, 1]} : vector<2x2x16x14x128xf32> to vector<2x1x14x14x128xf32>
    %158 = vector.shape_cast %157 : vector<2x1x14x14x128xf32> to vector<2x14x14x128xf32>
    %159 = vector.extract_strided_slice %0 {offsets = [17, 0, 0], sizes = [1, 1, 128], strides = [1, 1, 1]} : vector<25x1x128xf32> to vector<1x1x128xf32>
    %160 = vector.shape_cast %159 : vector<1x1x128xf32> to vector<128xf32>
    %161 = vector.shape_cast %160 : vector<128xf32> to vector<1x1x1x128xf32>
    %162 = vector.broadcast %161 : vector<1x1x1x128xf32> to vector<2x14x14x128xf32>
    %163 = arith.mulf %158, %162 : vector<2x14x14x128xf32>
    %164 = arith.addf %156, %163 : vector<2x14x14x128xf32>
    %165 = vector.extract_strided_slice %16 {offsets = [0, 1, 1, 0, 0], sizes = [2, 1, 14, 14, 128], strides = [1, 1, 1, 1, 1]} : vector<2x2x16x14x128xf32> to vector<2x1x14x14x128xf32>
    %166 = vector.shape_cast %165 : vector<2x1x14x14x128xf32> to vector<2x14x14x128xf32>
    %167 = vector.extract_strided_slice %0 {offsets = [18, 0, 0], sizes = [1, 1, 128], strides = [1, 1, 1]} : vector<25x1x128xf32> to vector<1x1x128xf32>
    %168 = vector.shape_cast %167 : vector<1x1x128xf32> to vector<128xf32>
    %169 = vector.shape_cast %168 : vector<128xf32> to vector<1x1x1x128xf32>
    %170 = vector.broadcast %169 : vector<1x1x1x128xf32> to vector<2x14x14x128xf32>
    %171 = arith.mulf %166, %170 : vector<2x14x14x128xf32>
    %172 = arith.addf %164, %171 : vector<2x14x14x128xf32>
    %173 = vector.extract_strided_slice %19 {offsets = [0, 1, 1, 0, 0], sizes = [2, 1, 14, 14, 128], strides = [1, 1, 1, 1, 1]} : vector<2x2x16x14x128xf32> to vector<2x1x14x14x128xf32>
    %174 = vector.shape_cast %173 : vector<2x1x14x14x128xf32> to vector<2x14x14x128xf32>
    %175 = vector.extract_strided_slice %0 {offsets = [19, 0, 0], sizes = [1, 1, 128], strides = [1, 1, 1]} : vector<25x1x128xf32> to vector<1x1x128xf32>
    %176 = vector.shape_cast %175 : vector<1x1x128xf32> to vector<128xf32>
    %177 = vector.shape_cast %176 : vector<128xf32> to vector<1x1x1x128xf32>
    %178 = vector.broadcast %177 : vector<1x1x1x128xf32> to vector<2x14x14x128xf32>
    %179 = arith.mulf %174, %178 : vector<2x14x14x128xf32>
    %180 = arith.addf %172, %179 : vector<2x14x14x128xf32>
    %181 = vector.extract_strided_slice %7 {offsets = [0, 0, 2, 0, 0], sizes = [2, 1, 14, 14, 128], strides = [1, 1, 1, 1, 1]} : vector<2x2x16x14x128xf32> to vector<2x1x14x14x128xf32>
    %182 = vector.shape_cast %181 : vector<2x1x14x14x128xf32> to vector<2x14x14x128xf32>
    %183 = vector.extract_strided_slice %0 {offsets = [20, 0, 0], sizes = [1, 1, 128], strides = [1, 1, 1]} : vector<25x1x128xf32> to vector<1x1x128xf32>
    %184 = vector.shape_cast %183 : vector<1x1x128xf32> to vector<128xf32>
    %185 = vector.shape_cast %184 : vector<128xf32> to vector<1x1x1x128xf32>
    %186 = vector.broadcast %185 : vector<1x1x1x128xf32> to vector<2x14x14x128xf32>
    %187 = arith.mulf %182, %186 : vector<2x14x14x128xf32>
    %188 = arith.addf %180, %187 : vector<2x14x14x128xf32>
    %189 = vector.extract_strided_slice %10 {offsets = [0, 0, 2, 0, 0], sizes = [2, 1, 14, 14, 128], strides = [1, 1, 1, 1, 1]} : vector<2x2x16x14x128xf32> to vector<2x1x14x14x128xf32>
    %190 = vector.shape_cast %189 : vector<2x1x14x14x128xf32> to vector<2x14x14x128xf32>
    %191 = vector.extract_strided_slice %0 {offsets = [21, 0, 0], sizes = [1, 1, 128], strides = [1, 1, 1]} : vector<25x1x128xf32> to vector<1x1x128xf32>
    %192 = vector.shape_cast %191 : vector<1x1x128xf32> to vector<128xf32>
    %193 = vector.shape_cast %192 : vector<128xf32> to vector<1x1x1x128xf32>
    %194 = vector.broadcast %193 : vector<1x1x1x128xf32> to vector<2x14x14x128xf32>
    %195 = arith.mulf %190, %194 : vector<2x14x14x128xf32>
    %196 = arith.addf %188, %195 : vector<2x14x14x128xf32>
    %197 = vector.extract_strided_slice %13 {offsets = [0, 0, 2, 0, 0], sizes = [2, 1, 14, 14, 128], strides = [1, 1, 1, 1, 1]} : vector<2x2x16x14x128xf32> to vector<2x1x14x14x128xf32>
    %198 = vector.shape_cast %197 : vector<2x1x14x14x128xf32> to vector<2x14x14x128xf32>
    %199 = vector.extract_strided_slice %0 {offsets = [22, 0, 0], sizes = [1, 1, 128], strides = [1, 1, 1]} : vector<25x1x128xf32> to vector<1x1x128xf32>
    %200 = vector.shape_cast %199 : vector<1x1x128xf32> to vector<128xf32>
    %201 = vector.shape_cast %200 : vector<128xf32> to vector<1x1x1x128xf32>
    %202 = vector.broadcast %201 : vector<1x1x1x128xf32> to vector<2x14x14x128xf32>
    %203 = arith.mulf %198, %202 : vector<2x14x14x128xf32>
    %204 = arith.addf %196, %203 : vector<2x14x14x128xf32>
    %205 = vector.extract_strided_slice %16 {offsets = [0, 0, 2, 0, 0], sizes = [2, 1, 14, 14, 128], strides = [1, 1, 1, 1, 1]} : vector<2x2x16x14x128xf32> to vector<2x1x14x14x128xf32>
    %206 = vector.shape_cast %205 : vector<2x1x14x14x128xf32> to vector<2x14x14x128xf32>
    %207 = vector.extract_strided_slice %0 {offsets = [23, 0, 0], sizes = [1, 1, 128], strides = [1, 1, 1]} : vector<25x1x128xf32> to vector<1x1x128xf32>
    %208 = vector.shape_cast %207 : vector<1x1x128xf32> to vector<128xf32>
    %209 = vector.shape_cast %208 : vector<128xf32> to vector<1x1x1x128xf32>
    %210 = vector.broadcast %209 : vector<1x1x1x128xf32> to vector<2x14x14x128xf32>
    %211 = arith.mulf %206, %210 : vector<2x14x14x128xf32>
    %212 = arith.addf %204, %211 : vector<2x14x14x128xf32>
    %213 = vector.extract_strided_slice %19 {offsets = [0, 0, 2, 0, 0], sizes = [2, 1, 14, 14, 128], strides = [1, 1, 1, 1, 1]} : vector<2x2x16x14x128xf32> to vector<2x1x14x14x128xf32>
    %214 = vector.shape_cast %213 : vector<2x1x14x14x128xf32> to vector<2x14x14x128xf32>
    %215 = vector.extract_strided_slice %0 {offsets = [24, 0, 0], sizes = [1, 1, 128], strides = [1, 1, 1]} : vector<25x1x128xf32> to vector<1x1x128xf32>
    %216 = vector.shape_cast %215 : vector<1x1x128xf32> to vector<128xf32>
    %217 = vector.shape_cast %216 : vector<128xf32> to vector<1x1x1x128xf32>
    %218 = vector.broadcast %217 : vector<1x1x1x128xf32> to vector<2x14x14x128xf32>
    %219 = arith.mulf %214, %218 : vector<2x14x14x128xf32>
    %220 = arith.addf %212, %219 : vector<2x14x14x128xf32>
    %221 = vector.broadcast %2 : vector<1x1x1x128xf32> to vector<2x14x14x128xf32>
    %222 = arith.mulf %220, %221 : vector<2x14x14x128xf32>
    %223 = vector.broadcast %4 : vector<1x1x1x128xf32> to vector<2x14x14x128xf32>
    %224 = arith.addf %222, %223 : vector<2x14x14x128xf32>
    %cst_34 = arith.constant 0.000000e+00 : f32
    %225 = vector.broadcast %cst_34 : f32 to vector<2x14x14x128xf32>
    %226 = arith.maximumf %224, %225 : vector<2x14x14x128xf32>
    %c0_35 = arith.constant 0 : index
    %c0_36 = arith.constant 0 : index
    %c0_37 = arith.constant 0 : index
    %c0_38 = arith.constant 0 : index
    %227 = vector.load %arg5[%c0_35, %c0_36, %c0_37, %c0_38] : memref<2x14x14x128xf32, #tpu.memory_space<vmem>>, vector<2x14x14x128xf32>
    tpu.vector_store %arg5[%c0_35, %c0_36, %c0_37, %c0_38], %226 {strides = array<i32>} : memref<2x14x14x128xf32, #tpu.memory_space<vmem>>, vector<2x14x14x128xf32>,
    return
  }
  func.func @transform_0(%arg0: i32) -> (i32, i32, i32, i32, i32) {
    %c0_i32 = arith.constant 0 : i32
    %c0_i32_0 = arith.constant 0 : i32
    %c0_i32_1 = arith.constant 0 : i32
    %c0_i32_2 = arith.constant 0 : i32
    %c0_i32_3 = arith.constant 0 : i32
    return %c0_i32, %c0_i32_0, %c0_i32_1, %c0_i32_2, %arg0 : i32, i32, i32, i32, i32
  }
  func.func @transform_1(%arg0: i32) -> (i32, i32, i32) {
    %c0_i32 = arith.constant 0 : i32
    %c0_i32_0 = arith.constant 0 : i32
    %c0_i32_1 = arith.constant 0 : i32
    return %c0_i32, %c0_i32_0, %arg0 : i32, i32, i32
  }
  func.func @transform_2(%arg0: i32) -> (i32, i32) {
    %c0_i32 = arith.constant 0 : i32
    %c0_i32_0 = arith.constant 0 : i32
    return %c0_i32, %arg0 : i32, i32
  }
  func.func @transform_3(%arg0: i32) -> (i32, i32) {
    %c0_i32 = arith.constant 0 : i32
    %c0_i32_0 = arith.constant 0 : i32
    return %c0_i32, %arg0 : i32, i32
  }
  func.func @transform_4(%arg0: i32) -> (i32, i32, i32, i32) {
    %c0_i32 = arith.constant 0 : i32
    %c0_i32_0 = arith.constant 0 : i32
    %c0_i32_1 = arith.constant 0 : i32
    %c0_i32_2 = arith.constant 0 : i32
    return %c0_i32, %c0_i32_0, %c0_i32_1, %arg0 : i32, i32, i32, i32
  }
}

</mosaic_0001>

<llo_original>
// kernel: tpu_custom_call.1
$region0: #{tpu_custom_call.1}
  #allocation0 [shape = 'u32[]', space=smem, size = 0x4, offset = 0x4, fixed_abs, tag = 'smem constant byte address 0x4 - core index']
  #allocation1 [shape = 'u32[144,128]{1,0:T(1,128)}', space=vmem, size = 0x12000, scoped, tag = 'internal scratch']
  %s0 = inlined_call_operand.hbm [shape: f32[2,4,16,16,256], index: 0, kind: input, shape index: {}]
  %s1 = inlined_call_operand.hbm [shape: f32[25,1,256], index: 1, kind: input, shape index: {}]
  %s2 = inlined_call_operand.hbm [shape: f32[1,256], index: 2, kind: input, shape index: {}]
  %s3 = inlined_call_operand.hbm [shape: f32[1,256], index: 3, kind: input, shape index: {}]
  %s4 = inlined_call_operand.vmem [shape: f32[2,14,14,256], index: 4, kind: output, shape index: {}]
  %s5 = sld [smem:[#allocation0]]
  $region99: #{tpu_custom_call.1} parent=0
    _
  %s7 = ssub.s32 1, %s5
  %s8 = scalar_select 0, %s7, %s5
  $region1: #{tpu_custom_call.1} parent=0
    #allocation2 [shape = 'u8[2097152]{0}', space=vmem, size = 0x200000, scoped, tag = 'input window, operand 0']
    #allocation3 [shape = 's32[2]{0}', space=sflag, size = 0x8, scoped, tag = 'scoped memory for tpu_custom_call.1']
    #allocation4 [shape = 'u8[25600]{0}', space=vmem, size = 0x6400, scoped, tag = 'input window, operand 1']
    #allocation5 [shape = 's32[2]{0}', space=sflag, size = 0x8, scoped, tag = 'scoped memory for tpu_custom_call.1']
    #allocation6 [shape = 'u8[1024]{0}', space=vmem, size = 0x400, scoped, tag = 'input window, operand 2']
    #allocation7 [shape = 'u8[1024]{0}', space=vmem, size = 0x400, scoped, tag = 'input window, operand 3']
    #allocation8 [shape = 's32[2]{0}', space=sflag, size = 0x8, scoped, tag = 'scoped memory for tpu_custom_call.1']
    #allocation9 [shape = 'u8[458752]{0}', space=vmem, size = 0x70000, scoped, tag = 'output window, operand 0']
    %9 = vsyncpa [#allocation3], 0
    %s10 = scalar_lea.sflag [#allocation3], 1
    %11 = vsyncpa %s10, 0
    %12 = vsyncpa [#allocation5], 0
    %s13 = scalar_lea.sflag [#allocation5], 1
    %14 = vsyncpa %s13, 0
    %15 = vsyncpa [#allocation8], 0
    %s16 = scalar_lea.sflag [#allocation8], 1
    %17 = vsyncpa %s16, 0
    loop: start=0, step=1, limit=4
    $region2: #{tpu_custom_call.1} parent=1 // loop_pre_header
      _
    $region3: #{tpu_custom_call.1} parent=1 // loop_header
      %s19 = sphi 0, %s23
      %p20 = scmp.ge.s32.totalorder %s19, 4
      %s29 = sphi 0, %s31
      %s32 = sphi 0, %s29
      %s33 = sphi 0, %s32
      %s49 = sphi 0, %s33
      %s55 = sphi 0, %s57
      %s58 = sphi 0, %s55
      %s59 = sphi 0, %s58
      %s75 = sphi 0, %s59
      %s81 = sphi 0, %s83
      %s84 = sphi 0, %s81
      %s85 = sphi 0, %s84
      %s101 = sphi 0, %s85
      %s107 = sphi 0, %s109
      %s110 = sphi 0, %s107
      %s111 = sphi 0, %s110
      %s127 = sphi 0, %s111
      %s133 = sphi 0, %s135
      %s136 = sphi 0, %s133
      %s137 = sphi 0, %s136
      %s153 = sphi 0, %s137
    $region4: #{tpu_custom_call.1} parent=1 // loop_header_branch
      %22 = sbr.rel (%p20) target = $region8
    $region5: #{tpu_custom_call.1} parent=1 // loop_body
      %s24 = ssub.s32 %s19, 1
      %s25 = ssub.s32 %s19, 2
      %s26 = sadd.s32 %s19, 1
      %s27 = ssub.s32 %s19, %s26
      %p28 = scmp.eq.s32.totalorder %s27, 0
      %s30 = sadd.s32 %s29, 1
      %s31 = scalar_select %p28, %s29, %s30
      %p34 = pneg %p28
      %p35 = scmp.eq.s32.totalorder %s19, 1
      %p36 = por %p34, %p35
      %p37 = scmp.ne.s32.totalorder %s29, %s32
      %p38 = scmp.eq.s32.totalorder %s19, 0
      %p39 = por %p37, %p38
      %p40 = scmp.ne.s32.totalorder %s29, %s32
      %p41 = scmp.eq.s32.totalorder %s24, 1
      %p42 = por %p40, %p41
      %p43 = scmp.ne.s32.totalorder %s32, %s33
      %p44 = scmp.eq.s32.totalorder %s24, 0
      %p45 = por %p43, %p44
      %p46 = scmp.ne.s32.totalorder %s32, %s33
      %p47 = scmp.eq.s32.totalorder %s25, 1
      %p48 = por %p46, %p47
      %p50 = scmp.ne.s32.totalorder %s33, %s49
      %p51 = scmp.eq.s32.totalorder %s25, 0
      %p52 = por %p50, %p51
      %s53 = ssub.s32 %s19, %s26
      %p54 = scmp.eq.s32.totalorder %s53, 0
      %s56 = sadd.s32 %s55, 1
      %s57 = scalar_select %p54, %s55, %s56
      %p60 = pneg %p54
      %p61 = scmp.eq.s32.totalorder %s19, 1
      %p62 = por %p60, %p61
      %p63 = scmp.ne.s32.totalorder %s55, %s58
      %p64 = scmp.eq.s32.totalorder %s19, 0
      %p65 = por %p63, %p64
      %p66 = scmp.ne.s32.totalorder %s55, %s58
      %p67 = scmp.eq.s32.totalorder %s24, 1
      %p68 = por %p66, %p67
      %p69 = scmp.ne.s32.totalorder %s58, %s59
      %p70 = scmp.eq.s32.totalorder %s24, 0
      %p71 = por %p69, %p70
      %p72 = scmp.ne.s32.totalorder %s58, %s59
      %p73 = scmp.eq.s32.totalorder %s25, 1
      %p74 = por %p72, %p73
      %p76 = scmp.ne.s32.totalorder %s59, %s75
      %p77 = scmp.eq.s32.totalorder %s25, 0
      %p78 = por %p76, %p77
      %s79 = ssub.s32 %s19, %s26
      %p80 = scmp.eq.s32.totalorder %s79, 0
      %s82 = sadd.s32 %s81, 1
      %s83 = scalar_select %p80, %s81, %s82
      %p86 = pneg %p80
      %p87 = scmp.eq.s32.totalorder %s19, 1
      %p88 = por %p86, %p87
      %p89 = scmp.ne.s32.totalorder %s81, %s84
      %p90 = scmp.eq.s32.totalorder %s19, 0
      %p91 = por %p89, %p90
      %p92 = scmp.ne.s32.totalorder %s81, %s84
      %p93 = scmp.eq.s32.totalorder %s24, 1
      %p94 = por %p92, %p93
      %p95 = scmp.ne.s32.totalorder %s84, %s85
      %p96 = scmp.eq.s32.totalorder %s24, 0
      %p97 = por %p95, %p96
      %p98 = scmp.ne.s32.totalorder %s84, %s85
      %p99 = scmp.eq.s32.totalorder %s25, 1
      %p100 = por %p98, %p99
      %p102 = scmp.ne.s32.totalorder %s85, %s101
      %p103 = scmp.eq.s32.totalorder %s25, 0
      %p104 = por %p102, %p103
      %s105 = ssub.s32 %s19, %s26
      %p106 = scmp.eq.s32.totalorder %s105, 0
      %s108 = sadd.s32 %s107, 1
      %s109 = scalar_select %p106, %s107, %s108
      %p112 = pneg %p106
      %p113 = scmp.eq.s32.totalorder %s19, 1
      %p114 = por %p112, %p113
      %p115 = scmp.ne.s32.totalorder %s107, %s110
      %p116 = scmp.eq.s32.totalorder %s19, 0
      %p117 = por %p115, %p116
      %p118 = scmp.ne.s32.totalorder %s107, %s110
      %p119 = scmp.eq.s32.totalorder %s24, 1
      %p120 = por %p118, %p119
      %p121 = scmp.ne.s32.totalorder %s110, %s111
      %p122 = scmp.eq.s32.totalorder %s24, 0
      %p123 = por %p121, %p122
      %p124 = scmp.ne.s32.totalorder %s110, %s111
      %p125 = scmp.eq.s32.totalorder %s25, 1
      %p126 = por %p124, %p125
      %p128 = scmp.ne.s32.totalorder %s111, %s127
      %p129 = scmp.eq.s32.totalorder %s25, 0
      %p130 = por %p128, %p129
      %s131 = ssub.s32 %s19, %s26
      %p132 = scmp.eq.s32.totalorder %s131, 0
      %s134 = sadd.s32 %s133, 1
      %s135 = scalar_select %p132, %s133, %s134
      %p138 = pneg %p132
      %p139 = scmp.eq.s32.totalorder %s19, 1
      %p140 = por %p138, %p139
      %p141 = scmp.ne.s32.totalorder %s133, %s136
      %p142 = scmp.eq.s32.totalorder %s19, 0
      %p143 = por %p141, %p142
      %p144 = scmp.ne.s32.totalorder %s133, %s136
      %p145 = scmp.eq.s32.totalorder %s24, 1
      %p146 = por %p144, %p145
      %p147 = scmp.ne.s32.totalorder %s136, %s137
      %p148 = scmp.eq.s32.totalorder %s24, 0
      %p149 = por %p147, %p148
      %p150 = scmp.ne.s32.totalorder %s136, %s137
      %p151 = scmp.eq.s32.totalorder %s25, 1
      %p152 = por %p150, %p151
      %p154 = scmp.ne.s32.totalorder %s137, %s153
      %p155 = scmp.eq.s32.totalorder %s25, 0
      %p156 = por %p154, %p155
      %p157 = scmp.le.s32.totalorder 1, %s19
      %p158 = scmp.lt.s32.totalorder %s19, 3
      %p159 = pnand %p157, %p158
      %p160 = pneg %p159
      // Predicated region
      $region9: #{tpu_custom_call.1} parent=5 // pred_check
        _
      $region10: #{tpu_custom_call.1} parent=5 // pred_check_branch
        %162 = sbr.rel (%p159) target = $region12
      $region11: #{tpu_custom_call.1} parent=5 // pred_region
        %s163 = ssub.s32 %s19, 1
      $region12: #{tpu_custom_call.1} parent=5 // pred_fallthru
        _
      %p164 = scmp.lt.s32.totalorder %s19, 2
      // Predicated region
      $region13: #{tpu_custom_call.1} parent=5 // pred_check
        %p165 = pneg %p164
      $region14: #{tpu_custom_call.1} parent=5 // pred_check_branch
        %167 = sbr.rel (%p165) target = $region16
      $region15: #{tpu_custom_call.1} parent=5 // pred_region
        // Predicated region
        $region17: #{tpu_custom_call.1} parent=15 // pred_check
          %p168 = pneg %p39
        $region18: #{tpu_custom_call.1} parent=15 // pred_check_branch
          %170 = sbr.rel (%p168) target = $region20
        $region19: #{tpu_custom_call.1} parent=15 // pred_region
          %s171 = sand.u32 %s29, 1
          %s172 = scalar_lea.sflag [#allocation3], %s171
          %s173 = sand.u32 %s29, 1
          %s174 = smul.addr %s173, 2048
          %s175 = scalar_lea.vmem [#allocation2], %s174
          %s177 = ssub.s32 32768, 32768
          %178 = vsyncadd %s172, %s177
          %s179 = smul.addr %s19, 128
          %s180 = scalar_lea.hbm %s0, %s179
          %s181 = sshll.u32 %s175, 4
          %s182 = int_to_ptr.vmem [resolvable:$true] %s181
          %187 = dma.hbm_to_vmem [thread:$0]  %s180, 32768, %s182, %s172, 256, 128, 8
        $region20: #{tpu_custom_call.1} parent=15 // pred_fallthru
          _
        // Predicated region
        $region21: #{tpu_custom_call.1} parent=15 // pred_check
          %p188 = pneg %p65
        $region22: #{tpu_custom_call.1} parent=15 // pred_check_branch
          %190 = sbr.rel (%p188) target = $region24
        $region23: #{tpu_custom_call.1} parent=15 // pred_region
          %s191 = sand.u32 %s19, 1
          %s192 = scalar_lea.sflag [#allocation5], %s191
          %s193 = sand.u32 %s55, 1
          %s194 = smul.addr %s193, 25
          %s195 = scalar_lea.vmem [#allocation4], %s194
          %s197 = ssub.s32 400, 400
          %198 = vsyncadd %s192, %s197
          %s199 = smul.addr %s19, 16
          %s200 = scalar_lea.hbm %s1, %s199
          %s201 = sshll.u32 %s195, 4
          %s202 = int_to_ptr.vmem [resolvable:$true] %s201
          %207 = dma.hbm_to_vmem [thread:$0]  %s200, 400, %s202, %s192, 32, 16, 1
        $region24: #{tpu_custom_call.1} parent=15 // pred_fallthru
          _
        // Predicated region
        $region25: #{tpu_custom_call.1} parent=15 // pred_check
          %p208 = pneg %p91
        $region26: #{tpu_custom_call.1} parent=15 // pred_check_branch
          %210 = sbr.rel (%p208) target = $region28
        $region27: #{tpu_custom_call.1} parent=15 // pred_region
          %s211 = sand.u32 %s19, 1
          %s212 = scalar_lea.sflag [#allocation5], %s211
          %s213 = sand.u32 %s81, 1
          %s214 = scalar_lea.vmem [#allocation6], %s213
          %s216 = ssub.s32 16, 16
          %217 = vsyncadd %s212, %s216
          %s218 = smul.addr %s19, 16
          %s219 = scalar_lea.hbm %s2, %s218
          %s221 = sshll.u32 %s214, 4
          %s222 = int_to_ptr.vmem [resolvable:$true] %s221
          %224 = dma.hbm_to_vmem [thread:$0]  %s219, 16, %s222, %s212
        $region28: #{tpu_custom_call.1} parent=15 // pred_fallthru
          _
        // Predicated region
        $region29: #{tpu_custom_call.1} parent=15 // pred_check
          %p225 = pneg %p117
        $region30: #{tpu_custom_call.1} parent=15 // pred_check_branch
          %227 = sbr.rel (%p225) target = $region32
        $region31: #{tpu_custom_call.1} parent=15 // pred_region
          %s228 = sand.u32 %s107, 1
          %s229 = scalar_lea.sflag [#allocation8], %s228
          %s230 = sand.u32 %s107, 1
          %s231 = scalar_lea.vmem [#allocation7], %s230
          %s233 = ssub.s32 16, 16
          %234 = vsyncadd %s229, %s233
          %s235 = smul.addr %s19, 16
          %s236 = scalar_lea.hbm %s3, %s235
          %s238 = sshll.u32 %s231, 4
          %s239 = int_to_ptr.vmem [resolvable:$true] %s238
          %241 = dma.hbm_to_vmem [thread:$0]  %s236, 16, %s239, %s229
        $region32: #{tpu_custom_call.1} parent=15 // pred_fallthru
          _
      $region16: #{tpu_custom_call.1} parent=5 // pred_fallthru
        _
      %p242 = scmp.le.s32.totalorder 1, %s19
      %p243 = scmp.lt.s32.totalorder %s19, 3
      %p244 = pnand %p242, %p243
      %p245 = pneg %p244
      // Predicated region
      $region33: #{tpu_custom_call.1} parent=5 // pred_check
        _
      $region34: #{tpu_custom_call.1} parent=5 // pred_check_branch
        %247 = sbr.rel (%p244) target = $region36
      $region35: #{tpu_custom_call.1} parent=5 // pred_region
        %s248 = ssub.s32 %s19, 1
        %s249 = sand.u32 %s32, 1
        %s250 = scalar_lea.sflag [#allocation3], %s249
        %s251 = sand.u32 %s32, 1
        %s252 = smul.addr %s251, 2048
        %s253 = scalar_lea.vmem [#allocation2], %s252
        // Predicated region
        $region37: #{tpu_custom_call.1} parent=35 // pred_check
          %p254 = pneg %p45
        $region38: #{tpu_custom_call.1} parent=35 // pred_check_branch
          %256 = sbr.rel (%p254) target = $region40
        $region39: #{tpu_custom_call.1} parent=35 // pred_region
          %257 = dma.done %s250, 32768
        $region40: #{tpu_custom_call.1} parent=35 // pred_fallthru
          _
        %s258 = sand.u32 %s24, 1
        %s259 = scalar_lea.sflag [#allocation5], %s258
        %s260 = sand.u32 %s58, 1
        %s261 = smul.addr %s260, 25
        %s262 = scalar_lea.vmem [#allocation4], %s261
        // Predicated region
        $region41: #{tpu_custom_call.1} parent=35 // pred_check
          %p263 = pneg %p71
        $region42: #{tpu_custom_call.1} parent=35 // pred_check_branch
          %265 = sbr.rel (%p263) target = $region44
        $region43: #{tpu_custom_call.1} parent=35 // pred_region
          %266 = dma.done %s259, 400
        $region44: #{tpu_custom_call.1} parent=35 // pred_fallthru
          _
        %s267 = sand.u32 %s24, 1
        %s268 = scalar_lea.sflag [#allocation5], %s267
        %s269 = sand.u32 %s84, 1
        %s270 = scalar_lea.vmem [#allocation6], %s269
        // Predicated region
        $region45: #{tpu_custom_call.1} parent=35 // pred_check
          %p271 = pneg %p97
        $region46: #{tpu_custom_call.1} parent=35 // pred_check_branch
          %273 = sbr.rel (%p271) target = $region48
        $region47: #{tpu_custom_call.1} parent=35 // pred_region
          %274 = dma.done %s268, 16
        $region48: #{tpu_custom_call.1} parent=35 // pred_fallthru
          _
        %s275 = sand.u32 %s110, 1
        %s276 = scalar_lea.sflag [#allocation8], %s275
        %s277 = sand.u32 %s110, 1
        %s278 = scalar_lea.vmem [#allocation7], %s277
        // Predicated region
        $region49: #{tpu_custom_call.1} parent=35 // pred_check
          %p279 = pneg %p123
        $region50: #{tpu_custom_call.1} parent=35 // pred_check_branch
          %281 = sbr.rel (%p279) target = $region52
        $region51: #{tpu_custom_call.1} parent=35 // pred_region
          %282 = dma.done %s276, 16
        $region52: #{tpu_custom_call.1} parent=35 // pred_fallthru
          _
        %s283 = sand.u32 %s32, 1
        %s284 = scalar_lea.sflag [#allocation3], %s283
        %s285 = sand.u32 %s32, 1
        %s286 = smul.addr %s285, 2048
        %s287 = scalar_lea.vmem [#allocation2], %s286
        %p288 = pneg %p45
        %p289 = pneg %p42
        %s290 = sand.u32 %s24, 1
        %s291 = scalar_lea.sflag [#allocation5], %s290
        %s292 = sand.u32 %s58, 1
        %s293 = smul.addr %s292, 25
        %s294 = scalar_lea.vmem [#allocation4], %s293
        %p295 = pneg %p71
        %p296 = pneg %p68
        %s297 = sand.u32 %s24, 1
        %s298 = scalar_lea.sflag [#allocation5], %s297
        %s299 = sand.u32 %s84, 1
        %s300 = scalar_lea.vmem [#allocation6], %s299
        %p301 = pneg %p97
        %p302 = pneg %p94
        %s303 = sand.u32 %s110, 1
        %s304 = scalar_lea.sflag [#allocation8], %s303
        %s305 = sand.u32 %s110, 1
        %s306 = scalar_lea.vmem [#allocation7], %s305
        %p307 = pneg %p123
        %p308 = pneg %p120
        %p309 = pneg %p149
        %p310 = pneg %p146
        %s311 = sand.u32 %s136, 1
        %s312 = sand.u32 %s136, 1
        %s313 = smul.addr %s312, 448
        %s314 = scalar_lea.vmem [#allocation9], %s313
        %v315 = vld [vmem:[%s262] sm:$0x1]
        %v316 = vld [vmem:[%s262 + $0x1] sm:$0x1]
        %v317 = vld [vmem:[%s262 + $0x2] sm:$0x1]
        %v318 = vld [vmem:[%s262 + $0x3] sm:$0x1]
        %v319 = vld [vmem:[%s262 + $0x4] sm:$0x1]
        %v320 = vld [vmem:[%s262 + $0x5] sm:$0x1]
        %v321 = vld [vmem:[%s262 + $0x6] sm:$0x1]
        %v322 = vld [vmem:[%s262 + $0x7] sm:$0x1]
        %v323 = vld [vmem:[%s262 + $0x8] sm:$0x1]
        %v324 = vld [vmem:[%s262 + $0x9] sm:$0x1]
        %v325 = vld [vmem:[%s262 + $0xa] sm:$0x1]
        %v326 = vld [vmem:[%s262 + $0xb] sm:$0x1]
        %v327 = vld [vmem:[%s262 + $0xc] sm:$0x1]
        %v328 = vld [vmem:[%s262 + $0xd] sm:$0x1]
        %v329 = vld [vmem:[%s262 + $0xe] sm:$0x1]
        %v330 = vld [vmem:[%s262 + $0xf] sm:$0x1]
        %v331 = vld [vmem:[%s262 + $0x10] sm:$0x1]
        %v332 = vld [vmem:[%s262 + $0x11] sm:$0x1]
        %v333 = vld [vmem:[%s262 + $0x12] sm:$0x1]
        %v334 = vld [vmem:[%s262 + $0x13] sm:$0x1]
        %v335 = vld [vmem:[%s262 + $0x14] sm:$0x1]
        %v336 = vld [vmem:[%s262 + $0x15] sm:$0x1]
        %v337 = vld [vmem:[%s262 + $0x16] sm:$0x1]
        %v338 = vld [vmem:[%s262 + $0x17] sm:$0x1]
        %v339 = vld [vmem:[%s262 + $0x18] sm:$0x1]
        %v340 = vld [vmem:[%s270] sm:$0x1]
        %v341 = vld [vmem:[%s278] sm:$0x1]
        %v342 = vld [vmem:[%s253] sm:$0xff]
        %v343 = vld [vmem:[%s253 + $0x8] sm:$0x3f]
        %v344 = vld [vmem:[%s253 + $0x10] sm:$0xff]
        %v345 = vld [vmem:[%s253 + $0x18] sm:$0x3f]
        %v346 = vld [vmem:[%s253 + $0x20] sm:$0xff]
        %v347 = vld [vmem:[%s253 + $0x28] sm:$0x3f]
        %v348 = vld [vmem:[%s253 + $0x30] sm:$0xff]
        %v349 = vld [vmem:[%s253 + $0x38] sm:$0x3f]
        %v350 = vld [vmem:[%s253 + $0x40] sm:$0xff]
        %v351 = vld [vmem:[%s253 + $0x48] sm:$0x3f]
        %v352 = vld [vmem:[%s253 + $0x50] sm:$0xff]
        %v353 = vld [vmem:[%s253 + $0x58] sm:$0x3f]
        %v354 = vld [vmem:[%s253 + $0x60] sm:$0xff]
        %v355 = vld [vmem:[%s253 + $0x68] sm:$0x3f]
        %v356 = vld [vmem:[%s253 + $0x70] sm:$0xff]
        %v357 = vld [vmem:[%s253 + $0x78] sm:$0x3f]
        %v358 = vld [vmem:[%s253 + $0x80] sm:$0xff]
        %v359 = vld [vmem:[%s253 + $0x88] sm:$0x3f]
        %v360 = vld [vmem:[%s253 + $0x90] sm:$0xff]
        %v361 = vld [vmem:[%s253 + $0x98] sm:$0x3f]
        %v362 = vld [vmem:[%s253 + $0xa0] sm:$0xff]
        %v363 = vld [vmem:[%s253 + $0xa8] sm:$0x3f]
        %v364 = vld [vmem:[%s253 + $0xb0] sm:$0xff]
        %v365 = vld [vmem:[%s253 + $0xb8] sm:$0x3f]
        %v366 = vld [vmem:[%s253 + $0xc0] sm:$0xff]
        %v367 = vld [vmem:[%s253 + $0xc8] sm:$0x3f]
        %v368 = vld [vmem:[%s253 + $0xd0] sm:$0xff]
        %v369 = vld [vmem:[%s253 + $0xd8] sm:$0x3f]
        %v370 = vld [vmem:[%s253 + $0xe0] sm:$0xff]
        %v371 = vld [vmem:[%s253 + $0xe8] sm:$0x3f]
        %v372 = vld [vmem:[%s253 + $0xf0] sm:$0xff]
        %v373 = vld [vmem:[%s253 + $0xf8] sm:$0x3f]
        %v374 = vld [vmem:[%s253 + $0x100] sm:$0xff]
        %v375 = vld [vmem:[%s253 + $0x108] sm:$0x3f]
        %v376 = vld [vmem:[%s253 + $0x110] sm:$0xff]
        %v377 = vld [vmem:[%s253 + $0x118] sm:$0x3f]
        %v378 = vld [vmem:[%s253 + $0x120] sm:$0xff]
        %v379 = vld [vmem:[%s253 + $0x128] sm:$0x3f]
        %v380 = vld [vmem:[%s253 + $0x130] sm:$0xff]
        %v381 = vld [vmem:[%s253 + $0x138] sm:$0x3f]
        %v382 = vld [vmem:[%s253 + $0x140] sm:$0xff]
        %v383 = vld [vmem:[%s253 + $0x148] sm:$0x3f]
        %v384 = vld [vmem:[%s253 + $0x150] sm:$0xff]
        %v385 = vld [vmem:[%s253 + $0x158] sm:$0x3f]
        %v386 = vld [vmem:[%s253 + $0x160] sm:$0xff]
        %v387 = vld [vmem:[%s253 + $0x168] sm:$0x3f]
        %v388 = vld [vmem:[%s253 + $0x170] sm:$0xff]
        %v389 = vld [vmem:[%s253 + $0x178] sm:$0x3f]
        %v390 = vld [vmem:[%s253 + $0x180] sm:$0xff]
        %v391 = vld [vmem:[%s253 + $0x188] sm:$0x3f]
        %v392 = vld [vmem:[%s253 + $0x190] sm:$0xff]
        %v393 = vld [vmem:[%s253 + $0x198] sm:$0x3f]
        %v394 = vld [vmem:[%s253 + $0x1a0] sm:$0xff]
        %v395 = vld [vmem:[%s253 + $0x1a8] sm:$0x3f]
        %v396 = vld [vmem:[%s253 + $0x1b0] sm:$0xff]
        %v397 = vld [vmem:[%s253 + $0x1b8] sm:$0x3f]
        %v398 = vld [vmem:[%s253 + $0x1c0] sm:$0xff]
        %v399 = vld [vmem:[%s253 + $0x1c8] sm:$0x3f]
        %v400 = vld [vmem:[%s253 + $0x1d0] sm:$0xff]
        %v401 = vld [vmem:[%s253 + $0x1d8] sm:$0x3f]
        %v402 = vld [vmem:[%s253 + $0x1e0] sm:$0xff]
        %v403 = vld [vmem:[%s253 + $0x1e8] sm:$0x3f]
        %v404 = vld [vmem:[%s253 + $0x400] sm:$0xff]
        %v405 = vld [vmem:[%s253 + $0x408] sm:$0x3f]
        %v406 = vld [vmem:[%s253 + $0x410] sm:$0xff]
        %v407 = vld [vmem:[%s253 + $0x418] sm:$0x3f]
        %v408 = vld [vmem:[%s253 + $0x420] sm:$0xff]
        %v409 = vld [vmem:[%s253 + $0x428] sm:$0x3f]
        %v410 = vld [vmem:[%s253 + $0x430] sm:$0xff]
        %v411 = vld [vmem:[%s253 + $0x438] sm:$0x3f]
        %v412 = vld [vmem:[%s253 + $0x440] sm:$0xff]
        %v413 = vld [vmem:[%s253 + $0x448] sm:$0x3f]
        %v414 = vld [vmem:[%s253 + $0x450] sm:$0xff]
        %v415 = vld [vmem:[%s253 + $0x458] sm:$0x3f]
        %v416 = vld [vmem:[%s253 + $0x460] sm:$0xff]
        %v417 = vld [vmem:[%s253 + $0x468] sm:$0x3f]
        %v418 = vld [vmem:[%s253 + $0x470] sm:$0xff]
        %v419 = vld [vmem:[%s253 + $0x478] sm:$0x3f]
        %v420 = vld [vmem:[%s253 + $0x480] sm:$0xff]
        %v421 = vld [vmem:[%s253 + $0x488] sm:$0x3f]
        %v422 = vld [vmem:[%s253 + $0x490] sm:$0xff]
        %v423 = vld [vmem:[%s253 + $0x498] sm:$0x3f]
        %v424 = vld [vmem:[%s253 + $0x4a0] sm:$0xff]
        %v425 = vld [vmem:[%s253 + $0x4a8] sm:$0x3f]
        %v426 = vld [vmem:[%s253 + $0x4b0] sm:$0xff]
        %v427 = vld [vmem:[%s253 + $0x4b8] sm:$0x3f]
        %v428 = vld [vmem:[%s253 + $0x4c0] sm:$0xff]
        %v429 = vld [vmem:[%s253 + $0x4c8] sm:$0x3f]
        %v430 = vld [vmem:[%s253 + $0x4d0] sm:$0xff]
        %v431 = vld [vmem:[%s253 + $0x4d8] sm:$0x3f]
        %v432 = vld [vmem:[%s253 + $0x4e0] sm:$0xff]
        %v433 = vld [vmem:[%s253 + $0x4e8] sm:$0x3f]
        %v434 = vld [vmem:[%s253 + $0x4f0] sm:$0xff]
        %v435 = vld [vmem:[%s253 + $0x4f8] sm:$0x3f]
        %v436 = vld [vmem:[%s253 + $0x500] sm:$0xff]
        %v437 = vld [vmem:[%s253 + $0x508] sm:$0x3f]
        %v438 = vld [vmem:[%s253 + $0x510] sm:$0xff]
        %v439 = vld [vmem:[%s253 + $0x518] sm:$0x3f]
        %v440 = vld [vmem:[%s253 + $0x520] sm:$0xff]
        %v441 = vld [vmem:[%s253 + $0x528] sm:$0x3f]
        %v442 = vld [vmem:[%s253 + $0x530] sm:$0xff]
        %v443 = vld [vmem:[%s253 + $0x538] sm:$0x3f]
        %v444 = vld [vmem:[%s253 + $0x540] sm:$0xff]
        %v445 = vld [vmem:[%s253 + $0x548] sm:$0x3f]
        %v446 = vld [vmem:[%s253 + $0x550] sm:$0xff]
        %v447 = vld [vmem:[%s253 + $0x558] sm:$0x3f]
        %v448 = vld [vmem:[%s253 + $0x560] sm:$0xff]
        %v449 = vld [vmem:[%s253 + $0x568] sm:$0x3f]
        %v450 = vld [vmem:[%s253 + $0x570] sm:$0xff]
        %v451 = vld [vmem:[%s253 + $0x578] sm:$0x3f]
        %v452 = vld [vmem:[%s253 + $0x580] sm:$0xff]
        %v453 = vld [vmem:[%s253 + $0x588] sm:$0x3f]
        %v454 = vld [vmem:[%s253 + $0x590] sm:$0xff]
        %v455 = vld [vmem:[%s253 + $0x598] sm:$0x3f]
        %v456 = vld [vmem:[%s253 + $0x5a0] sm:$0xff]
        %v457 = vld [vmem:[%s253 + $0x5a8] sm:$0x3f]
        %v458 = vld [vmem:[%s253 + $0x5b0] sm:$0xff]
        %v459 = vld [vmem:[%s253 + $0x5b8] sm:$0x3f]
        %v460 = vld [vmem:[%s253 + $0x5c0] sm:$0xff]
        %v461 = vld [vmem:[%s253 + $0x5c8] sm:$0x3f]
        %v462 = vld [vmem:[%s253 + $0x5d0] sm:$0xff]
        %v463 = vld [vmem:[%s253 + $0x5d8] sm:$0x3f]
        %v464 = vld [vmem:[%s253 + $0x5e0] sm:$0xff]
        %v465 = vld [vmem:[%s253 + $0x5e8] sm:$0x3f]
        %v466 = vmax.f32 %v342, 0.0
        %v467 = vmax.f32 %v343, 0.0
        %v468 = vmax.f32 %v344, 0.0
        %v469 = vmax.f32 %v345, 0.0
        %v470 = vmax.f32 %v346, 0.0
        %v471 = vmax.f32 %v347, 0.0
        %v472 = vmax.f32 %v348, 0.0
        %v473 = vmax.f32 %v349, 0.0
        %v474 = vmax.f32 %v350, 0.0
        %v475 = vmax.f32 %v351, 0.0
        %v476 = vmax.f32 %v352, 0.0
        %v477 = vmax.f32 %v353, 0.0
        %v478 = vmax.f32 %v354, 0.0
        %v479 = vmax.f32 %v355, 0.0
        %v480 = vmax.f32 %v356, 0.0
        %v481 = vmax.f32 %v357, 0.0
        %v482 = vmax.f32 %v358, 0.0
        %v483 = vmax.f32 %v359, 0.0
        %v484 = vmax.f32 %v360, 0.0
        %v485 = vmax.f32 %v361, 0.0
        %v486 = vmax.f32 %v362, 0.0
        %v487 = vmax.f32 %v363, 0.0
        %v488 = vmax.f32 %v364, 0.0
        %v489 = vmax.f32 %v365, 0.0
        %v490 = vmax.f32 %v366, 0.0
        %v491 = vmax.f32 %v367, 0.0
        %v492 = vmax.f32 %v368, 0.0
        %v493 = vmax.f32 %v369, 0.0
        %v494 = vmax.f32 %v370, 0.0
        %v495 = vmax.f32 %v371, 0.0
        %v496 = vmax.f32 %v372, 0.0
        %v497 = vmax.f32 %v373, 0.0
        %v498 = vmax.f32 %v374, 0.0
        %v499 = vmax.f32 %v375, 0.0
        %v500 = vmax.f32 %v376, 0.0
        %v501 = vmax.f32 %v377, 0.0
        %v502 = vmax.f32 %v378, 0.0
        %v503 = vmax.f32 %v379, 0.0
        %v504 = vmax.f32 %v380, 0.0
        %v505 = vmax.f32 %v381, 0.0
        %v506 = vmax.f32 %v382, 0.0
        %v507 = vmax.f32 %v383, 0.0
        %v508 = vmax.f32 %v384, 0.0
        %v509 = vmax.f32 %v385, 0.0
        %v510 = vmax.f32 %v386, 0.0
        %v511 = vmax.f32 %v387, 0.0
        %v512 = vmax.f32 %v388, 0.0
        %v513 = vmax.f32 %v389, 0.0
        %v514 = vmax.f32 %v390, 0.0
        %v515 = vmax.f32 %v391, 0.0
        %v516 = vmax.f32 %v392, 0.0
        %v517 = vmax.f32 %v393, 0.0
        %v518 = vmax.f32 %v394, 0.0
        %v519 = vmax.f32 %v395, 0.0
        %v520 = vmax.f32 %v396, 0.0
        %v521 = vmax.f32 %v397, 0.0
        %v522 = vmax.f32 %v398, 0.0
        %v523 = vmax.f32 %v399, 0.0
        %v524 = vmax.f32 %v400, 0.0
        %v525 = vmax.f32 %v401, 0.0
        %v526 = vmax.f32 %v402, 0.0
        %v527 = vmax.f32 %v403, 0.0
        %v528 = vmax.f32 %v404, 0.0
        %v529 = vmax.f32 %v405, 0.0
        %v530 = vmax.f32 %v406, 0.0
        %v531 = vmax.f32 %v407, 0.0
        %v532 = vmax.f32 %v408, 0.0
        %v533 = vmax.f32 %v409, 0.0
        %v534 = vmax.f32 %v410, 0.0
        %v535 = vmax.f32 %v411, 0.0
        %v536 = vmax.f32 %v412, 0.0
        %v537 = vmax.f32 %v413, 0.0
        %v538 = vmax.f32 %v414, 0.0
        %v539 = vmax.f32 %v415, 0.0
        %v540 = vmax.f32 %v416, 0.0
        %v541 = vmax.f32 %v417, 0.0
        %v542 = vmax.f32 %v418, 0.0
        %v543 = vmax.f32 %v419, 0.0
        %v544 = vmax.f32 %v420, 0.0
        %v545 = vmax.f32 %v421, 0.0
        %v546 = vmax.f32 %v422, 0.0
        %v547 = vmax.f32 %v423, 0.0
        %v548 = vmax.f32 %v424, 0.0
        %v549 = vmax.f32 %v425, 0.0
        %v550 = vmax.f32 %v426, 0.0
        %v551 = vmax.f32 %v427, 0.0
        %v552 = vmax.f32 %v428, 0.0
        %v553 = vmax.f32 %v429, 0.0
        %v554 = vmax.f32 %v430, 0.0
        %v555 = vmax.f32 %v431, 0.0
        %v556 = vmax.f32 %v432, 0.0
        %v557 = vmax.f32 %v433, 0.0
        %v558 = vmax.f32 %v434, 0.0
        %v559 = vmax.f32 %v435, 0.0
        %v560 = vmax.f32 %v436, 0.0
        %v561 = vmax.f32 %v437, 0.0
        %v562 = vmax.f32 %v438, 0.0
        %v563 = vmax.f32 %v439, 0.0
        %v564 = vmax.f32 %v440, 0.0
        %v565 = vmax.f32 %v441, 0.0
        %v566 = vmax.f32 %v442, 0.0
        %v567 = vmax.f32 %v443, 0.0
        %v568 = vmax.f32 %v444, 0.0
        %v569 = vmax.f32 %v445, 0.0
        %v570 = vmax.f32 %v446, 0.0
        %v571 = vmax.f32 %v447, 0.0
        %v572 = vmax.f32 %v448, 0.0
        %v573 = vmax.f32 %v449, 0.0
        %v574 = vmax.f32 %v450, 0.0
        %v575 = vmax.f32 %v451, 0.0
        %v576 = vmax.f32 %v452, 0.0
        %v577 = vmax.f32 %v453, 0.0
        %v578 = vmax.f32 %v454, 0.0
        %v579 = vmax.f32 %v455, 0.0
        %v580 = vmax.f32 %v456, 0.0
        %v581 = vmax.f32 %v457, 0.0
        %v582 = vmax.f32 %v458, 0.0
        %v583 = vmax.f32 %v459, 0.0
        %v584 = vmax.f32 %v460, 0.0
        %v585 = vmax.f32 %v461, 0.0
        %v586 = vmax.f32 %v462, 0.0
        %v587 = vmax.f32 %v463, 0.0
        %v588 = vmax.f32 %v464, 0.0
        %v589 = vmax.f32 %v465, 0.0
        %s590 = scalar_lea.vmem %s253, 512 [#allocation2]
        %v591 = vld [vmem:[%s590] sm:$0xff]
        %v592 = vld [vmem:[%s590 + $0x8] sm:$0x3f]
        %v593 = vld [vmem:[%s590 + $0x10] sm:$0xff]
        %v594 = vld [vmem:[%s590 + $0x18] sm:$0x3f]
        %v595 = vld [vmem:[%s590 + $0x20] sm:$0xff]
        %v596 = vld [vmem:[%s590 + $0x28] sm:$0x3f]
        %v597 = vld [vmem:[%s590 + $0x30] sm:$0xff]
        %v598 = vld [vmem:[%s590 + $0x38] sm:$0x3f]
        %v599 = vld [vmem:[%s590 + $0x40] sm:$0xff]
        %v600 = vld [vmem:[%s590 + $0x48] sm:$0x3f]
        %v601 = vld [vmem:[%s590 + $0x50] sm:$0xff]
        %v602 = vld [vmem:[%s590 + $0x58] sm:$0x3f]
        %v603 = vld [vmem:[%s590 + $0x60] sm:$0xff]
        %v604 = vld [vmem:[%s590 + $0x68] sm:$0x3f]
        %v605 = vld [vmem:[%s590 + $0x70] sm:$0xff]
        %v606 = vld [vmem:[%s590 + $0x78] sm:$0x3f]
        %v607 = vld [vmem:[%s590 + $0x80] sm:$0xff]
        %v608 = vld [vmem:[%s590 + $0x88] sm:$0x3f]
        %v609 = vld [vmem:[%s590 + $0x90] sm:$0xff]
        %v610 = vld [vmem:[%s590 + $0x98] sm:$0x3f]
        %v611 = vld [vmem:[%s590 + $0xa0] sm:$0xff]
        %v612 = vld [vmem:[%s590 + $0xa8] sm:$0x3f]
        %v613 = vld [vmem:[%s590 + $0xb0] sm:$0xff]
        %v614 = vld [vmem:[%s590 + $0xb8] sm:$0x3f]
        %v615 = vld [vmem:[%s590 + $0xc0] sm:$0xff]
        %v616 = vld [vmem:[%s590 + $0xc8] sm:$0x3f]
        %v617 = vld [vmem:[%s590 + $0xd0] sm:$0xff]
        %v618 = vld [vmem:[%s590 + $0xd8] sm:$0x3f]
        %v619 = vld [vmem:[%s590 + $0xe0] sm:$0xff]
        %v620 = vld [vmem:[%s590 + $0xe8] sm:$0x3f]
        %v621 = vld [vmem:[%s590 + $0xf0] sm:$0xff]
        %v622 = vld [vmem:[%s590 + $0xf8] sm:$0x3f]
        %v623 = vld [vmem:[%s590 + $0x100] sm:$0xff]
        %v624 = vld [vmem:[%s590 + $0x108] sm:$0x3f]
        %v625 = vld [vmem:[%s590 + $0x110] sm:$0xff]
        %v626 = vld [vmem:[%s590 + $0x118] sm:$0x3f]
        %v627 = vld [vmem:[%s590 + $0x120] sm:$0xff]
        %v628 = vld [vmem:[%s590 + $0x128] sm:$0x3f]
        %v629 = vld [vmem:[%s590 + $0x130] sm:$0xff]
        %v630 = vld [vmem:[%s590 + $0x138] sm:$0x3f]
        %v631 = vld [vmem:[%s590 + $0x140] sm:$0xff]
        %v632 = vld [vmem:[%s590 + $0x148] sm:$0x3f]
        %v633 = vld [vmem:[%s590 + $0x150] sm:$0xff]
        %v634 = vld [vmem:[%s590 + $0x158] sm:$0x3f]
        %v635 = vld [vmem:[%s590 + $0x160] sm:$0xff]
        %v636 = vld [vmem:[%s590 + $0x168] sm:$0x3f]
        %v637 = vld [vmem:[%s590 + $0x170] sm:$0xff]
        %v638 = vld [vmem:[%s590 + $0x178] sm:$0x3f]
        %v639 = vld [vmem:[%s590 + $0x180] sm:$0xff]
        %v640 = vld [vmem:[%s590 + $0x188] sm:$0x3f]
        %v641 = vld [vmem:[%s590 + $0x190] sm:$0xff]
        %v642 = vld [vmem:[%s590 + $0x198] sm:$0x3f]
        %v643 = vld [vmem:[%s590 + $0x1a0] sm:$0xff]
        %v644 = vld [vmem:[%s590 + $0x1a8] sm:$0x3f]
        %v645 = vld [vmem:[%s590 + $0x1b0] sm:$0xff]
        %v646 = vld [vmem:[%s590 + $0x1b8] sm:$0x3f]
        %v647 = vld [vmem:[%s590 + $0x1c0] sm:$0xff]
        %v648 = vld [vmem:[%s590 + $0x1c8] sm:$0x3f]
        %v649 = vld [vmem:[%s590 + $0x1d0] sm:$0xff]
        %v650 = vld [vmem:[%s590 + $0x1d8] sm:$0x3f]
        %v651 = vld [vmem:[%s590 + $0x1e0] sm:$0xff]
        %v652 = vld [vmem:[%s590 + $0x1e8] sm:$0x3f]
        %v653 = vld [vmem:[%s590 + $0x400] sm:$0xff]
        %v654 = vld [vmem:[%s590 + $0x408] sm:$0x3f]
        %v655 = vld [vmem:[%s590 + $0x410] sm:$0xff]
        %v656 = vld [vmem:[%s590 + $0x418] sm:$0x3f]
        %v657 = vld [vmem:[%s590 + $0x420] sm:$0xff]
        %v658 = vld [vmem:[%s590 + $0x428] sm:$0x3f]
        %v659 = vld [vmem:[%s590 + $0x430] sm:$0xff]
        %v660 = vld [vmem:[%s590 + $0x438] sm:$0x3f]
        %v661 = vld [vmem:[%s590 + $0x440] sm:$0xff]
        %v662 = vld [vmem:[%s590 + $0x448] sm:$0x3f]
        %v663 = vld [vmem:[%s590 + $0x450] sm:$0xff]
        %v664 = vld [vmem:[%s590 + $0x458] sm:$0x3f]
        %v665 = vld [vmem:[%s590 + $0x460] sm:$0xff]
        %v666 = vld [vmem:[%s590 + $0x468] sm:$0x3f]
        %v667 = vld [vmem:[%s590 + $0x470] sm:$0xff]
        %v668 = vld [vmem:[%s590 + $0x478] sm:$0x3f]
        %v669 = vld [vmem:[%s590 + $0x480] sm:$0xff]
        %v670 = vld [vmem:[%s590 + $0x488] sm:$0x3f]
        %v671 = vld [vmem:[%s590 + $0x490] sm:$0xff]
        %v672 = vld [vmem:[%s590 + $0x498] sm:$0x3f]
        %v673 = vld [vmem:[%s590 + $0x4a0] sm:$0xff]
        %v674 = vld [vmem:[%s590 + $0x4a8] sm:$0x3f]
        %v675 = vld [vmem:[%s590 + $0x4b0] sm:$0xff]
        %v676 = vld [vmem:[%s590 + $0x4b8] sm:$0x3f]
        %v677 = vld [vmem:[%s590 + $0x4c0] sm:$0xff]
        %v678 = vld [vmem:[%s590 + $0x4c8] sm:$0x3f]
        %v679 = vld [vmem:[%s590 + $0x4d0] sm:$0xff]
        %v680 = vld [vmem:[%s590 + $0x4d8] sm:$0x3f]
        %v681 = vld [vmem:[%s590 + $0x4e0] sm:$0xff]
        %v682 = vld [vmem:[%s590 + $0x4e8] sm:$0x3f]
        %v683 = vld [vmem:[%s590 + $0x4f0] sm:$0xff]
        %v684 = vld [vmem:[%s590 + $0x4f8] sm:$0x3f]
        %v685 = vld [vmem:[%s590 + $0x500] sm:$0xff]
        %v686 = vld [vmem:[%s590 + $0x508] sm:$0x3f]
        %v687 = vld [vmem:[%s590 + $0x510] sm:$0xff]
        %v688 = vld [vmem:[%s590 + $0x518] sm:$0x3f]
        %v689 = vld [vmem:[%s590 + $0x520] sm:$0xff]
        %v690 = vld [vmem:[%s590 + $0x528] sm:$0x3f]
        %v691 = vld [vmem:[%s590 + $0x530] sm:$0xff]
        %v692 = vld [vmem:[%s590 + $0x538] sm:$0x3f]
        %v693 = vld [vmem:[%s590 + $0x540] sm:$0xff]
        %v694 = vld [vmem:[%s590 + $0x548] sm:$0x3f]
        %v695 = vld [vmem:[%s590 + $0x550] sm:$0xff]
        %v696 = vld [vmem:[%s590 + $0x558] sm:$0x3f]
        %v697 = vld [vmem:[%s590 + $0x560] sm:$0xff]
        %v698 = vld [vmem:[%s590 + $0x568] sm:$0x3f]
        %v699 = vld [vmem:[%s590 + $0x570] sm:$0xff]
        %v700 = vld [vmem:[%s590 + $0x578] sm:$0x3f]
        %v701 = vld [vmem:[%s590 + $0x580] sm:$0xff]
        %v702 = vld [vmem:[%s590 + $0x588] sm:$0x3f]
        %v703 = vld [vmem:[%s590 + $0x590] sm:$0xff]
        %v704 = vld [vmem:[%s590 + $0x598] sm:$0x3f]
        %v705 = vld [vmem:[%s590 + $0x5a0] sm:$0xff]
        %v706 = vld [vmem:[%s590 + $0x5a8] sm:$0x3f]
        %v707 = vld [vmem:[%s590 + $0x5b0] sm:$0xff]
        %v708 = vld [vmem:[%s590 + $0x5b8] sm:$0x3f]
        %v709 = vld [vmem:[%s590 + $0x5c0] sm:$0xff]
        %v710 = vld [vmem:[%s590 + $0x5c8] sm:$0x3f]
        %v711 = vld [vmem:[%s590 + $0x5d0] sm:$0xff]
        %v712 = vld [vmem:[%s590 + $0x5d8] sm:$0x3f]
        %v713 = vld [vmem:[%s590 + $0x5e0] sm:$0xff]
        %v714 = vld [vmem:[%s590 + $0x5e8] sm:$0x3f]
        %v715 = vmax.f32 %v591, 0.0
        %v716 = vmax.f32 %v592, 0.0
        %v717 = vmax.f32 %v593, 0.0
        %v718 = vmax.f32 %v594, 0.0
        %v719 = vmax.f32 %v595, 0.0
        %v720 = vmax.f32 %v596, 0.0
        %v721 = vmax.f32 %v597, 0.0
        %v722 = vmax.f32 %v598, 0.0
        %v723 = vmax.f32 %v599, 0.0
        %v724 = vmax.f32 %v600, 0.0
        %v725 = vmax.f32 %v601, 0.0
        %v726 = vmax.f32 %v602, 0.0
        %v727 = vmax.f32 %v603, 0.0
        %v728 = vmax.f32 %v604, 0.0
        %v729 = vmax.f32 %v605, 0.0
        %v730 = vmax.f32 %v606, 0.0
        %v731 = vmax.f32 %v607, 0.0
        %v732 = vmax.f32 %v608, 0.0
        %v733 = vmax.f32 %v609, 0.0
        %v734 = vmax.f32 %v610, 0.0
        %v735 = vmax.f32 %v611, 0.0
        %v736 = vmax.f32 %v612, 0.0
        %v737 = vmax.f32 %v613, 0.0
        %v738 = vmax.f32 %v614, 0.0
        %v739 = vmax.f32 %v615, 0.0
        %v740 = vmax.f32 %v616, 0.0
        %v741 = vmax.f32 %v617, 0.0
        %v742 = vmax.f32 %v618, 0.0
        %v743 = vmax.f32 %v619, 0.0
        %v744 = vmax.f32 %v620, 0.0
        %v745 = vmax.f32 %v621, 0.0
        %v746 = vmax.f32 %v622, 0.0
        %v747 = vmax.f32 %v623, 0.0
        %v748 = vmax.f32 %v624, 0.0
        %v749 = vmax.f32 %v625, 0.0
        %v750 = vmax.f32 %v626, 0.0
        %v751 = vmax.f32 %v627, 0.0
        %v752 = vmax.f32 %v628, 0.0
        %v753 = vmax.f32 %v629, 0.0
        %v754 = vmax.f32 %v630, 0.0
        %v755 = vmax.f32 %v631, 0.0
        %v756 = vmax.f32 %v632, 0.0
        %v757 = vmax.f32 %v633, 0.0
        %v758 = vmax.f32 %v634, 0.0
        %v759 = vmax.f32 %v635, 0.0
        %v760 = vmax.f32 %v636, 0.0
        %v761 = vmax.f32 %v637, 0.0
        %v762 = vmax.f32 %v638, 0.0
        %v763 = vmax.f32 %v639, 0.0
        %v764 = vmax.f32 %v640, 0.0
        %v765 = vmax.f32 %v641, 0.0
        %v766 = vmax.f32 %v642, 0.0
        %v767 = vmax.f32 %v643, 0.0
        %v768 = vmax.f32 %v644, 0.0
        %v769 = vmax.f32 %v645, 0.0
        %v770 = vmax.f32 %v646, 0.0
        %v771 = vmax.f32 %v647, 0.0
        %v772 = vmax.f32 %v648, 0.0
        %v773 = vmax.f32 %v649, 0.0
        %v774 = vmax.f32 %v650, 0.0
        %v775 = vmax.f32 %v651, 0.0
        %v776 = vmax.f32 %v652, 0.0
        %v777 = vmax.f32 %v653, 0.0
        %v778 = vmax.f32 %v654, 0.0
        %v779 = vmax.f32 %v655, 0.0
        %v780 = vmax.f32 %v656, 0.0
        %v781 = vmax.f32 %v657, 0.0
        %v782 = vmax.f32 %v658, 0.0
        %v783 = vmax.f32 %v659, 0.0
        %v784 = vmax.f32 %v660, 0.0
        %v785 = vmax.f32 %v661, 0.0
        %v786 = vmax.f32 %v662, 0.0
        %v787 = vmax.f32 %v663, 0.0
        %v788 = vmax.f32 %v664, 0.0
        %v789 = vmax.f32 %v665, 0.0
        %v790 = vmax.f32 %v666, 0.0
        %v791 = vmax.f32 %v667, 0.0
        %v792 = vmax.f32 %v668, 0.0
        %v793 = vmax.f32 %v669, 0.0
        %v794 = vmax.f32 %v670, 0.0
        %v795 = vmax.f32 %v671, 0.0
        %v796 = vmax.f32 %v672, 0.0
        %v797 = vmax.f32 %v673, 0.0
        %v798 = vmax.f32 %v674, 0.0
        %v799 = vmax.f32 %v675, 0.0
        %v800 = vmax.f32 %v676, 0.0
        %v801 = vmax.f32 %v677, 0.0
        %v802 = vmax.f32 %v678, 0.0
        %v803 = vmax.f32 %v679, 0.0
        %v804 = vmax.f32 %v680, 0.0
        %v805 = vmax.f32 %v681, 0.0
        %v806 = vmax.f32 %v682, 0.0
        %v807 = vmax.f32 %v683, 0.0
        %v808 = vmax.f32 %v684, 0.0
        %v809 = vmax.f32 %v685, 0.0
        %v810 = vmax.f32 %v686, 0.0
        %v811 = vmax.f32 %v687, 0.0
        %v812 = vmax.f32 %v688, 0.0
        %v813 = vmax.f32 %v689, 0.0
        %v814 = vmax.f32 %v690, 0.0
        %v815 = vmax.f32 %v691, 0.0
        %v816 = vmax.f32 %v692, 0.0
        %v817 = vmax.f32 %v693, 0.0
        %v818 = vmax.f32 %v694, 0.0
        %v819 = vmax.f32 %v695, 0.0
        %v820 = vmax.f32 %v696, 0.0
        %v821 = vmax.f32 %v697, 0.0
        %v822 = vmax.f32 %v698, 0.0
        %v823 = vmax.f32 %v699, 0.0
        %v824 = vmax.f32 %v700, 0.0
        %v825 = vmax.f32 %v701, 0.0
        %v826 = vmax.f32 %v702, 0.0
        %v827 = vmax.f32 %v703, 0.0
        %v828 = vmax.f32 %v704, 0.0
        %v829 = vmax.f32 %v705, 0.0
        %v830 = vmax.f32 %v706, 0.0
        %v831 = vmax.f32 %v707, 0.0
        %v832 = vmax.f32 %v708, 0.0
        %v833 = vmax.f32 %v709, 0.0
        %v834 = vmax.f32 %v710, 0.0
        %v835 = vmax.f32 %v711, 0.0
        %v836 = vmax.f32 %v712, 0.0
        %v837 = vmax.f32 %v713, 0.0
        %v838 = vmax.f32 %v714, 0.0
        %v839 = vld [vmem:[%s253 + $0x1] sm:$0xff]
        %v840 = vld [vmem:[%s253 + $0x9] sm:$0x3f]
        %v841 = vld [vmem:[%s253 + $0x11] sm:$0xff]
        %v842 = vld [vmem:[%s253 + $0x19] sm:$0x3f]
        %v843 = vld [vmem:[%s253 + $0x21] sm:$0xff]
        %v844 = vld [vmem:[%s253 + $0x29] sm:$0x3f]
        %v845 = vld [vmem:[%s253 + $0x31] sm:$0xff]
        %v846 = vld [vmem:[%s253 + $0x39] sm:$0x3f]
        %v847 = vld [vmem:[%s253 + $0x41] sm:$0xff]
        %v848 = vld [vmem:[%s253 + $0x49] sm:$0x3f]
        %v849 = vld [vmem:[%s253 + $0x51] sm:$0xff]
        %v850 = vld [vmem:[%s253 + $0x59] sm:$0x3f]
        %v851 = vld [vmem:[%s253 + $0x61] sm:$0xff]
        %v852 = vld [vmem:[%s253 + $0x69] sm:$0x3f]
        %v853 = vld [vmem:[%s253 + $0x71] sm:$0xff]
        %v854 = vld [vmem:[%s253 + $0x79] sm:$0x3f]
        %v855 = vld [vmem:[%s253 + $0x81] sm:$0xff]
        %v856 = vld [vmem:[%s253 + $0x89] sm:$0x3f]
        %v857 = vld [vmem:[%s253 + $0x91] sm:$0xff]
        %v858 = vld [vmem:[%s253 + $0x99] sm:$0x3f]
        %v859 = vld [vmem:[%s253 + $0xa1] sm:$0xff]
        %v860 = vld [vmem:[%s253 + $0xa9] sm:$0x3f]
        %v861 = vld [vmem:[%s253 + $0xb1] sm:$0xff]
        %v862 = vld [vmem:[%s253 + $0xb9] sm:$0x3f]
        %v863 = vld [vmem:[%s253 + $0xc1] sm:$0xff]
        %v864 = vld [vmem:[%s253 + $0xc9] sm:$0x3f]
        %v865 = vld [vmem:[%s253 + $0xd1] sm:$0xff]
        %v866 = vld [vmem:[%s253 + $0xd9] sm:$0x3f]
        %v867 = vld [vmem:[%s253 + $0xe1] sm:$0xff]
        %v868 = vld [vmem:[%s253 + $0xe9] sm:$0x3f]
        %v869 = vld [vmem:[%s253 + $0xf1] sm:$0xff]
        %v870 = vld [vmem:[%s253 + $0xf9] sm:$0x3f]
        %v871 = vld [vmem:[%s253 + $0x101] sm:$0xff]
        %v872 = vld [vmem:[%s253 + $0x109] sm:$0x3f]
        %v873 = vld [vmem:[%s253 + $0x111] sm:$0xff]
        %v874 = vld [vmem:[%s253 + $0x119] sm:$0x3f]
        %v875 = vld [vmem:[%s253 + $0x121] sm:$0xff]
        %v876 = vld [vmem:[%s253 + $0x129] sm:$0x3f]
        %v877 = vld [vmem:[%s253 + $0x131] sm:$0xff]
        %v878 = vld [vmem:[%s253 + $0x139] sm:$0x3f]
        %v879 = vld [vmem:[%s253 + $0x141] sm:$0xff]
        %v880 = vld [vmem:[%s253 + $0x149] sm:$0x3f]
        %v881 = vld [vmem:[%s253 + $0x151] sm:$0xff]
        %v882 = vld [vmem:[%s253 + $0x159] sm:$0x3f]
        %v883 = vld [vmem:[%s253 + $0x161] sm:$0xff]
        %v884 = vld [vmem:[%s253 + $0x169] sm:$0x3f]
        %v885 = vld [vmem:[%s253 + $0x171] sm:$0xff]
        %v886 = vld [vmem:[%s253 + $0x179] sm:$0x3f]
        %v887 = vld [vmem:[%s253 + $0x181] sm:$0xff]
        %v888 = vld [vmem:[%s253 + $0x189] sm:$0x3f]
        %v889 = vld [vmem:[%s253 + $0x191] sm:$0xff]
        %v890 = vld [vmem:[%s253 + $0x199] sm:$0x3f]
        %v891 = vld [vmem:[%s253 + $0x1a1] sm:$0xff]
        %v892 = vld [vmem:[%s253 + $0x1a9] sm:$0x3f]
        %v893 = vld [vmem:[%s253 + $0x1b1] sm:$0xff]
        %v894 = vld [vmem:[%s253 + $0x1b9] sm:$0x3f]
        %v895 = vld [vmem:[%s253 + $0x1c1] sm:$0xff]
        %v896 = vld [vmem:[%s253 + $0x1c9] sm:$0x3f]
        %v897 = vld [vmem:[%s253 + $0x1d1] sm:$0xff]
        %v898 = vld [vmem:[%s253 + $0x1d9] sm:$0x3f]
        %v899 = vld [vmem:[%s253 + $0x1e1] sm:$0xff]
        %v900 = vld [vmem:[%s253 + $0x1e9] sm:$0x3f]
        %v901 = vld [vmem:[%s253 + $0x401] sm:$0xff]
        %v902 = vld [vmem:[%s253 + $0x409] sm:$0x3f]
        %v903 = vld [vmem:[%s253 + $0x411] sm:$0xff]
        %v904 = vld [vmem:[%s253 + $0x419] sm:$0x3f]
        %v905 = vld [vmem:[%s253 + $0x421] sm:$0xff]
        %v906 = vld [vmem:[%s253 + $0x429] sm:$0x3f]
        %v907 = vld [vmem:[%s253 + $0x431] sm:$0xff]
        %v908 = vld [vmem:[%s253 + $0x439] sm:$0x3f]
        %v909 = vld [vmem:[%s253 + $0x441] sm:$0xff]
        %v910 = vld [vmem:[%s253 + $0x449] sm:$0x3f]
        %v911 = vld [vmem:[%s253 + $0x451] sm:$0xff]
        %v912 = vld [vmem:[%s253 + $0x459] sm:$0x3f]
        %v913 = vld [vmem:[%s253 + $0x461] sm:$0xff]
        %v914 = vld [vmem:[%s253 + $0x469] sm:$0x3f]
        %v915 = vld [vmem:[%s253 + $0x471] sm:$0xff]
        %v916 = vld [vmem:[%s253 + $0x479] sm:$0x3f]
        %v917 = vld [vmem:[%s253 + $0x481] sm:$0xff]
        %v918 = vld [vmem:[%s253 + $0x489] sm:$0x3f]
        %v919 = vld [vmem:[%s253 + $0x491] sm:$0xff]
        %v920 = vld [vmem:[%s253 + $0x499] sm:$0x3f]
        %v921 = vld [vmem:[%s253 + $0x4a1] sm:$0xff]
        %v922 = vld [vmem:[%s253 + $0x4a9] sm:$0x3f]
        %v923 = vld [vmem:[%s253 + $0x4b1] sm:$0xff]
        %v924 = vld [vmem:[%s253 + $0x4b9] sm:$0x3f]
        %v925 = vld [vmem:[%s253 + $0x4c1] sm:$0xff]
        %v926 = vld [vmem:[%s253 + $0x4c9] sm:$0x3f]
        %v927 = vld [vmem:[%s253 + $0x4d1] sm:$0xff]
        %v928 = vld [vmem:[%s253 + $0x4d9] sm:$0x3f]
        %v929 = vld [vmem:[%s253 + $0x4e1] sm:$0xff]
        %v930 = vld [vmem:[%s253 + $0x4e9] sm:$0x3f]
        %v931 = vld [vmem:[%s253 + $0x4f1] sm:$0xff]
        %v932 = vld [vmem:[%s253 + $0x4f9] sm:$0x3f]
        %v933 = vld [vmem:[%s253 + $0x501] sm:$0xff]
        %v934 = vld [vmem:[%s253 + $0x509] sm:$0x3f]
        %v935 = vld [vmem:[%s253 + $0x511] sm:$0xff]
        %v936 = vld [vmem:[%s253 + $0x519] sm:$0x3f]
        %v937 = vld [vmem:[%s253 + $0x521] sm:$0xff]
        %v938 = vld [vmem:[%s253 + $0x529] sm:$0x3f]
        %v939 = vld [vmem:[%s253 + $0x531] sm:$0xff]
        %v940 = vld [vmem:[%s253 + $0x539] sm:$0x3f]
        %v941 = vld [vmem:[%s253 + $0x541] sm:$0xff]
        %v942 = vld [vmem:[%s253 + $0x549] sm:$0x3f]
        %v943 = vld [vmem:[%s253 + $0x551] sm:$0xff]
        %v944 = vld [vmem:[%s253 + $0x559] sm:$0x3f]
        %v945 = vld [vmem:[%s253 + $0x561] sm:$0xff]
        %v946 = vld [vmem:[%s253 + $0x569] sm:$0x3f]
        %v947 = vld [vmem:[%s253 + $0x571] sm:$0xff]
        %v948 = vld [vmem:[%s253 + $0x579] sm:$0x3f]
        %v949 = vld [vmem:[%s253 + $0x581] sm:$0xff]
        %v950 = vld [vmem:[%s253 + $0x589] sm:$0x3f]
        %v951 = vld [vmem:[%s253 + $0x591] sm:$0xff]
        %v952 = vld [vmem:[%s253 + $0x599] sm:$0x3f]
        %v953 = vld [vmem:[%s253 + $0x5a1] sm:$0xff]
        %v954 = vld [vmem:[%s253 + $0x5a9] sm:$0x3f]
        %v955 = vld [vmem:[%s253 + $0x5b1] sm:$0xff]
        %v956 = vld [vmem:[%s253 + $0x5b9] sm:$0x3f]
        %v957 = vld [vmem:[%s253 + $0x5c1] sm:$0xff]
        %v958 = vld [vmem:[%s253 + $0x5c9] sm:$0x3f]
        %v959 = vld [vmem:[%s253 + $0x5d1] sm:$0xff]
        %v960 = vld [vmem:[%s253 + $0x5d9] sm:$0x3f]
        %v961 = vld [vmem:[%s253 + $0x5e1] sm:$0xff]
        %v962 = vld [vmem:[%s253 + $0x5e9] sm:$0x3f]
        %v963 = vmax.f32 %v839, 0.0
        %v964 = vmax.f32 %v840, 0.0
        %v965 = vmax.f32 %v841, 0.0
        %v966 = vmax.f32 %v842, 0.0
        %v967 = vmax.f32 %v843, 0.0
        %v968 = vmax.f32 %v844, 0.0
        %v969 = vmax.f32 %v845, 0.0
        %v970 = vmax.f32 %v846, 0.0
        %v971 = vmax.f32 %v847, 0.0
        %v972 = vmax.f32 %v848, 0.0
        %v973 = vmax.f32 %v849, 0.0
        %v974 = vmax.f32 %v850, 0.0
        %v975 = vmax.f32 %v851, 0.0
        %v976 = vmax.f32 %v852, 0.0
        %v977 = vmax.f32 %v853, 0.0
        %v978 = vmax.f32 %v854, 0.0
        %v979 = vmax.f32 %v855, 0.0
        %v980 = vmax.f32 %v856, 0.0
        %v981 = vmax.f32 %v857, 0.0
        %v982 = vmax.f32 %v858, 0.0
        %v983 = vmax.f32 %v859, 0.0
        %v984 = vmax.f32 %v860, 0.0
        %v985 = vmax.f32 %v861, 0.0
        %v986 = vmax.f32 %v862, 0.0
        %v987 = vmax.f32 %v863, 0.0
        %v988 = vmax.f32 %v864, 0.0
        %v989 = vmax.f32 %v865, 0.0
        %v990 = vmax.f32 %v866, 0.0
        %v991 = vmax.f32 %v867, 0.0
        %v992 = vmax.f32 %v868, 0.0
        %v993 = vmax.f32 %v869, 0.0
        %v994 = vmax.f32 %v870, 0.0
        %v995 = vmax.f32 %v871, 0.0
        %v996 = vmax.f32 %v872, 0.0
        %v997 = vmax.f32 %v873, 0.0
        %v998 = vmax.f32 %v874, 0.0
        %v999 = vmax.f32 %v875, 0.0
        %v1000 = vmax.f32 %v876, 0.0
        %v1001 = vmax.f32 %v877, 0.0
        %v1002 = vmax.f32 %v878, 0.0
        %v1003 = vmax.f32 %v879, 0.0
        %v1004 = vmax.f32 %v880, 0.0
        %v1005 = vmax.f32 %v881, 0.0
        %v1006 = vmax.f32 %v882, 0.0
        %v1007 = vmax.f32 %v883, 0.0
        %v1008 = vmax.f32 %v884, 0.0
        %v1009 = vmax.f32 %v885, 0.0
        %v1010 = vmax.f32 %v886, 0.0
        %v1011 = vmax.f32 %v887, 0.0
        %v1012 = vmax.f32 %v888, 0.0
        %v1013 = vmax.f32 %v889, 0.0
        %v1014 = vmax.f32 %v890, 0.0
        %v1015 = vmax.f32 %v891, 0.0
        %v1016 = vmax.f32 %v892, 0.0
        %v1017 = vmax.f32 %v893, 0.0
        %v1018 = vmax.f32 %v894, 0.0
        %v1019 = vmax.f32 %v895, 0.0
        %v1020 = vmax.f32 %v896, 0.0
        %v1021 = vmax.f32 %v897, 0.0
        %v1022 = vmax.f32 %v898, 0.0
        %v1023 = vmax.f32 %v899, 0.0
        %v1024 = vmax.f32 %v900, 0.0
        %v1025 = vmax.f32 %v901, 0.0
        %v1026 = vmax.f32 %v902, 0.0
        %v1027 = vmax.f32 %v903, 0.0
        %v1028 = vmax.f32 %v904, 0.0
        %v1029 = vmax.f32 %v905, 0.0
        %v1030 = vmax.f32 %v906, 0.0
        %v1031 = vmax.f32 %v907, 0.0
        %v1032 = vmax.f32 %v908, 0.0
        %v1033 = vmax.f32 %v909, 0.0
        %v1034 = vmax.f32 %v910, 0.0
        %v1035 = vmax.f32 %v911, 0.0
        %v1036 = vmax.f32 %v912, 0.0
        %v1037 = vmax.f32 %v913, 0.0
        %v1038 = vmax.f32 %v914, 0.0
        %v1039 = vmax.f32 %v915, 0.0
        %v1040 = vmax.f32 %v916, 0.0
        %v1041 = vmax.f32 %v917, 0.0
        %v1042 = vmax.f32 %v918, 0.0
        %v1043 = vmax.f32 %v919, 0.0
        %v1044 = vmax.f32 %v920, 0.0
        %v1045 = vmax.f32 %v921, 0.0
        %v1046 = vmax.f32 %v922, 0.0
        %v1047 = vmax.f32 %v923, 0.0
        %v1048 = vmax.f32 %v924, 0.0
        %v1049 = vmax.f32 %v925, 0.0
        %v1050 = vmax.f32 %v926, 0.0
        %v1051 = vmax.f32 %v927, 0.0
        %v1052 = vmax.f32 %v928, 0.0
        %v1053 = vmax.f32 %v929, 0.0
        %v1054 = vmax.f32 %v930, 0.0
        %v1055 = vmax.f32 %v931, 0.0
        %v1056 = vmax.f32 %v932, 0.0
        %v1057 = vmax.f32 %v933, 0.0
        %v1058 = vmax.f32 %v934, 0.0
        %v1059 = vmax.f32 %v935, 0.0
        %v1060 = vmax.f32 %v936, 0.0
        %v1061 = vmax.f32 %v937, 0.0
        %v1062 = vmax.f32 %v938, 0.0
        %v1063 = vmax.f32 %v939, 0.0
        %v1064 = vmax.f32 %v940, 0.0
        %v1065 = vmax.f32 %v941, 0.0
        %v1066 = vmax.f32 %v942, 0.0
        %v1067 = vmax.f32 %v943, 0.0
        %v1068 = vmax.f32 %v944, 0.0
        %v1069 = vmax.f32 %v945, 0.0
        %v1070 = vmax.f32 %v946, 0.0
        %v1071 = vmax.f32 %v947, 0.0
        %v1072 = vmax.f32 %v948, 0.0
        %v1073 = vmax.f32 %v949, 0.0
        %v1074 = vmax.f32 %v950, 0.0
        %v1075 = vmax.f32 %v951, 0.0
        %v1076 = vmax.f32 %v952, 0.0
        %v1077 = vmax.f32 %v953, 0.0
        %v1078 = vmax.f32 %v954, 0.0
        %v1079 = vmax.f32 %v955, 0.0
        %v1080 = vmax.f32 %v956, 0.0
        %v1081 = vmax.f32 %v957, 0.0
        %v1082 = vmax.f32 %v958, 0.0
        %v1083 = vmax.f32 %v959, 0.0
        %v1084 = vmax.f32 %v960, 0.0
        %v1085 = vmax.f32 %v961, 0.0
        %v1086 = vmax.f32 %v962, 0.0
        %v1087 = vld [vmem:[%s590 + $0x1] sm:$0xff]
        %v1088 = vld [vmem:[%s590 + $0x9] sm:$0x3f]
        %v1089 = vld [vmem:[%s590 + $0x11] sm:$0xff]
        %v1090 = vld [vmem:[%s590 + $0x19] sm:$0x3f]
        %v1091 = vld [vmem:[%s590 + $0x21] sm:$0xff]
        %v1092 = vld [vmem:[%s590 + $0x29] sm:$0x3f]
        %v1093 = vld [vmem:[%s590 + $0x31] sm:$0xff]
        %v1094 = vld [vmem:[%s590 + $0x39] sm:$0x3f]
        %v1095 = vld [vmem:[%s590 + $0x41] sm:$0xff]
        %v1096 = vld [vmem:[%s590 + $0x49] sm:$0x3f]
        %v1097 = vld [vmem:[%s590 + $0x51] sm:$0xff]
        %v1098 = vld [vmem:[%s590 + $0x59] sm:$0x3f]
        %v1099 = vld [vmem:[%s590 + $0x61] sm:$0xff]
        %v1100 = vld [vmem:[%s590 + $0x69] sm:$0x3f]
        %v1101 = vld [vmem:[%s590 + $0x71] sm:$0xff]
        %v1102 = vld [vmem:[%s590 + $0x79] sm:$0x3f]
        %v1103 = vld [vmem:[%s590 + $0x81] sm:$0xff]
        %v1104 = vld [vmem:[%s590 + $0x89] sm:$0x3f]
        %v1105 = vld [vmem:[%s590 + $0x91] sm:$0xff]
        %v1106 = vld [vmem:[%s590 + $0x99] sm:$0x3f]
        %v1107 = vld [vmem:[%s590 + $0xa1] sm:$0xff]
        %v1108 = vld [vmem:[%s590 + $0xa9] sm:$0x3f]
        %v1109 = vld [vmem:[%s590 + $0xb1] sm:$0xff]
        %v1110 = vld [vmem:[%s590 + $0xb9] sm:$0x3f]
        %v1111 = vld [vmem:[%s590 + $0xc1] sm:$0xff]
        %v1112 = vld [vmem:[%s590 + $0xc9] sm:$0x3f]
        %v1113 = vld [vmem:[%s590 + $0xd1] sm:$0xff]
        %v1114 = vld [vmem:[%s590 + $0xd9] sm:$0x3f]
        %v1115 = vld [vmem:[%s590 + $0xe1] sm:$0xff]
        %v1116 = vld [vmem:[%s590 + $0xe9] sm:$0x3f]
        %v1117 = vld [vmem:[%s590 + $0xf1] sm:$0xff]
        %v1118 = vld [vmem:[%s590 + $0xf9] sm:$0x3f]
        %v1119 = vld [vmem:[%s590 + $0x101] sm:$0xff]
        %v1120 = vld [vmem:[%s590 + $0x109] sm:$0x3f]
        %v1121 = vld [vmem:[%s590 + $0x111] sm:$0xff]
        %v1122 = vld [vmem:[%s590 + $0x119] sm:$0x3f]
        %v1123 = vld [vmem:[%s590 + $0x121] sm:$0xff]
        %v1124 = vld [vmem:[%s590 + $0x129] sm:$0x3f]
        %v1125 = vld [vmem:[%s590 + $0x131] sm:$0xff]
        %v1126 = vld [vmem:[%s590 + $0x139] sm:$0x3f]
        %v1127 = vld [vmem:[%s590 + $0x141] sm:$0xff]
        %v1128 = vld [vmem:[%s590 + $0x149] sm:$0x3f]
        %v1129 = vld [vmem:[%s590 + $0x151] sm:$0xff]
        %v1130 = vld [vmem:[%s590 + $0x159] sm:$0x3f]
        %v1131 = vld [vmem:[%s590 + $0x161] sm:$0xff]
        %v1132 = vld [vmem:[%s590 + $0x169] sm:$0x3f]
        %v1133 = vld [vmem:[%s590 + $0x171] sm:$0xff]
        %v1134 = vld [vmem:[%s590 + $0x179] sm:$0x3f]
        %v1135 = vld [vmem:[%s590 + $0x181] sm:$0xff]
        %v1136 = vld [vmem:[%s590 + $0x189] sm:$0x3f]
        %v1137 = vld [vmem:[%s590 + $0x191] sm:$0xff]
        %v1138 = vld [vmem:[%s590 + $0x199] sm:$0x3f]
        %v1139 = vld [vmem:[%s590 + $0x1a1] sm:$0xff]
        %v1140 = vld [vmem:[%s590 + $0x1a9] sm:$0x3f]
        %v1141 = vld [vmem:[%s590 + $0x1b1] sm:$0xff]
        %v1142 = vld [vmem:[%s590 + $0x1b9] sm:$0x3f]
        %v1143 = vld [vmem:[%s590 + $0x1c1] sm:$0xff]
        %v1144 = vld [vmem:[%s590 + $0x1c9] sm:$0x3f]
        %v1145 = vld [vmem:[%s590 + $0x1d1] sm:$0xff]
        %v1146 = vld [vmem:[%s590 + $0x1d9] sm:$0x3f]
        %v1147 = vld [vmem:[%s590 + $0x1e1] sm:$0xff]
        %v1148 = vld [vmem:[%s590 + $0x1e9] sm:$0x3f]
        %v1149 = vld [vmem:[%s590 + $0x401] sm:$0xff]
        %v1150 = vld [vmem:[%s590 + $0x409] sm:$0x3f]
        %v1151 = vld [vmem:[%s590 + $0x411] sm:$0xff]
        %v1152 = vld [vmem:[%s590 + $0x419] sm:$0x3f]
        %v1153 = vld [vmem:[%s590 + $0x421] sm:$0xff]
        %v1154 = vld [vmem:[%s590 + $0x429] sm:$0x3f]
        %v1155 = vld [vmem:[%s590 + $0x431] sm:$0xff]
        %v1156 = vld [vmem:[%s590 + $0x439] sm:$0x3f]
        %v1157 = vld [vmem:[%s590 + $0x441] sm:$0xff]
        %v1158 = vld [vmem:[%s590 + $0x449] sm:$0x3f]
        %v1159 = vld [vmem:[%s590 + $0x451] sm:$0xff]
        %v1160 = vld [vmem:[%s590 + $0x459] sm:$0x3f]
        %v1161 = vld [vmem:[%s590 + $0x461] sm:$0xff]
        %v1162 = vld [vmem:[%s590 + $0x469] sm:$0x3f]
        %v1163 = vld [vmem:[%s590 + $0x471] sm:$0xff]
        %v1164 = vld [vmem:[%s590 + $0x479] sm:$0x3f]
        %v1165 = vld [vmem:[%s590 + $0x481] sm:$0xff]
        %v1166 = vld [vmem:[%s590 + $0x489] sm:$0x3f]
        %v1167 = vld [vmem:[%s590 + $0x491] sm:$0xff]
        %v1168 = vld [vmem:[%s590 + $0x499] sm:$0x3f]
        %v1169 = vld [vmem:[%s590 + $0x4a1] sm:$0xff]
        %v1170 = vld [vmem:[%s590 + $0x4a9] sm:$0x3f]
        %v1171 = vld [vmem:[%s590 + $0x4b1] sm:$0xff]
        %v1172 = vld [vmem:[%s590 + $0x4b9] sm:$0x3f]
        %v1173 = vld [vmem:[%s590 + $0x4c1] sm:$0xff]
        %v1174 = vld [vmem:[%s590 + $0x4c9] sm:$0x3f]
        %v1175 = vld [vmem:[%s590 + $0x4d1] sm:$0xff]
        %v1176 = vld [vmem:[%s590 + $0x4d9] sm:$0x3f]
        %v1177 = vld [vmem:[%s590 + $0x4e1] sm:$0xff]
        %v1178 = vld [vmem:[%s590 + $0x4e9] sm:$0x3f]
        %v1179 = vld [vmem:[%s590 + $0x4f1] sm:$0xff]
        %v1180 = vld [vmem:[%s590 + $0x4f9] sm:$0x3f]
        %v1181 = vld [vmem:[%s590 + $0x501] sm:$0xff]
        %v1182 = vld [vmem:[%s590 + $0x509] sm:$0x3f]
        %v1183 = vld [vmem:[%s590 + $0x511] sm:$0xff]
        %v1184 = vld [vmem:[%s590 + $0x519] sm:$0x3f]
        %v1185 = vld [vmem:[%s590 + $0x521] sm:$0xff]
        %v1186 = vld [vmem:[%s590 + $0x529] sm:$0x3f]
        %v1187 = vld [vmem:[%s590 + $0x531] sm:$0xff]
        %v1188 = vld [vmem:[%s590 + $0x539] sm:$0x3f]
        %v1189 = vld [vmem:[%s590 + $0x541] sm:$0xff]
        %v1190 = vld [vmem:[%s590 + $0x549] sm:$0x3f]
        %v1191 = vld [vmem:[%s590 + $0x551] sm:$0xff]
        %v1192 = vld [vmem:[%s590 + $0x559] sm:$0x3f]
        %v1193 = vld [vmem:[%s590 + $0x561] sm:$0xff]
        %v1194 = vld [vmem:[%s590 + $0x569] sm:$0x3f]
        %v1195 = vld [vmem:[%s590 + $0x571] sm:$0xff]
        %v1196 = vld [vmem:[%s590 + $0x579] sm:$0x3f]
        %v1197 = vld [vmem:[%s590 + $0x581] sm:$0xff]
        %v1198 = vld [vmem:[%s590 + $0x589] sm:$0x3f]
        %v1199 = vld [vmem:[%s590 + $0x591] sm:$0xff]
        %v1200 = vld [vmem:[%s590 + $0x599] sm:$0x3f]
        %v1201 = vld [vmem:[%s590 + $0x5a1] sm:$0xff]
        %v1202 = vld [vmem:[%s590 + $0x5a9] sm:$0x3f]
        %v1203 = vld [vmem:[%s590 + $0x5b1] sm:$0xff]
        %v1204 = vld [vmem:[%s590 + $0x5b9] sm:$0x3f]
        %v1205 = vld [vmem:[%s590 + $0x5c1] sm:$0xff]
        %v1206 = vld [vmem:[%s590 + $0x5c9] sm:$0x3f]
        %v1207 = vld [vmem:[%s590 + $0x5d1] sm:$0xff]
        %v1208 = vld [vmem:[%s590 + $0x5d9] sm:$0x3f]
        %v1209 = vld [vmem:[%s590 + $0x5e1] sm:$0xff]
        %v1210 = vld [vmem:[%s590 + $0x5e9] sm:$0x3f]
        %v1211 = vmax.f32 %v1087, 0.0
        %v1212 = vmax.f32 %v1088, 0.0
        %v1213 = vmax.f32 %v1089, 0.0
        %v1214 = vmax.f32 %v1090, 0.0
        %v1215 = vmax.f32 %v1091, 0.0
        %v1216 = vmax.f32 %v1092, 0.0
        %v1217 = vmax.f32 %v1093, 0.0
        %v1218 = vmax.f32 %v1094, 0.0
        %v1219 = vmax.f32 %v1095, 0.0
        %v1220 = vmax.f32 %v1096, 0.0
        %v1221 = vmax.f32 %v1097, 0.0
        %v1222 = vmax.f32 %v1098, 0.0
        %v1223 = vmax.f32 %v1099, 0.0
        %v1224 = vmax.f32 %v1100, 0.0
        %v1225 = vmax.f32 %v1101, 0.0
        %v1226 = vmax.f32 %v1102, 0.0
        %v1227 = vmax.f32 %v1103, 0.0
        %v1228 = vmax.f32 %v1104, 0.0
        %v1229 = vmax.f32 %v1105, 0.0
        %v1230 = vmax.f32 %v1106, 0.0
        %v1231 = vmax.f32 %v1107, 0.0
        %v1232 = vmax.f32 %v1108, 0.0
        %v1233 = vmax.f32 %v1109, 0.0
        %v1234 = vmax.f32 %v1110, 0.0
        %v1235 = vmax.f32 %v1111, 0.0
        %v1236 = vmax.f32 %v1112, 0.0
        %v1237 = vmax.f32 %v1113, 0.0
        %v1238 = vmax.f32 %v1114, 0.0
        %v1239 = vmax.f32 %v1115, 0.0
        %v1240 = vmax.f32 %v1116, 0.0
        %v1241 = vmax.f32 %v1117, 0.0
        %v1242 = vmax.f32 %v1118, 0.0
        %v1243 = vmax.f32 %v1119, 0.0
        %v1244 = vmax.f32 %v1120, 0.0
        %v1245 = vmax.f32 %v1121, 0.0
        %v1246 = vmax.f32 %v1122, 0.0
        %v1247 = vmax.f32 %v1123, 0.0
        %v1248 = vmax.f32 %v1124, 0.0
        %v1249 = vmax.f32 %v1125, 0.0
        %v1250 = vmax.f32 %v1126, 0.0
        %v1251 = vmax.f32 %v1127, 0.0
        %v1252 = vmax.f32 %v1128, 0.0
        %v1253 = vmax.f32 %v1129, 0.0
        %v1254 = vmax.f32 %v1130, 0.0
        %v1255 = vmax.f32 %v1131, 0.0
        %v1256 = vmax.f32 %v1132, 0.0
        %v1257 = vmax.f32 %v1133, 0.0
        %v1258 = vmax.f32 %v1134, 0.0
        %v1259 = vmax.f32 %v1135, 0.0
        %v1260 = vmax.f32 %v1136, 0.0
        %v1261 = vmax.f32 %v1137, 0.0
        %v1262 = vmax.f32 %v1138, 0.0
        %v1263 = vmax.f32 %v1139, 0.0
        %v1264 = vmax.f32 %v1140, 0.0
        %v1265 = vmax.f32 %v1141, 0.0
        %v1266 = vmax.f32 %v1142, 0.0
        %v1267 = vmax.f32 %v1143, 0.0
        %v1268 = vmax.f32 %v1144, 0.0
        %v1269 = vmax.f32 %v1145, 0.0
        %v1270 = vmax.f32 %v1146, 0.0
        %v1271 = vmax.f32 %v1147, 0.0
        %v1272 = vmax.f32 %v1148, 0.0
        %v1273 = vmax.f32 %v1149, 0.0
        %v1274 = vmax.f32 %v1150, 0.0
        %v1275 = vmax.f32 %v1151, 0.0
        %v1276 = vmax.f32 %v1152, 0.0
        %v1277 = vmax.f32 %v1153, 0.0
        %v1278 = vmax.f32 %v1154, 0.0
        %v1279 = vmax.f32 %v1155, 0.0
        %v1280 = vmax.f32 %v1156, 0.0
        %v1281 = vmax.f32 %v1157, 0.0
        %v1282 = vmax.f32 %v1158, 0.0
        %v1283 = vmax.f32 %v1159, 0.0
        %v1284 = vmax.f32 %v1160, 0.0
        %v1285 = vmax.f32 %v1161, 0.0
        %v1286 = vmax.f32 %v1162, 0.0
        %v1287 = vmax.f32 %v1163, 0.0
        %v1288 = vmax.f32 %v1164, 0.0
        %v1289 = vmax.f32 %v1165, 0.0
        %v1290 = vmax.f32 %v1166, 0.0
        %v1291 = vmax.f32 %v1167, 0.0
        %v1292 = vmax.f32 %v1168, 0.0
        %v1293 = vmax.f32 %v1169, 0.0
        %v1294 = vmax.f32 %v1170, 0.0
        %v1295 = vmax.f32 %v1171, 0.0
        %v1296 = vmax.f32 %v1172, 0.0
        %v1297 = vmax.f32 %v1173, 0.0
        %v1298 = vmax.f32 %v1174, 0.0
        %v1299 = vmax.f32 %v1175, 0.0
        %v1300 = vmax.f32 %v1176, 0.0
        %v1301 = vmax.f32 %v1177, 0.0
        %v1302 = vmax.f32 %v1178, 0.0
        %v1303 = vmax.f32 %v1179, 0.0
        %v1304 = vmax.f32 %v1180, 0.0
        %v1305 = vmax.f32 %v1181, 0.0
        %v1306 = vmax.f32 %v1182, 0.0
        %v1307 = vmax.f32 %v1183, 0.0
        %v1308 = vmax.f32 %v1184, 0.0
        %v1309 = vmax.f32 %v1185, 0.0
        %v1310 = vmax.f32 %v1186, 0.0
        %v1311 = vmax.f32 %v1187, 0.0
        %v1312 = vmax.f32 %v1188, 0.0
        %v1313 = vmax.f32 %v1189, 0.0
        %v1314 = vmax.f32 %v1190, 0.0
        %v1315 = vmax.f32 %v1191, 0.0
        %v1316 = vmax.f32 %v1192, 0.0
        %v1317 = vmax.f32 %v1193, 0.0
        %v1318 = vmax.f32 %v1194, 0.0
        %v1319 = vmax.f32 %v1195, 0.0
        %v1320 = vmax.f32 %v1196, 0.0
        %v1321 = vmax.f32 %v1197, 0.0
        %v1322 = vmax.f32 %v1198, 0.0
        %v1323 = vmax.f32 %v1199, 0.0
        %v1324 = vmax.f32 %v1200, 0.0
        %v1325 = vmax.f32 %v1201, 0.0
        %v1326 = vmax.f32 %v1202, 0.0
        %v1327 = vmax.f32 %v1203, 0.0
        %v1328 = vmax.f32 %v1204, 0.0
        %v1329 = vmax.f32 %v1205, 0.0
        %v1330 = vmax.f32 %v1206, 0.0
        %v1331 = vmax.f32 %v1207, 0.0
        %v1332 = vmax.f32 %v1208, 0.0
        %v1333 = vmax.f32 %v1209, 0.0
        %v1334 = vmax.f32 %v1210, 0.0
        %v1335 = vld [vmem:[%s253 + $0x2] sm:$0xff]
        %v1336 = vld [vmem:[%s253 + $0xa] sm:$0x3f]
        %v1337 = vld [vmem:[%s253 + $0x12] sm:$0xff]
        %v1338 = vld [vmem:[%s253 + $0x1a] sm:$0x3f]
        %v1339 = vld [vmem:[%s253 + $0x22] sm:$0xff]
        %v1340 = vld [vmem:[%s253 + $0x2a] sm:$0x3f]
        %v1341 = vld [vmem:[%s253 + $0x32] sm:$0xff]
        %v1342 = vld [vmem:[%s253 + $0x3a] sm:$0x3f]
        %v1343 = vld [vmem:[%s253 + $0x42] sm:$0xff]
        %v1344 = vld [vmem:[%s253 + $0x4a] sm:$0x3f]
        %v1345 = vld [vmem:[%s253 + $0x52] sm:$0xff]
        %v1346 = vld [vmem:[%s253 + $0x5a] sm:$0x3f]
        %v1347 = vld [vmem:[%s253 + $0x62] sm:$0xff]
        %v1348 = vld [vmem:[%s253 + $0x6a] sm:$0x3f]
        %v1349 = vld [vmem:[%s253 + $0x72] sm:$0xff]
        %v1350 = vld [vmem:[%s253 + $0x7a] sm:$0x3f]
        %v1351 = vld [vmem:[%s253 + $0x82] sm:$0xff]
        %v1352 = vld [vmem:[%s253 + $0x8a] sm:$0x3f]
        %v1353 = vld [vmem:[%s253 + $0x92] sm:$0xff]
        %v1354 = vld [vmem:[%s253 + $0x9a] sm:$0x3f]
        %v1355 = vld [vmem:[%s253 + $0xa2] sm:$0xff]
        %v1356 = vld [vmem:[%s253 + $0xaa] sm:$0x3f]
        %v1357 = vld [vmem:[%s253 + $0xb2] sm:$0xff]
        %v1358 = vld [vmem:[%s253 + $0xba] sm:$0x3f]
        %v1359 = vld [vmem:[%s253 + $0xc2] sm:$0xff]
        %v1360 = vld [vmem:[%s253 + $0xca] sm:$0x3f]
        %v1361 = vld [vmem:[%s253 + $0xd2] sm:$0xff]
        %v1362 = vld [vmem:[%s253 + $0xda] sm:$0x3f]
        %v1363 = vld [vmem:[%s253 + $0xe2] sm:$0xff]
        %v1364 = vld [vmem:[%s253 + $0xea] sm:$0x3f]
        %v1365 = vld [vmem:[%s253 + $0xf2] sm:$0xff]
        %v1366 = vld [vmem:[%s253 + $0xfa] sm:$0x3f]
        %v1367 = vld [vmem:[%s253 + $0x102] sm:$0xff]
        %v1368 = vld [vmem:[%s253 + $0x10a] sm:$0x3f]
        %v1369 = vld [vmem:[%s253 + $0x112] sm:$0xff]
        %v1370 = vld [vmem:[%s253 + $0x11a] sm:$0x3f]
        %v1371 = vld [vmem:[%s253 + $0x122] sm:$0xff]
        %v1372 = vld [vmem:[%s253 + $0x12a] sm:$0x3f]
        %v1373 = vld [vmem:[%s253 + $0x132] sm:$0xff]
        %v1374 = vld [vmem:[%s253 + $0x13a] sm:$0x3f]
        %v1375 = vld [vmem:[%s253 + $0x142] sm:$0xff]
        %v1376 = vld [vmem:[%s253 + $0x14a] sm:$0x3f]
        %v1377 = vld [vmem:[%s253 + $0x152] sm:$0xff]
        %v1378 = vld [vmem:[%s253 + $0x15a] sm:$0x3f]
        %v1379 = vld [vmem:[%s253 + $0x162] sm:$0xff]
        %v1380 = vld [vmem:[%s253 + $0x16a] sm:$0x3f]
        %v1381 = vld [vmem:[%s253 + $0x172] sm:$0xff]
        %v1382 = vld [vmem:[%s253 + $0x17a] sm:$0x3f]
        %v1383 = vld [vmem:[%s253 + $0x182] sm:$0xff]
        %v1384 = vld [vmem:[%s253 + $0x18a] sm:$0x3f]
        %v1385 = vld [vmem:[%s253 + $0x192] sm:$0xff]
        %v1386 = vld [vmem:[%s253 + $0x19a] sm:$0x3f]
        %v1387 = vld [vmem:[%s253 + $0x1a2] sm:$0xff]
        %v1388 = vld [vmem:[%s253 + $0x1aa] sm:$0x3f]
        %v1389 = vld [vmem:[%s253 + $0x1b2] sm:$0xff]
        %v1390 = vld [vmem:[%s253 + $0x1ba] sm:$0x3f]
        %v1391 = vld [vmem:[%s253 + $0x1c2] sm:$0xff]
        %v1392 = vld [vmem:[%s253 + $0x1ca] sm:$0x3f]
        %v1393 = vld [vmem:[%s253 + $0x1d2] sm:$0xff]
        %v1394 = vld [vmem:[%s253 + $0x1da] sm:$0x3f]
        %v1395 = vld [vmem:[%s253 + $0x1e2] sm:$0xff]
        %v1396 = vld [vmem:[%s253 + $0x1ea] sm:$0x3f]
        %v1397 = vld [vmem:[%s253 + $0x402] sm:$0xff]
        %v1398 = vld [vmem:[%s253 + $0x40a] sm:$0x3f]
        %v1399 = vld [vmem:[%s253 + $0x412] sm:$0xff]
        %v1400 = vld [vmem:[%s253 + $0x41a] sm:$0x3f]
        %v1401 = vld [vmem:[%s253 + $0x422] sm:$0xff]
        %v1402 = vld [vmem:[%s253 + $0x42a] sm:$0x3f]
        %v1403 = vld [vmem:[%s253 + $0x432] sm:$0xff]
        %v1404 = vld [vmem:[%s253 + $0x43a] sm:$0x3f]
        %v1405 = vld [vmem:[%s253 + $0x442] sm:$0xff]
        %v1406 = vld [vmem:[%s253 + $0x44a] sm:$0x3f]
        %v1407 = vld [vmem:[%s253 + $0x452] sm:$0xff]
        %v1408 = vld [vmem:[%s253 + $0x45a] sm:$0x3f]
        %v1409 = vld [vmem:[%s253 + $0x462] sm:$0xff]
        %v1410 = vld [vmem:[%s253 + $0x46a] sm:$0x3f]
        %v1411 = vld [vmem:[%s253 + $0x472] sm:$0xff]
        %v1412 = vld [vmem:[%s253 + $0x47a] sm:$0x3f]
        %v1413 = vld [vmem:[%s253 + $0x482] sm:$0xff]
        %v1414 = vld [vmem:[%s253 + $0x48a] sm:$0x3f]
        %v1415 = vld [vmem:[%s253 + $0x492] sm:$0xff]
        %v1416 = vld [vmem:[%s253 + $0x49a] sm:$0x3f]
        %v1417 = vld [vmem:[%s253 + $0x4a2] sm:$0xff]
        %v1418 = vld [vmem:[%s253 + $0x4aa] sm:$0x3f]
        %v1419 = vld [vmem:[%s253 + $0x4b2] sm:$0xff]
        %v1420 = vld [vmem:[%s253 + $0x4ba] sm:$0x3f]
        %v1421 = vld [vmem:[%s253 + $0x4c2] sm:$0xff]
        %v1422 = vld [vmem:[%s253 + $0x4ca] sm:$0x3f]
        %v1423 = vld [vmem:[%s253 + $0x4d2] sm:$0xff]
        %v1424 = vld [vmem:[%s253 + $0x4da] sm:$0x3f]
        %v1425 = vld [vmem:[%s253 + $0x4e2] sm:$0xff]
        %v1426 = vld [vmem:[%s253 + $0x4ea] sm:$0x3f]
        %v1427 = vld [vmem:[%s253 + $0x4f2] sm:$0xff]
        %v1428 = vld [vmem:[%s253 + $0x4fa] sm:$0x3f]
        %v1429 = vld [vmem:[%s253 + $0x502] sm:$0xff]
        %v1430 = vld [vmem:[%s253 + $0x50a] sm:$0x3f]
        %v1431 = vld [vmem:[%s253 + $0x512] sm:$0xff]
        %v1432 = vld [vmem:[%s253 + $0x51a] sm:$0x3f]
        %v1433 = vld [vmem:[%s253 + $0x522] sm:$0xff]
        %v1434 = vld [vmem:[%s253 + $0x52a] sm:$0x3f]
        %v1435 = vld [vmem:[%s253 + $0x532] sm:$0xff]
        %v1436 = vld [vmem:[%s253 + $0x53a] sm:$0x3f]
        %v1437 = vld [vmem:[%s253 + $0x542] sm:$0xff]
        %v1438 = vld [vmem:[%s253 + $0x54a] sm:$0x3f]
        %v1439 = vld [vmem:[%s253 + $0x552] sm:$0xff]
        %v1440 = vld [vmem:[%s253 + $0x55a] sm:$0x3f]
        %v1441 = vld [vmem:[%s253 + $0x562] sm:$0xff]
        %v1442 = vld [vmem:[%s253 + $0x56a] sm:$0x3f]
        %v1443 = vld [vmem:[%s253 + $0x572] sm:$0xff]
        %v1444 = vld [vmem:[%s253 + $0x57a] sm:$0x3f]
        %v1445 = vld [vmem:[%s253 + $0x582] sm:$0xff]
        %v1446 = vld [vmem:[%s253 + $0x58a] sm:$0x3f]
        %v1447 = vld [vmem:[%s253 + $0x592] sm:$0xff]
        %v1448 = vld [vmem:[%s253 + $0x59a] sm:$0x3f]
        %v1449 = vld [vmem:[%s253 + $0x5a2] sm:$0xff]
        %v1450 = vld [vmem:[%s253 + $0x5aa] sm:$0x3f]
        %v1451 = vld [vmem:[%s253 + $0x5b2] sm:$0xff]
        %v1452 = vld [vmem:[%s253 + $0x5ba] sm:$0x3f]
        %v1453 = vld [vmem:[%s253 + $0x5c2] sm:$0xff]
        %v1454 = vld [vmem:[%s253 + $0x5ca] sm:$0x3f]
        %v1455 = vld [vmem:[%s253 + $0x5d2] sm:$0xff]
        %v1456 = vld [vmem:[%s253 + $0x5da] sm:$0x3f]
        %v1457 = vld [vmem:[%s253 + $0x5e2] sm:$0xff]
        %v1458 = vld [vmem:[%s253 + $0x5ea] sm:$0x3f]
        %v1459 = vmax.f32 %v1335, 0.0
        %v1460 = vmax.f32 %v1336, 0.0
        %v1461 = vmax.f32 %v1337, 0.0
        %v1462 = vmax.f32 %v1338, 0.0
        %v1463 = vmax.f32 %v1339, 0.0
        %v1464 = vmax.f32 %v1340, 0.0
        %v1465 = vmax.f32 %v1341, 0.0
        %v1466 = vmax.f32 %v1342, 0.0
        %v1467 = vmax.f32 %v1343, 0.0
        %v1468 = vmax.f32 %v1344, 0.0
        %v1469 = vmax.f32 %v1345, 0.0
        %v1470 = vmax.f32 %v1346, 0.0
        %v1471 = vmax.f32 %v1347, 0.0
        %v1472 = vmax.f32 %v1348, 0.0
        %v1473 = vmax.f32 %v1349, 0.0
        %v1474 = vmax.f32 %v1350, 0.0
        %v1475 = vmax.f32 %v1351, 0.0
        %v1476 = vmax.f32 %v1352, 0.0
        %v1477 = vmax.f32 %v1353, 0.0
        %v1478 = vmax.f32 %v1354, 0.0
        %v1479 = vmax.f32 %v1355, 0.0
        %v1480 = vmax.f32 %v1356, 0.0
        %v1481 = vmax.f32 %v1357, 0.0
        %v1482 = vmax.f32 %v1358, 0.0
        %v1483 = vmax.f32 %v1359, 0.0
        %v1484 = vmax.f32 %v1360, 0.0
        %v1485 = vmax.f32 %v1361, 0.0
        %v1486 = vmax.f32 %v1362, 0.0
        %v1487 = vmax.f32 %v1363, 0.0
        %v1488 = vmax.f32 %v1364, 0.0
        %v1489 = vmax.f32 %v1365, 0.0
        %v1490 = vmax.f32 %v1366, 0.0
        %v1491 = vmax.f32 %v1367, 0.0
        %v1492 = vmax.f32 %v1368, 0.0
        %v1493 = vmax.f32 %v1369, 0.0
        %v1494 = vmax.f32 %v1370, 0.0
        %v1495 = vmax.f32 %v1371, 0.0
        %v1496 = vmax.f32 %v1372, 0.0
        %v1497 = vmax.f32 %v1373, 0.0
        %v1498 = vmax.f32 %v1374, 0.0
        %v1499 = vmax.f32 %v1375, 0.0
        %v1500 = vmax.f32 %v1376, 0.0
        %v1501 = vmax.f32 %v1377, 0.0
        %v1502 = vmax.f32 %v1378, 0.0
        %v1503 = vmax.f32 %v1379, 0.0
        %v1504 = vmax.f32 %v1380, 0.0
        %v1505 = vmax.f32 %v1381, 0.0
        %v1506 = vmax.f32 %v1382, 0.0
        %v1507 = vmax.f32 %v1383, 0.0
        %v1508 = vmax.f32 %v1384, 0.0
        %v1509 = vmax.f32 %v1385, 0.0
        %v1510 = vmax.f32 %v1386, 0.0
        %v1511 = vmax.f32 %v1387, 0.0
        %v1512 = vmax.f32 %v1388, 0.0
        %v1513 = vmax.f32 %v1389, 0.0
        %v1514 = vmax.f32 %v1390, 0.0
        %v1515 = vmax.f32 %v1391, 0.0
        %v1516 = vmax.f32 %v1392, 0.0
        %v1517 = vmax.f32 %v1393, 0.0
        %v1518 = vmax.f32 %v1394, 0.0
        %v1519 = vmax.f32 %v1395, 0.0
        %v1520 = vmax.f32 %v1396, 0.0
        %v1521 = vmax.f32 %v1397, 0.0
        %v1522 = vmax.f32 %v1398, 0.0
        %v1523 = vmax.f32 %v1399, 0.0
        %v1524 = vmax.f32 %v1400, 0.0
        %v1525 = vmax.f32 %v1401, 0.0
        %v1526 = vmax.f32 %v1402, 0.0
        %v1527 = vmax.f32 %v1403, 0.0
        %v1528 = vmax.f32 %v1404, 0.0
        %v1529 = vmax.f32 %v1405, 0.0
        %v1530 = vmax.f32 %v1406, 0.0
        %v1531 = vmax.f32 %v1407, 0.0
        %v1532 = vmax.f32 %v1408, 0.0
        %v1533 = vmax.f32 %v1409, 0.0
        %v1534 = vmax.f32 %v1410, 0.0
        %v1535 = vmax.f32 %v1411, 0.0
        %v1536 = vmax.f32 %v1412, 0.0
        %v1537 = vmax.f32 %v1413, 0.0
        %v1538 = vmax.f32 %v1414, 0.0
        %v1539 = vmax.f32 %v1415, 0.0
        %v1540 = vmax.f32 %v1416, 0.0
        %v1541 = vmax.f32 %v1417, 0.0
        %v1542 = vmax.f32 %v1418, 0.0
        %v1543 = vmax.f32 %v1419, 0.0
        %v1544 = vmax.f32 %v1420, 0.0
        %v1545 = vmax.f32 %v1421, 0.0
        %v1546 = vmax.f32 %v1422, 0.0
        %v1547 = vmax.f32 %v1423, 0.0
        %v1548 = vmax.f32 %v1424, 0.0
        %v1549 = vmax.f32 %v1425, 0.0
        %v1550 = vmax.f32 %v1426, 0.0
        %v1551 = vmax.f32 %v1427, 0.0
        %v1552 = vmax.f32 %v1428, 0.0
        %v1553 = vmax.f32 %v1429, 0.0
        %v1554 = vmax.f32 %v1430, 0.0
        %v1555 = vmax.f32 %v1431, 0.0
        %v1556 = vmax.f32 %v1432, 0.0
        %v1557 = vmax.f32 %v1433, 0.0
        %v1558 = vmax.f32 %v1434, 0.0
        %v1559 = vmax.f32 %v1435, 0.0
        %v1560 = vmax.f32 %v1436, 0.0
        %v1561 = vmax.f32 %v1437, 0.0
        %v1562 = vmax.f32 %v1438, 0.0
        %v1563 = vmax.f32 %v1439, 0.0
        %v1564 = vmax.f32 %v1440, 0.0
        %v1565 = vmax.f32 %v1441, 0.0
        %v1566 = vmax.f32 %v1442, 0.0
        %v1567 = vmax.f32 %v1443, 0.0
        %v1568 = vmax.f32 %v1444, 0.0
        %v1569 = vmax.f32 %v1445, 0.0
        %v1570 = vmax.f32 %v1446, 0.0
        %v1571 = vmax.f32 %v1447, 0.0
        %v1572 = vmax.f32 %v1448, 0.0
        %v1573 = vmax.f32 %v1449, 0.0
        %v1574 = vmax.f32 %v1450, 0.0
        %v1575 = vmax.f32 %v1451, 0.0
        %v1576 = vmax.f32 %v1452, 0.0
        %v1577 = vmax.f32 %v1453, 0.0
        %v1578 = vmax.f32 %v1454, 0.0
        %v1579 = vmax.f32 %v1455, 0.0
        %v1580 = vmax.f32 %v1456, 0.0
        %v1581 = vmax.f32 %v1457, 0.0
        %v1582 = vmax.f32 %v1458, 0.0
        %v1584 = vlaneseq
        %v1585 = vshrl.u32 %v1584, 7
        %v1586 = vsub.s32 0, %v1585
        %v1587 = vrot.slane %v315, %v1586
        %v1589 = vmul.f32 %v466, %v1587
        %v1590 = vmul.f32 %v467, %v1587
        %v1591 = vmul.f32 %v468, %v1587
        %v1592 = vmul.f32 %v469, %v1587
        %v1593 = vmul.f32 %v470, %v1587
        %v1594 = vmul.f32 %v471, %v1587
        %v1595 = vmul.f32 %v472, %v1587
        %v1596 = vmul.f32 %v473, %v1587
        %v1597 = vmul.f32 %v474, %v1587
        %v1598 = vmul.f32 %v475, %v1587
        %v1599 = vmul.f32 %v476, %v1587
        %v1600 = vmul.f32 %v477, %v1587
        %v1601 = vmul.f32 %v478, %v1587
        %v1602 = vmul.f32 %v479, %v1587
        %v1603 = vmul.f32 %v480, %v1587
        %v1604 = vmul.f32 %v481, %v1587
        %v1605 = vmul.f32 %v482, %v1587
        %v1606 = vmul.f32 %v483, %v1587
        %v1607 = vmul.f32 %v484, %v1587
        %v1608 = vmul.f32 %v485, %v1587
        %v1609 = vmul.f32 %v486, %v1587
        %v1610 = vmul.f32 %v487, %v1587
        %v1611 = vmul.f32 %v488, %v1587
        %v1612 = vmul.f32 %v489, %v1587
        %v1613 = vmul.f32 %v490, %v1587
        %v1614 = vmul.f32 %v491, %v1587
        %v1615 = vmul.f32 %v492, %v1587
        %v1616 = vmul.f32 %v493, %v1587
        %v1617 = vmul.f32 %v528, %v1587
        %v1618 = vmul.f32 %v529, %v1587
        %v1619 = vmul.f32 %v530, %v1587
        %v1620 = vmul.f32 %v531, %v1587
        %v1621 = vmul.f32 %v532, %v1587
        %v1622 = vmul.f32 %v533, %v1587
        %v1623 = vmul.f32 %v534, %v1587
        %v1624 = vmul.f32 %v535, %v1587
        %v1625 = vmul.f32 %v536, %v1587
        %v1626 = vmul.f32 %v537, %v1587
        %v1627 = vmul.f32 %v538, %v1587
        %v1628 = vmul.f32 %v539, %v1587
        %v1629 = vmul.f32 %v540, %v1587
        %v1630 = vmul.f32 %v541, %v1587
        %v1631 = vmul.f32 %v542, %v1587
        %v1632 = vmul.f32 %v543, %v1587
        %v1633 = vmul.f32 %v544, %v1587
        %v1634 = vmul.f32 %v545, %v1587
        %v1635 = vmul.f32 %v546, %v1587
        %v1636 = vmul.f32 %v547, %v1587
        %v1637 = vmul.f32 %v548, %v1587
        %v1638 = vmul.f32 %v549, %v1587
        %v1639 = vmul.f32 %v550, %v1587
        %v1640 = vmul.f32 %v551, %v1587
        %v1641 = vmul.f32 %v552, %v1587
        %v1642 = vmul.f32 %v553, %v1587
        %v1643 = vmul.f32 %v554, %v1587
        %v1644 = vmul.f32 %v555, %v1587
        %v1645 = vadd.f32 %v1589, 0.0
        %v1646 = vadd.f32 %v1590, 0.0
        %v1647 = vadd.f32 %v1591, 0.0
        %v1648 = vadd.f32 %v1592, 0.0
        %v1649 = vadd.f32 %v1593, 0.0
        %v1650 = vadd.f32 %v1594, 0.0
        %v1651 = vadd.f32 %v1595, 0.0
        %v1652 = vadd.f32 %v1596, 0.0
        %v1653 = vadd.f32 %v1597, 0.0
        %v1654 = vadd.f32 %v1598, 0.0
        %v1655 = vadd.f32 %v1599, 0.0
        %v1656 = vadd.f32 %v1600, 0.0
        %v1657 = vadd.f32 %v1601, 0.0
        %v1658 = vadd.f32 %v1602, 0.0
        %v1659 = vadd.f32 %v1603, 0.0
        %v1660 = vadd.f32 %v1604, 0.0
        %v1661 = vadd.f32 %v1605, 0.0
        %v1662 = vadd.f32 %v1606, 0.0
        %v1663 = vadd.f32 %v1607, 0.0
        %v1664 = vadd.f32 %v1608, 0.0
        %v1665 = vadd.f32 %v1609, 0.0
        %v1666 = vadd.f32 %v1610, 0.0
        %v1667 = vadd.f32 %v1611, 0.0
        %v1668 = vadd.f32 %v1612, 0.0
        %v1669 = vadd.f32 %v1613, 0.0
        %v1670 = vadd.f32 %v1614, 0.0
        %v1671 = vadd.f32 %v1615, 0.0
        %v1672 = vadd.f32 %v1616, 0.0
        %v1673 = vadd.f32 %v1617, 0.0
        %v1674 = vadd.f32 %v1618, 0.0
        %v1675 = vadd.f32 %v1619, 0.0
        %v1676 = vadd.f32 %v1620, 0.0
        %v1677 = vadd.f32 %v1621, 0.0
        %v1678 = vadd.f32 %v1622, 0.0
        %v1679 = vadd.f32 %v1623, 0.0
        %v1680 = vadd.f32 %v1624, 0.0
        %v1681 = vadd.f32 %v1625, 0.0
        %v1682 = vadd.f32 %v1626, 0.0
        %v1683 = vadd.f32 %v1627, 0.0
        %v1684 = vadd.f32 %v1628, 0.0
        %v1685 = vadd.f32 %v1629, 0.0
        %v1686 = vadd.f32 %v1630, 0.0
        %v1687 = vadd.f32 %v1631, 0.0
        %v1688 = vadd.f32 %v1632, 0.0
        %v1689 = vadd.f32 %v1633, 0.0
        %v1690 = vadd.f32 %v1634, 0.0
        %v1691 = vadd.f32 %v1635, 0.0
        %v1692 = vadd.f32 %v1636, 0.0
        %v1693 = vadd.f32 %v1637, 0.0
        %v1694 = vadd.f32 %v1638, 0.0
        %v1695 = vadd.f32 %v1639, 0.0
        %v1696 = vadd.f32 %v1640, 0.0
        %v1697 = vadd.f32 %v1641, 0.0
        %v1698 = vadd.f32 %v1642, 0.0
        %v1699 = vadd.f32 %v1643, 0.0
        %v1700 = vadd.f32 %v1644, 0.0
        %v1702 = vlaneseq
        %v1703 = vshrl.u32 %v1702, 7
        %v1704 = vsub.s32 0, %v1703
        %v1705 = vrot.slane %v316, %v1704
        %v1707 = vmul.f32 %v715, %v1705
        %v1708 = vmul.f32 %v716, %v1705
        %v1709 = vmul.f32 %v717, %v1705
        %v1710 = vmul.f32 %v718, %v1705
        %v1711 = vmul.f32 %v719, %v1705
        %v1712 = vmul.f32 %v720, %v1705
        %v1713 = vmul.f32 %v721, %v1705
        %v1714 = vmul.f32 %v722, %v1705
        %v1715 = vmul.f32 %v723, %v1705
        %v1716 = vmul.f32 %v724, %v1705
        %v1717 = vmul.f32 %v725, %v1705
        %v1718 = vmul.f32 %v726, %v1705
        %v1719 = vmul.f32 %v727, %v1705
        %v1720 = vmul.f32 %v728, %v1705
        %v1721 = vmul.f32 %v729, %v1705
        %v1722 = vmul.f32 %v730, %v1705
        %v1723 = vmul.f32 %v731, %v1705
        %v1724 = vmul.f32 %v732, %v1705
        %v1725 = vmul.f32 %v733, %v1705
        %v1726 = vmul.f32 %v734, %v1705
        %v1727 = vmul.f32 %v735, %v1705
        %v1728 = vmul.f32 %v736, %v1705
        %v1729 = vmul.f32 %v737, %v1705
        %v1730 = vmul.f32 %v738, %v1705
        %v1731 = vmul.f32 %v739, %v1705
        %v1732 = vmul.f32 %v740, %v1705
        %v1733 = vmul.f32 %v741, %v1705
        %v1734 = vmul.f32 %v742, %v1705
        %v1735 = vmul.f32 %v777, %v1705
        %v1736 = vmul.f32 %v778, %v1705
        %v1737 = vmul.f32 %v779, %v1705
        %v1738 = vmul.f32 %v780, %v1705
        %v1739 = vmul.f32 %v781, %v1705
        %v1740 = vmul.f32 %v782, %v1705
        %v1741 = vmul.f32 %v783, %v1705
        %v1742 = vmul.f32 %v784, %v1705
        %v1743 = vmul.f32 %v785, %v1705
        %v1744 = vmul.f32 %v786, %v1705
        %v1745 = vmul.f32 %v787, %v1705
        %v1746 = vmul.f32 %v788, %v1705
        %v1747 = vmul.f32 %v789, %v1705
        %v1748 = vmul.f32 %v790, %v1705
        %v1749 = vmul.f32 %v791, %v1705
        %v1750 = vmul.f32 %v792, %v1705
        %v1751 = vmul.f32 %v793, %v1705
        %v1752 = vmul.f32 %v794, %v1705
        %v1753 = vmul.f32 %v795, %v1705
        %v1754 = vmul.f32 %v796, %v1705
        %v1755 = vmul.f32 %v797, %v1705
        %v1756 = vmul.f32 %v798, %v1705
        %v1757 = vmul.f32 %v799, %v1705
        %v1758 = vmul.f32 %v800, %v1705
        %v1759 = vmul.f32 %v801, %v1705
        %v1760 = vmul.f32 %v802, %v1705
        %v1761 = vmul.f32 %v803, %v1705
        %v1762 = vmul.f32 %v804, %v1705
        %v1763 = vadd.f32 %v1645, %v1707
        %v1764 = vadd.f32 %v1646, %v1708
        %v1765 = vadd.f32 %v1647, %v1709
        %v1766 = vadd.f32 %v1648, %v1710
        %v1767 = vadd.f32 %v1649, %v1711
        %v1768 = vadd.f32 %v1650, %v1712
        %v1769 = vadd.f32 %v1651, %v1713
        %v1770 = vadd.f32 %v1652, %v1714
        %v1771 = vadd.f32 %v1653, %v1715
        %v1772 = vadd.f32 %v1654, %v1716
        %v1773 = vadd.f32 %v1655, %v1717
        %v1774 = vadd.f32 %v1656, %v1718
        %v1775 = vadd.f32 %v1657, %v1719
        %v1776 = vadd.f32 %v1658, %v1720
        %v1777 = vadd.f32 %v1659, %v1721
        %v1778 = vadd.f32 %v1660, %v1722
        %v1779 = vadd.f32 %v1661, %v1723
        %v1780 = vadd.f32 %v1662, %v1724
        %v1781 = vadd.f32 %v1663, %v1725
        %v1782 = vadd.f32 %v1664, %v1726
        %v1783 = vadd.f32 %v1665, %v1727
        %v1784 = vadd.f32 %v1666, %v1728
        %v1785 = vadd.f32 %v1667, %v1729
        %v1786 = vadd.f32 %v1668, %v1730
        %v1787 = vadd.f32 %v1669, %v1731
        %v1788 = vadd.f32 %v1670, %v1732
        %v1789 = vadd.f32 %v1671, %v1733
        %v1790 = vadd.f32 %v1672, %v1734
        %v1791 = vadd.f32 %v1673, %v1735
        %v1792 = vadd.f32 %v1674, %v1736
        %v1793 = vadd.f32 %v1675, %v1737
        %v1794 = vadd.f32 %v1676, %v1738
        %v1795 = vadd.f32 %v1677, %v1739
        %v1796 = vadd.f32 %v1678, %v1740
        %v1797 = vadd.f32 %v1679, %v1741
        %v1798 = vadd.f32 %v1680, %v1742
        %v1799 = vadd.f32 %v1681, %v1743
        %v1800 = vadd.f32 %v1682, %v1744
        %v1801 = vadd.f32 %v1683, %v1745
        %v1802 = vadd.f32 %v1684, %v1746
        %v1803 = vadd.f32 %v1685, %v1747
        %v1804 = vadd.f32 %v1686, %v1748
        %v1805 = vadd.f32 %v1687, %v1749
        %v1806 = vadd.f32 %v1688, %v1750
        %v1807 = vadd.f32 %v1689, %v1751
        %v1808 = vadd.f32 %v1690, %v1752
        %v1809 = vadd.f32 %v1691, %v1753
        %v1810 = vadd.f32 %v1692, %v1754
        %v1811 = vadd.f32 %v1693, %v1755
        %v1812 = vadd.f32 %v1694, %v1756
        %v1813 = vadd.f32 %v1695, %v1757
        %v1814 = vadd.f32 %v1696, %v1758
        %v1815 = vadd.f32 %v1697, %v1759
        %v1816 = vadd.f32 %v1698, %v1760
        %v1817 = vadd.f32 %v1699, %v1761
        %v1818 = vadd.f32 %v1700, %v1762
        %v1820 = vlaneseq
        %v1821 = vshrl.u32 %v1820, 7
        %v1822 = vsub.s32 0, %v1821
        %v1823 = vrot.slane %v317, %v1822
        %v1825 = vmul.f32 %v963, %v1823
        %v1826 = vmul.f32 %v964, %v1823
        %v1827 = vmul.f32 %v965, %v1823
        %v1828 = vmul.f32 %v966, %v1823
        %v1829 = vmul.f32 %v967, %v1823
        %v1830 = vmul.f32 %v968, %v1823
        %v1831 = vmul.f32 %v969, %v1823
        %v1832 = vmul.f32 %v970, %v1823
        %v1833 = vmul.f32 %v971, %v1823
        %v1834 = vmul.f32 %v972, %v1823
        %v1835 = vmul.f32 %v973, %v1823
        %v1836 = vmul.f32 %v974, %v1823
        %v1837 = vmul.f32 %v975, %v1823
        %v1838 = vmul.f32 %v976, %v1823
        %v1839 = vmul.f32 %v977, %v1823
        %v1840 = vmul.f32 %v978, %v1823
        %v1841 = vmul.f32 %v979, %v1823
        %v1842 = vmul.f32 %v980, %v1823
        %v1843 = vmul.f32 %v981, %v1823
        %v1844 = vmul.f32 %v982, %v1823
        %v1845 = vmul.f32 %v983, %v1823
        %v1846 = vmul.f32 %v984, %v1823
        %v1847 = vmul.f32 %v985, %v1823
        %v1848 = vmul.f32 %v986, %v1823
        %v1849 = vmul.f32 %v987, %v1823
        %v1850 = vmul.f32 %v988, %v1823
        %v1851 = vmul.f32 %v989, %v1823
        %v1852 = vmul.f32 %v990, %v1823
        %v1853 = vmul.f32 %v1025, %v1823
        %v1854 = vmul.f32 %v1026, %v1823
        %v1855 = vmul.f32 %v1027, %v1823
        %v1856 = vmul.f32 %v1028, %v1823
        %v1857 = vmul.f32 %v1029, %v1823
        %v1858 = vmul.f32 %v1030, %v1823
        %v1859 = vmul.f32 %v1031, %v1823
        %v1860 = vmul.f32 %v1032, %v1823
        %v1861 = vmul.f32 %v1033, %v1823
        %v1862 = vmul.f32 %v1034, %v1823
        %v1863 = vmul.f32 %v1035, %v1823
        %v1864 = vmul.f32 %v1036, %v1823
        %v1865 = vmul.f32 %v1037, %v1823
        %v1866 = vmul.f32 %v1038, %v1823
        %v1867 = vmul.f32 %v1039, %v1823
        %v1868 = vmul.f32 %v1040, %v1823
        %v1869 = vmul.f32 %v1041, %v1823
        %v1870 = vmul.f32 %v1042, %v1823
        %v1871 = vmul.f32 %v1043, %v1823
        %v1872 = vmul.f32 %v1044, %v1823
        %v1873 = vmul.f32 %v1045, %v1823
        %v1874 = vmul.f32 %v1046, %v1823
        %v1875 = vmul.f32 %v1047, %v1823
        %v1876 = vmul.f32 %v1048, %v1823
        %v1877 = vmul.f32 %v1049, %v1823
        %v1878 = vmul.f32 %v1050, %v1823
        %v1879 = vmul.f32 %v1051, %v1823
        %v1880 = vmul.f32 %v1052, %v1823
        %v1881 = vadd.f32 %v1763, %v1825
        %v1882 = vadd.f32 %v1764, %v1826
        %v1883 = vadd.f32 %v1765, %v1827
        %v1884 = vadd.f32 %v1766, %v1828
        %v1885 = vadd.f32 %v1767, %v1829
        %v1886 = vadd.f32 %v1768, %v1830
        %v1887 = vadd.f32 %v1769, %v1831
        %v1888 = vadd.f32 %v1770, %v1832
        %v1889 = vadd.f32 %v1771, %v1833
        %v1890 = vadd.f32 %v1772, %v1834
        %v1891 = vadd.f32 %v1773, %v1835
        %v1892 = vadd.f32 %v1774, %v1836
        %v1893 = vadd.f32 %v1775, %v1837
        %v1894 = vadd.f32 %v1776, %v1838
        %v1895 = vadd.f32 %v1777, %v1839
        %v1896 = vadd.f32 %v1778, %v1840
        %v1897 = vadd.f32 %v1779, %v1841
        %v1898 = vadd.f32 %v1780, %v1842
        %v1899 = vadd.f32 %v1781, %v1843
        %v1900 = vadd.f32 %v1782, %v1844
        %v1901 = vadd.f32 %v1783, %v1845
        %v1902 = vadd.f32 %v1784, %v1846
        %v1903 = vadd.f32 %v1785, %v1847
        %v1904 = vadd.f32 %v1786, %v1848
        %v1905 = vadd.f32 %v1787, %v1849
        %v1906 = vadd.f32 %v1788, %v1850
        %v1907 = vadd.f32 %v1789, %v1851
        %v1908 = vadd.f32 %v1790, %v1852
        %v1909 = vadd.f32 %v1791, %v1853
        %v1910 = vadd.f32 %v1792, %v1854
        %v1911 = vadd.f32 %v1793, %v1855
        %v1912 = vadd.f32 %v1794, %v1856
        %v1913 = vadd.f32 %v1795, %v1857
        %v1914 = vadd.f32 %v1796, %v1858
        %v1915 = vadd.f32 %v1797, %v1859
        %v1916 = vadd.f32 %v1798, %v1860
        %v1917 = vadd.f32 %v1799, %v1861
        %v1918 = vadd.f32 %v1800, %v1862
        %v1919 = vadd.f32 %v1801, %v1863
        %v1920 = vadd.f32 %v1802, %v1864
        %v1921 = vadd.f32 %v1803, %v1865
        %v1922 = vadd.f32 %v1804, %v1866
        %v1923 = vadd.f32 %v1805, %v1867
        %v1924 = vadd.f32 %v1806, %v1868
        %v1925 = vadd.f32 %v1807, %v1869
        %v1926 = vadd.f32 %v1808, %v1870
        %v1927 = vadd.f32 %v1809, %v1871
        %v1928 = vadd.f32 %v1810, %v1872
        %v1929 = vadd.f32 %v1811, %v1873
        %v1930 = vadd.f32 %v1812, %v1874
        %v1931 = vadd.f32 %v1813, %v1875
        %v1932 = vadd.f32 %v1814, %v1876
        %v1933 = vadd.f32 %v1815, %v1877
        %v1934 = vadd.f32 %v1816, %v1878
        %v1935 = vadd.f32 %v1817, %v1879
        %v1936 = vadd.f32 %v1818, %v1880
        %v1938 = vlaneseq
        %v1939 = vshrl.u32 %v1938, 7
        %v1940 = vsub.s32 0, %v1939
        %v1941 = vrot.slane %v318, %v1940
        %v1943 = vmul.f32 %v1211, %v1941
        %v1944 = vmul.f32 %v1212, %v1941
        %v1945 = vmul.f32 %v1213, %v1941
        %v1946 = vmul.f32 %v1214, %v1941
        %v1947 = vmul.f32 %v1215, %v1941
        %v1948 = vmul.f32 %v1216, %v1941
        %v1949 = vmul.f32 %v1217, %v1941
        %v1950 = vmul.f32 %v1218, %v1941
        %v1951 = vmul.f32 %v1219, %v1941
        %v1952 = vmul.f32 %v1220, %v1941
        %v1953 = vmul.f32 %v1221, %v1941
        %v1954 = vmul.f32 %v1222, %v1941
        %v1955 = vmul.f32 %v1223, %v1941
        %v1956 = vmul.f32 %v1224, %v1941
        %v1957 = vmul.f32 %v1225, %v1941
        %v1958 = vmul.f32 %v1226, %v1941
        %v1959 = vmul.f32 %v1227, %v1941
        %v1960 = vmul.f32 %v1228, %v1941
        %v1961 = vmul.f32 %v1229, %v1941
        %v1962 = vmul.f32 %v1230, %v1941
        %v1963 = vmul.f32 %v1231, %v1941
        %v1964 = vmul.f32 %v1232, %v1941
        %v1965 = vmul.f32 %v1233, %v1941
        %v1966 = vmul.f32 %v1234, %v1941
        %v1967 = vmul.f32 %v1235, %v1941
        %v1968 = vmul.f32 %v1236, %v1941
        %v1969 = vmul.f32 %v1237, %v1941
        %v1970 = vmul.f32 %v1238, %v1941
        %v1971 = vmul.f32 %v1273, %v1941
        %v1972 = vmul.f32 %v1274, %v1941
        %v1973 = vmul.f32 %v1275, %v1941
        %v1974 = vmul.f32 %v1276, %v1941
        %v1975 = vmul.f32 %v1277, %v1941
        %v1976 = vmul.f32 %v1278, %v1941
        %v1977 = vmul.f32 %v1279, %v1941
        %v1978 = vmul.f32 %v1280, %v1941
        %v1979 = vmul.f32 %v1281, %v1941
        %v1980 = vmul.f32 %v1282, %v1941
        %v1981 = vmul.f32 %v1283, %v1941
        %v1982 = vmul.f32 %v1284, %v1941
        %v1983 = vmul.f32 %v1285, %v1941
        %v1984 = vmul.f32 %v1286, %v1941
        %v1985 = vmul.f32 %v1287, %v1941
        %v1986 = vmul.f32 %v1288, %v1941
        %v1987 = vmul.f32 %v1289, %v1941
        %v1988 = vmul.f32 %v1290, %v1941
        %v1989 = vmul.f32 %v1291, %v1941
        %v1990 = vmul.f32 %v1292, %v1941
        %v1991 = vmul.f32 %v1293, %v1941
        %v1992 = vmul.f32 %v1294, %v1941
        %v1993 = vmul.f32 %v1295, %v1941
        %v1994 = vmul.f32 %v1296, %v1941
        %v1995 = vmul.f32 %v1297, %v1941
        %v1996 = vmul.f32 %v1298, %v1941
        %v1997 = vmul.f32 %v1299, %v1941
        %v1998 = vmul.f32 %v1300, %v1941
        %v1999 = vadd.f32 %v1881, %v1943
        %v2000 = vadd.f32 %v1882, %v1944
        %v2001 = vadd.f32 %v1883, %v1945
        %v2002 = vadd.f32 %v1884, %v1946
        %v2003 = vadd.f32 %v1885, %v1947
        %v2004 = vadd.f32 %v1886, %v1948
        %v2005 = vadd.f32 %v1887, %v1949
        %v2006 = vadd.f32 %v1888, %v1950
        %v2007 = vadd.f32 %v1889, %v1951
        %v2008 = vadd.f32 %v1890, %v1952
        %v2009 = vadd.f32 %v1891, %v1953
        %v2010 = vadd.f32 %v1892, %v1954
        %v2011 = vadd.f32 %v1893, %v1955
        %v2012 = vadd.f32 %v1894, %v1956
        %v2013 = vadd.f32 %v1895, %v1957
        %v2014 = vadd.f32 %v1896, %v1958
        %v2015 = vadd.f32 %v1897, %v1959
        %v2016 = vadd.f32 %v1898, %v1960
        %v2017 = vadd.f32 %v1899, %v1961
        %v2018 = vadd.f32 %v1900, %v1962
        %v2019 = vadd.f32 %v1901, %v1963
        %v2020 = vadd.f32 %v1902, %v1964
        %v2021 = vadd.f32 %v1903, %v1965
        %v2022 = vadd.f32 %v1904, %v1966
        %v2023 = vadd.f32 %v1905, %v1967
        %v2024 = vadd.f32 %v1906, %v1968
        %v2025 = vadd.f32 %v1907, %v1969
        %v2026 = vadd.f32 %v1908, %v1970
        %v2027 = vadd.f32 %v1909, %v1971
        %v2028 = vadd.f32 %v1910, %v1972
        %v2029 = vadd.f32 %v1911, %v1973
        %v2030 = vadd.f32 %v1912, %v1974
        %v2031 = vadd.f32 %v1913, %v1975
        %v2032 = vadd.f32 %v1914, %v1976
        %v2033 = vadd.f32 %v1915, %v1977
        %v2034 = vadd.f32 %v1916, %v1978
        %v2035 = vadd.f32 %v1917, %v1979
        %v2036 = vadd.f32 %v1918, %v1980
        %v2037 = vadd.f32 %v1919, %v1981
        %v2038 = vadd.f32 %v1920, %v1982
        %v2039 = vadd.f32 %v1921, %v1983
        %v2040 = vadd.f32 %v1922, %v1984
        %v2041 = vadd.f32 %v1923, %v1985
        %v2042 = vadd.f32 %v1924, %v1986
        %v2043 = vadd.f32 %v1925, %v1987
        %v2044 = vadd.f32 %v1926, %v1988
        %v2045 = vadd.f32 %v1927, %v1989
        %v2046 = vadd.f32 %v1928, %v1990
        %v2047 = vadd.f32 %v1929, %v1991
        %v2048 = vadd.f32 %v1930, %v1992
        %v2049 = vadd.f32 %v1931, %v1993
        %v2050 = vadd.f32 %v1932, %v1994
        %v2051 = vadd.f32 %v1933, %v1995
        %v2052 = vadd.f32 %v1934, %v1996
        %v2053 = vadd.f32 %v1935, %v1997
        %v2054 = vadd.f32 %v1936, %v1998
        %v2056 = vlaneseq
        %v2057 = vshrl.u32 %v2056, 7
        %v2058 = vsub.s32 0, %v2057
        %v2059 = vrot.slane %v319, %v2058
        %v2061 = vmul.f32 %v1459, %v2059
        %v2062 = vmul.f32 %v1460, %v2059
        %v2063 = vmul.f32 %v1461, %v2059
        %v2064 = vmul.f32 %v1462, %v2059
        %v2065 = vmul.f32 %v1463, %v2059
        %v2066 = vmul.f32 %v1464, %v2059
        %v2067 = vmul.f32 %v1465, %v2059
        %v2068 = vmul.f32 %v1466, %v2059
        %v2069 = vmul.f32 %v1467, %v2059
        %v2070 = vmul.f32 %v1468, %v2059
        %v2071 = vmul.f32 %v1469, %v2059
        %v2072 = vmul.f32 %v1470, %v2059
        %v2073 = vmul.f32 %v1471, %v2059
        %v2074 = vmul.f32 %v1472, %v2059
        %v2075 = vmul.f32 %v1473, %v2059
        %v2076 = vmul.f32 %v1474, %v2059
        %v2077 = vmul.f32 %v1475, %v2059
        %v2078 = vmul.f32 %v1476, %v2059
        %v2079 = vmul.f32 %v1477, %v2059
        %v2080 = vmul.f32 %v1478, %v2059
        %v2081 = vmul.f32 %v1479, %v2059
        %v2082 = vmul.f32 %v1480, %v2059
        %v2083 = vmul.f32 %v1481, %v2059
        %v2084 = vmul.f32 %v1482, %v2059
        %v2085 = vmul.f32 %v1483, %v2059
        %v2086 = vmul.f32 %v1484, %v2059
        %v2087 = vmul.f32 %v1485, %v2059
        %v2088 = vmul.f32 %v1486, %v2059
        %v2089 = vmul.f32 %v1521, %v2059
        %v2090 = vmul.f32 %v1522, %v2059
        %v2091 = vmul.f32 %v1523, %v2059
        %v2092 = vmul.f32 %v1524, %v2059
        %v2093 = vmul.f32 %v1525, %v2059
        %v2094 = vmul.f32 %v1526, %v2059
        %v2095 = vmul.f32 %v1527, %v2059
        %v2096 = vmul.f32 %v1528, %v2059
        %v2097 = vmul.f32 %v1529, %v2059
        %v2098 = vmul.f32 %v1530, %v2059
        %v2099 = vmul.f32 %v1531, %v2059
        %v2100 = vmul.f32 %v1532, %v2059
        %v2101 = vmul.f32 %v1533, %v2059
        %v2102 = vmul.f32 %v1534, %v2059
        %v2103 = vmul.f32 %v1535, %v2059
        %v2104 = vmul.f32 %v1536, %v2059
        %v2105 = vmul.f32 %v1537, %v2059
        %v2106 = vmul.f32 %v1538, %v2059
        %v2107 = vmul.f32 %v1539, %v2059
        %v2108 = vmul.f32 %v1540, %v2059
        %v2109 = vmul.f32 %v1541, %v2059
        %v2110 = vmul.f32 %v1542, %v2059
        %v2111 = vmul.f32 %v1543, %v2059
        %v2112 = vmul.f32 %v1544, %v2059
        %v2113 = vmul.f32 %v1545, %v2059
        %v2114 = vmul.f32 %v1546, %v2059
        %v2115 = vmul.f32 %v1547, %v2059
        %v2116 = vmul.f32 %v1548, %v2059
        %v2117 = vadd.f32 %v1999, %v2061
        %v2118 = vadd.f32 %v2000, %v2062
        %v2119 = vadd.f32 %v2001, %v2063
        %v2120 = vadd.f32 %v2002, %v2064
        %v2121 = vadd.f32 %v2003, %v2065
        %v2122 = vadd.f32 %v2004, %v2066
        %v2123 = vadd.f32 %v2005, %v2067
        %v2124 = vadd.f32 %v2006, %v2068
        %v2125 = vadd.f32 %v2007, %v2069
        %v2126 = vadd.f32 %v2008, %v2070
        %v2127 = vadd.f32 %v2009, %v2071
        %v2128 = vadd.f32 %v2010, %v2072
        %v2129 = vadd.f32 %v2011, %v2073
        %v2130 = vadd.f32 %v2012, %v2074
        %v2131 = vadd.f32 %v2013, %v2075
        %v2132 = vadd.f32 %v2014, %v2076
        %v2133 = vadd.f32 %v2015, %v2077
        %v2134 = vadd.f32 %v2016, %v2078
        %v2135 = vadd.f32 %v2017, %v2079
        %v2136 = vadd.f32 %v2018, %v2080
        %v2137 = vadd.f32 %v2019, %v2081
        %v2138 = vadd.f32 %v2020, %v2082
        %v2139 = vadd.f32 %v2021, %v2083
        %v2140 = vadd.f32 %v2022, %v2084
        %v2141 = vadd.f32 %v2023, %v2085
        %v2142 = vadd.f32 %v2024, %v2086
        %v2143 = vadd.f32 %v2025, %v2087
        %v2144 = vadd.f32 %v2026, %v2088
        %v2145 = vadd.f32 %v2027, %v2089
        %v2146 = vadd.f32 %v2028, %v2090
        %v2147 = vadd.f32 %v2029, %v2091
        %v2148 = vadd.f32 %v2030, %v2092
        %v2149 = vadd.f32 %v2031, %v2093
        %v2150 = vadd.f32 %v2032, %v2094
        %v2151 = vadd.f32 %v2033, %v2095
        %v2152 = vadd.f32 %v2034, %v2096
        %v2153 = vadd.f32 %v2035, %v2097
        %v2154 = vadd.f32 %v2036, %v2098
        %v2155 = vadd.f32 %v2037, %v2099
        %v2156 = vadd.f32 %v2038, %v2100
        %v2157 = vadd.f32 %v2039, %v2101
        %v2158 = vadd.f32 %v2040, %v2102
        %v2159 = vadd.f32 %v2041, %v2103
        %v2160 = vadd.f32 %v2042, %v2104
        %v2161 = vadd.f32 %v2043, %v2105
        %v2162 = vadd.f32 %v2044, %v2106
        %v2163 = vadd.f32 %v2045, %v2107
        %v2164 = vadd.f32 %v2046, %v2108
        %v2165 = vadd.f32 %v2047, %v2109
        %v2166 = vadd.f32 %v2048, %v2110
        %v2167 = vadd.f32 %v2049, %v2111
        %v2168 = vadd.f32 %v2050, %v2112
        %v2169 = vadd.f32 %v2051, %v2113
        %v2170 = vadd.f32 %v2052, %v2114
        %v2171 = vadd.f32 %v2053, %v2115
        %v2172 = vadd.f32 %v2054, %v2116
        %v2174 = vlaneseq
        %v2175 = vshrl.u32 %v2174, 7
        %v2176 = vsub.s32 0, %v2175
        %v2177 = vrot.slane %v320, %v2176
        %v2179 = vmul.f32 %v498, %v2177
        %v2180 = vmul.f32 %v499, %v2177
        %v2181 = vmul.f32 %v500, %v2177
        %v2182 = vmul.f32 %v501, %v2177
        %v2183 = vmul.f32 %v502, %v2177
        %v2184 = vmul.f32 %v503, %v2177
        %v2185 = vmul.f32 %v504, %v2177
        %v2186 = vmul.f32 %v505, %v2177
        %v2187 = vmul.f32 %v506, %v2177
        %v2188 = vmul.f32 %v507, %v2177
        %v2189 = vmul.f32 %v508, %v2177
        %v2190 = vmul.f32 %v509, %v2177
        %v2191 = vmul.f32 %v510, %v2177
        %v2192 = vmul.f32 %v511, %v2177
        %v2193 = vmul.f32 %v512, %v2177
        %v2194 = vmul.f32 %v513, %v2177
        %v2195 = vmul.f32 %v514, %v2177
        %v2196 = vmul.f32 %v515, %v2177
        %v2197 = vmul.f32 %v516, %v2177
        %v2198 = vmul.f32 %v517, %v2177
        %v2199 = vmul.f32 %v518, %v2177
        %v2200 = vmul.f32 %v519, %v2177
        %v2201 = vmul.f32 %v520, %v2177
        %v2202 = vmul.f32 %v521, %v2177
        %v2203 = vmul.f32 %v522, %v2177
        %v2204 = vmul.f32 %v523, %v2177
        %v2205 = vmul.f32 %v524, %v2177
        %v2206 = vmul.f32 %v525, %v2177
        %v2207 = vmul.f32 %v560, %v2177
        %v2208 = vmul.f32 %v561, %v2177
        %v2209 = vmul.f32 %v562, %v2177
        %v2210 = vmul.f32 %v563, %v2177
        %v2211 = vmul.f32 %v564, %v2177
        %v2212 = vmul.f32 %v565, %v2177
        %v2213 = vmul.f32 %v566, %v2177
        %v2214 = vmul.f32 %v567, %v2177
        %v2215 = vmul.f32 %v568, %v2177
        %v2216 = vmul.f32 %v569, %v2177
        %v2217 = vmul.f32 %v570, %v2177
        %v2218 = vmul.f32 %v571, %v2177
        %v2219 = vmul.f32 %v572, %v2177
        %v2220 = vmul.f32 %v573, %v2177
        %v2221 = vmul.f32 %v574, %v2177
        %v2222 = vmul.f32 %v575, %v2177
        %v2223 = vmul.f32 %v576, %v2177
        %v2224 = vmul.f32 %v577, %v2177
        %v2225 = vmul.f32 %v578, %v2177
        %v2226 = vmul.f32 %v579, %v2177
        %v2227 = vmul.f32 %v580, %v2177
        %v2228 = vmul.f32 %v581, %v2177
        %v2229 = vmul.f32 %v582, %v2177
        %v2230 = vmul.f32 %v583, %v2177
        %v2231 = vmul.f32 %v584, %v2177
        %v2232 = vmul.f32 %v585, %v2177
        %v2233 = vmul.f32 %v586, %v2177
        %v2234 = vmul.f32 %v587, %v2177
        %v2235 = vadd.f32 %v2117, %v2179
        %v2236 = vadd.f32 %v2118, %v2180
        %v2237 = vadd.f32 %v2119, %v2181
        %v2238 = vadd.f32 %v2120, %v2182
        %v2239 = vadd.f32 %v2121, %v2183
        %v2240 = vadd.f32 %v2122, %v2184
        %v2241 = vadd.f32 %v2123, %v2185
        %v2242 = vadd.f32 %v2124, %v2186
        %v2243 = vadd.f32 %v2125, %v2187
        %v2244 = vadd.f32 %v2126, %v2188
        %v2245 = vadd.f32 %v2127, %v2189
        %v2246 = vadd.f32 %v2128, %v2190
        %v2247 = vadd.f32 %v2129, %v2191
        %v2248 = vadd.f32 %v2130, %v2192
        %v2249 = vadd.f32 %v2131, %v2193
        %v2250 = vadd.f32 %v2132, %v2194
        %v2251 = vadd.f32 %v2133, %v2195
        %v2252 = vadd.f32 %v2134, %v2196
        %v2253 = vadd.f32 %v2135, %v2197
        %v2254 = vadd.f32 %v2136, %v2198
        %v2255 = vadd.f32 %v2137, %v2199
        %v2256 = vadd.f32 %v2138, %v2200
        %v2257 = vadd.f32 %v2139, %v2201
        %v2258 = vadd.f32 %v2140, %v2202
        %v2259 = vadd.f32 %v2141, %v2203
        %v2260 = vadd.f32 %v2142, %v2204
        %v2261 = vadd.f32 %v2143, %v2205
        %v2262 = vadd.f32 %v2144, %v2206
        %v2263 = vadd.f32 %v2145, %v2207
        %v2264 = vadd.f32 %v2146, %v2208
        %v2265 = vadd.f32 %v2147, %v2209
        %v2266 = vadd.f32 %v2148, %v2210
        %v2267 = vadd.f32 %v2149, %v2211
        %v2268 = vadd.f32 %v2150, %v2212
        %v2269 = vadd.f32 %v2151, %v2213
        %v2270 = vadd.f32 %v2152, %v2214
        %v2271 = vadd.f32 %v2153, %v2215
        %v2272 = vadd.f32 %v2154, %v2216
        %v2273 = vadd.f32 %v2155, %v2217
        %v2274 = vadd.f32 %v2156, %v2218
        %v2275 = vadd.f32 %v2157, %v2219
        %v2276 = vadd.f32 %v2158, %v2220
        %v2277 = vadd.f32 %v2159, %v2221
        %v2278 = vadd.f32 %v2160, %v2222
        %v2279 = vadd.f32 %v2161, %v2223
        %v2280 = vadd.f32 %v2162, %v2224
        %v2281 = vadd.f32 %v2163, %v2225
        %v2282 = vadd.f32 %v2164, %v2226
        %v2283 = vadd.f32 %v2165, %v2227
        %v2284 = vadd.f32 %v2166, %v2228
        %v2285 = vadd.f32 %v2167, %v2229
        %v2286 = vadd.f32 %v2168, %v2230
        %v2287 = vadd.f32 %v2169, %v2231
        %v2288 = vadd.f32 %v2170, %v2232
        %v2289 = vadd.f32 %v2171, %v2233
        %v2290 = vadd.f32 %v2172, %v2234
        %v2292 = vlaneseq
        %v2293 = vshrl.u32 %v2292, 7
        %v2294 = vsub.s32 0, %v2293
        %v2295 = vrot.slane %v321, %v2294
        %v2297 = vmul.f32 %v747, %v2295
        %v2298 = vmul.f32 %v748, %v2295
        %v2299 = vmul.f32 %v749, %v2295
        %v2300 = vmul.f32 %v750, %v2295
        %v2301 = vmul.f32 %v751, %v2295
        %v2302 = vmul.f32 %v752, %v2295
        %v2303 = vmul.f32 %v753, %v2295
        %v2304 = vmul.f32 %v754, %v2295
        %v2305 = vmul.f32 %v755, %v2295
        %v2306 = vmul.f32 %v756, %v2295
        %v2307 = vmul.f32 %v757, %v2295
        %v2308 = vmul.f32 %v758, %v2295
        %v2309 = vmul.f32 %v759, %v2295
        %v2310 = vmul.f32 %v760, %v2295
        %v2311 = vmul.f32 %v761, %v2295
        %v2312 = vmul.f32 %v762, %v2295
        %v2313 = vmul.f32 %v763, %v2295
        %v2314 = vmul.f32 %v764, %v2295
        %v2315 = vmul.f32 %v765, %v2295
        %v2316 = vmul.f32 %v766, %v2295
        %v2317 = vmul.f32 %v767, %v2295
        %v2318 = vmul.f32 %v768, %v2295
        %v2319 = vmul.f32 %v769, %v2295
        %v2320 = vmul.f32 %v770, %v2295
        %v2321 = vmul.f32 %v771, %v2295
        %v2322 = vmul.f32 %v772, %v2295
        %v2323 = vmul.f32 %v773, %v2295
        %v2324 = vmul.f32 %v774, %v2295
        %v2325 = vmul.f32 %v809, %v2295
        %v2326 = vmul.f32 %v810, %v2295
        %v2327 = vmul.f32 %v811, %v2295
        %v2328 = vmul.f32 %v812, %v2295
        %v2329 = vmul.f32 %v813, %v2295
        %v2330 = vmul.f32 %v814, %v2295
        %v2331 = vmul.f32 %v815, %v2295
        %v2332 = vmul.f32 %v816, %v2295
        %v2333 = vmul.f32 %v817, %v2295
        %v2334 = vmul.f32 %v818, %v2295
        %v2335 = vmul.f32 %v819, %v2295
        %v2336 = vmul.f32 %v820, %v2295
        %v2337 = vmul.f32 %v821, %v2295
        %v2338 = vmul.f32 %v822, %v2295
        %v2339 = vmul.f32 %v823, %v2295
        %v2340 = vmul.f32 %v824, %v2295
        %v2341 = vmul.f32 %v825, %v2295
        %v2342 = vmul.f32 %v826, %v2295
        %v2343 = vmul.f32 %v827, %v2295
        %v2344 = vmul.f32 %v828, %v2295
        %v2345 = vmul.f32 %v829, %v2295
        %v2346 = vmul.f32 %v830, %v2295
        %v2347 = vmul.f32 %v831, %v2295
        %v2348 = vmul.f32 %v832, %v2295
        %v2349 = vmul.f32 %v833, %v2295
        %v2350 = vmul.f32 %v834, %v2295
        %v2351 = vmul.f32 %v835, %v2295
        %v2352 = vmul.f32 %v836, %v2295
        %v2353 = vadd.f32 %v2235, %v2297
        %v2354 = vadd.f32 %v2236, %v2298
        %v2355 = vadd.f32 %v2237, %v2299
        %v2356 = vadd.f32 %v2238, %v2300
        %v2357 = vadd.f32 %v2239, %v2301
        %v2358 = vadd.f32 %v2240, %v2302
        %v2359 = vadd.f32 %v2241, %v2303
        %v2360 = vadd.f32 %v2242, %v2304
        %v2361 = vadd.f32 %v2243, %v2305
        %v2362 = vadd.f32 %v2244, %v2306
        %v2363 = vadd.f32 %v2245, %v2307
        %v2364 = vadd.f32 %v2246, %v2308
        %v2365 = vadd.f32 %v2247, %v2309
        %v2366 = vadd.f32 %v2248, %v2310
        %v2367 = vadd.f32 %v2249, %v2311
        %v2368 = vadd.f32 %v2250, %v2312
        %v2369 = vadd.f32 %v2251, %v2313
        %v2370 = vadd.f32 %v2252, %v2314
        %v2371 = vadd.f32 %v2253, %v2315
        %v2372 = vadd.f32 %v2254, %v2316
        %v2373 = vadd.f32 %v2255, %v2317
        %v2374 = vadd.f32 %v2256, %v2318
        %v2375 = vadd.f32 %v2257, %v2319
        %v2376 = vadd.f32 %v2258, %v2320
        %v2377 = vadd.f32 %v2259, %v2321
        %v2378 = vadd.f32 %v2260, %v2322
        %v2379 = vadd.f32 %v2261, %v2323
        %v2380 = vadd.f32 %v2262, %v2324
        %v2381 = vadd.f32 %v2263, %v2325
        %v2382 = vadd.f32 %v2264, %v2326
        %v2383 = vadd.f32 %v2265, %v2327
        %v2384 = vadd.f32 %v2266, %v2328
        %v2385 = vadd.f32 %v2267, %v2329
        %v2386 = vadd.f32 %v2268, %v2330
        %v2387 = vadd.f32 %v2269, %v2331
        %v2388 = vadd.f32 %v2270, %v2332
        %v2389 = vadd.f32 %v2271, %v2333
        %v2390 = vadd.f32 %v2272, %v2334
        %v2391 = vadd.f32 %v2273, %v2335
        %v2392 = vadd.f32 %v2274, %v2336
        %v2393 = vadd.f32 %v2275, %v2337
        %v2394 = vadd.f32 %v2276, %v2338
        %v2395 = vadd.f32 %v2277, %v2339
        %v2396 = vadd.f32 %v2278, %v2340
        %v2397 = vadd.f32 %v2279, %v2341
        %v2398 = vadd.f32 %v2280, %v2342
        %v2399 = vadd.f32 %v2281, %v2343
        %v2400 = vadd.f32 %v2282, %v2344
        %v2401 = vadd.f32 %v2283, %v2345
        %v2402 = vadd.f32 %v2284, %v2346
        %v2403 = vadd.f32 %v2285, %v2347
        %v2404 = vadd.f32 %v2286, %v2348
        %v2405 = vadd.f32 %v2287, %v2349
        %v2406 = vadd.f32 %v2288, %v2350
        %v2407 = vadd.f32 %v2289, %v2351
        %v2408 = vadd.f32 %v2290, %v2352
        %v2410 = vlaneseq
        %v2411 = vshrl.u32 %v2410, 7
        %v2412 = vsub.s32 0, %v2411
        %v2413 = vrot.slane %v322, %v2412
        %v2415 = vmul.f32 %v995, %v2413
        %v2416 = vmul.f32 %v996, %v2413
        %v2417 = vmul.f32 %v997, %v2413
        %v2418 = vmul.f32 %v998, %v2413
        %v2419 = vmul.f32 %v999, %v2413
        %v2420 = vmul.f32 %v1000, %v2413
        %v2421 = vmul.f32 %v1001, %v2413
        %v2422 = vmul.f32 %v1002, %v2413
        %v2423 = vmul.f32 %v1003, %v2413
        %v2424 = vmul.f32 %v1004, %v2413
        %v2425 = vmul.f32 %v1005, %v2413
        %v2426 = vmul.f32 %v1006, %v2413
        %v2427 = vmul.f32 %v1007, %v2413
        %v2428 = vmul.f32 %v1008, %v2413
        %v2429 = vmul.f32 %v1009, %v2413
        %v2430 = vmul.f32 %v1010, %v2413
        %v2431 = vmul.f32 %v1011, %v2413
        %v2432 = vmul.f32 %v1012, %v2413
        %v2433 = vmul.f32 %v1013, %v2413
        %v2434 = vmul.f32 %v1014, %v2413
        %v2435 = vmul.f32 %v1015, %v2413
        %v2436 = vmul.f32 %v1016, %v2413
        %v2437 = vmul.f32 %v1017, %v2413
        %v2438 = vmul.f32 %v1018, %v2413
        %v2439 = vmul.f32 %v1019, %v2413
        %v2440 = vmul.f32 %v1020, %v2413
        %v2441 = vmul.f32 %v1021, %v2413
        %v2442 = vmul.f32 %v1022, %v2413
        %v2443 = vmul.f32 %v1057, %v2413
        %v2444 = vmul.f32 %v1058, %v2413
        %v2445 = vmul.f32 %v1059, %v2413
        %v2446 = vmul.f32 %v1060, %v2413
        %v2447 = vmul.f32 %v1061, %v2413
        %v2448 = vmul.f32 %v1062, %v2413
        %v2449 = vmul.f32 %v1063, %v2413
        %v2450 = vmul.f32 %v1064, %v2413
        %v2451 = vmul.f32 %v1065, %v2413
        %v2452 = vmul.f32 %v1066, %v2413
        %v2453 = vmul.f32 %v1067, %v2413
        %v2454 = vmul.f32 %v1068, %v2413
        %v2455 = vmul.f32 %v1069, %v2413
        %v2456 = vmul.f32 %v1070, %v2413
        %v2457 = vmul.f32 %v1071, %v2413
        %v2458 = vmul.f32 %v1072, %v2413
        %v2459 = vmul.f32 %v1073, %v2413
        %v2460 = vmul.f32 %v1074, %v2413
        %v2461 = vmul.f32 %v1075, %v2413
        %v2462 = vmul.f32 %v1076, %v2413
        %v2463 = vmul.f32 %v1077, %v2413
        %v2464 = vmul.f32 %v1078, %v2413
        %v2465 = vmul.f32 %v1079, %v2413
        %v2466 = vmul.f32 %v1080, %v2413
        %v2467 = vmul.f32 %v1081, %v2413
        %v2468 = vmul.f32 %v1082, %v2413
        %v2469 = vmul.f32 %v1083, %v2413
        %v2470 = vmul.f32 %v1084, %v2413
        %v2471 = vadd.f32 %v2353, %v2415
        %v2472 = vadd.f32 %v2354, %v2416
        %v2473 = vadd.f32 %v2355, %v2417
        %v2474 = vadd.f32 %v2356, %v2418
        %v2475 = vadd.f32 %v2357, %v2419
        %v2476 = vadd.f32 %v2358, %v2420
        %v2477 = vadd.f32 %v2359, %v2421
        %v2478 = vadd.f32 %v2360, %v2422
        %v2479 = vadd.f32 %v2361, %v2423
        %v2480 = vadd.f32 %v2362, %v2424
        %v2481 = vadd.f32 %v2363, %v2425
        %v2482 = vadd.f32 %v2364, %v2426
        %v2483 = vadd.f32 %v2365, %v2427
        %v2484 = vadd.f32 %v2366, %v2428
        %v2485 = vadd.f32 %v2367, %v2429
        %v2486 = vadd.f32 %v2368, %v2430
        %v2487 = vadd.f32 %v2369, %v2431
        %v2488 = vadd.f32 %v2370, %v2432
        %v2489 = vadd.f32 %v2371, %v2433
        %v2490 = vadd.f32 %v2372, %v2434
        %v2491 = vadd.f32 %v2373, %v2435
        %v2492 = vadd.f32 %v2374, %v2436
        %v2493 = vadd.f32 %v2375, %v2437
        %v2494 = vadd.f32 %v2376, %v2438
        %v2495 = vadd.f32 %v2377, %v2439
        %v2496 = vadd.f32 %v2378, %v2440
        %v2497 = vadd.f32 %v2379, %v2441
        %v2498 = vadd.f32 %v2380, %v2442
        %v2499 = vadd.f32 %v2381, %v2443
        %v2500 = vadd.f32 %v2382, %v2444
        %v2501 = vadd.f32 %v2383, %v2445
        %v2502 = vadd.f32 %v2384, %v2446
        %v2503 = vadd.f32 %v2385, %v2447
        %v2504 = vadd.f32 %v2386, %v2448
        %v2505 = vadd.f32 %v2387, %v2449
        %v2506 = vadd.f32 %v2388, %v2450
        %v2507 = vadd.f32 %v2389, %v2451
        %v2508 = vadd.f32 %v2390, %v2452
        %v2509 = vadd.f32 %v2391, %v2453
        %v2510 = vadd.f32 %v2392, %v2454
        %v2511 = vadd.f32 %v2393, %v2455
        %v2512 = vadd.f32 %v2394, %v2456
        %v2513 = vadd.f32 %v2395, %v2457
        %v2514 = vadd.f32 %v2396, %v2458
        %v2515 = vadd.f32 %v2397, %v2459
        %v2516 = vadd.f32 %v2398, %v2460
        %v2517 = vadd.f32 %v2399, %v2461
        %v2518 = vadd.f32 %v2400, %v2462
        %v2519 = vadd.f32 %v2401, %v2463
        %v2520 = vadd.f32 %v2402, %v2464
        %v2521 = vadd.f32 %v2403, %v2465
        %v2522 = vadd.f32 %v2404, %v2466
        %v2523 = vadd.f32 %v2405, %v2467
        %v2524 = vadd.f32 %v2406, %v2468
        %v2525 = vadd.f32 %v2407, %v2469
        %v2526 = vadd.f32 %v2408, %v2470
        %v2528 = vlaneseq
        %v2529 = vshrl.u32 %v2528, 7
        %v2530 = vsub.s32 0, %v2529
        %v2531 = vrot.slane %v323, %v2530
        %v2533 = vmul.f32 %v1243, %v2531
        %v2534 = vmul.f32 %v1244, %v2531
        %v2535 = vmul.f32 %v1245, %v2531
        %v2536 = vmul.f32 %v1246, %v2531
        %v2537 = vmul.f32 %v1247, %v2531
        %v2538 = vmul.f32 %v1248, %v2531
        %v2539 = vmul.f32 %v1249, %v2531
        %v2540 = vmul.f32 %v1250, %v2531
        %v2541 = vmul.f32 %v1251, %v2531
        %v2542 = vmul.f32 %v1252, %v2531
        %v2543 = vmul.f32 %v1253, %v2531
        %v2544 = vmul.f32 %v1254, %v2531
        %v2545 = vmul.f32 %v1255, %v2531
        %v2546 = vmul.f32 %v1256, %v2531
        %v2547 = vmul.f32 %v1257, %v2531
        %v2548 = vmul.f32 %v1258, %v2531
        %v2549 = vmul.f32 %v1259, %v2531
        %v2550 = vmul.f32 %v1260, %v2531
        %v2551 = vmul.f32 %v1261, %v2531
        %v2552 = vmul.f32 %v1262, %v2531
        %v2553 = vmul.f32 %v1263, %v2531
        %v2554 = vmul.f32 %v1264, %v2531
        %v2555 = vmul.f32 %v1265, %v2531
        %v2556 = vmul.f32 %v1266, %v2531
        %v2557 = vmul.f32 %v1267, %v2531
        %v2558 = vmul.f32 %v1268, %v2531
        %v2559 = vmul.f32 %v1269, %v2531
        %v2560 = vmul.f32 %v1270, %v2531
        %v2561 = vmul.f32 %v1305, %v2531
        %v2562 = vmul.f32 %v1306, %v2531
        %v2563 = vmul.f32 %v1307, %v2531
        %v2564 = vmul.f32 %v1308, %v2531
        %v2565 = vmul.f32 %v1309, %v2531
        %v2566 = vmul.f32 %v1310, %v2531
        %v2567 = vmul.f32 %v1311, %v2531
        %v2568 = vmul.f32 %v1312, %v2531
        %v2569 = vmul.f32 %v1313, %v2531
        %v2570 = vmul.f32 %v1314, %v2531
        %v2571 = vmul.f32 %v1315, %v2531
        %v2572 = vmul.f32 %v1316, %v2531
        %v2573 = vmul.f32 %v1317, %v2531
        %v2574 = vmul.f32 %v1318, %v2531
        %v2575 = vmul.f32 %v1319, %v2531
        %v2576 = vmul.f32 %v1320, %v2531
        %v2577 = vmul.f32 %v1321, %v2531
        %v2578 = vmul.f32 %v1322, %v2531
        %v2579 = vmul.f32 %v1323, %v2531
        %v2580 = vmul.f32 %v1324, %v2531
        %v2581 = vmul.f32 %v1325, %v2531
        %v2582 = vmul.f32 %v1326, %v2531
        %v2583 = vmul.f32 %v1327, %v2531
        %v2584 = vmul.f32 %v1328, %v2531
        %v2585 = vmul.f32 %v1329, %v2531
        %v2586 = vmul.f32 %v1330, %v2531
        %v2587 = vmul.f32 %v1331, %v2531
        %v2588 = vmul.f32 %v1332, %v2531
        %v2589 = vadd.f32 %v2471, %v2533
        %v2590 = vadd.f32 %v2472, %v2534
        %v2591 = vadd.f32 %v2473, %v2535
        %v2592 = vadd.f32 %v2474, %v2536
        %v2593 = vadd.f32 %v2475, %v2537
        %v2594 = vadd.f32 %v2476, %v2538
        %v2595 = vadd.f32 %v2477, %v2539
        %v2596 = vadd.f32 %v2478, %v2540
        %v2597 = vadd.f32 %v2479, %v2541
        %v2598 = vadd.f32 %v2480, %v2542
        %v2599 = vadd.f32 %v2481, %v2543
        %v2600 = vadd.f32 %v2482, %v2544
        %v2601 = vadd.f32 %v2483, %v2545
        %v2602 = vadd.f32 %v2484, %v2546
        %v2603 = vadd.f32 %v2485, %v2547
        %v2604 = vadd.f32 %v2486, %v2548
        %v2605 = vadd.f32 %v2487, %v2549
        %v2606 = vadd.f32 %v2488, %v2550
        %v2607 = vadd.f32 %v2489, %v2551
        %v2608 = vadd.f32 %v2490, %v2552
        %v2609 = vadd.f32 %v2491, %v2553
        %v2610 = vadd.f32 %v2492, %v2554
        %v2611 = vadd.f32 %v2493, %v2555
        %v2612 = vadd.f32 %v2494, %v2556
        %v2613 = vadd.f32 %v2495, %v2557
        %v2614 = vadd.f32 %v2496, %v2558
        %v2615 = vadd.f32 %v2497, %v2559
        %v2616 = vadd.f32 %v2498, %v2560
        %v2617 = vadd.f32 %v2499, %v2561
        %v2618 = vadd.f32 %v2500, %v2562
        %v2619 = vadd.f32 %v2501, %v2563
        %v2620 = vadd.f32 %v2502, %v2564
        %v2621 = vadd.f32 %v2503, %v2565
        %v2622 = vadd.f32 %v2504, %v2566
        %v2623 = vadd.f32 %v2505, %v2567
        %v2624 = vadd.f32 %v2506, %v2568
        %v2625 = vadd.f32 %v2507, %v2569
        %v2626 = vadd.f32 %v2508, %v2570
        %v2627 = vadd.f32 %v2509, %v2571
        %v2628 = vadd.f32 %v2510, %v2572
        %v2629 = vadd.f32 %v2511, %v2573
        %v2630 = vadd.f32 %v2512, %v2574
        %v2631 = vadd.f32 %v2513, %v2575
        %v2632 = vadd.f32 %v2514, %v2576
        %v2633 = vadd.f32 %v2515, %v2577
        %v2634 = vadd.f32 %v2516, %v2578
        %v2635 = vadd.f32 %v2517, %v2579
        %v2636 = vadd.f32 %v2518, %v2580
        %v2637 = vadd.f32 %v2519, %v2581
        %v2638 = vadd.f32 %v2520, %v2582
        %v2639 = vadd.f32 %v2521, %v2583
        %v2640 = vadd.f32 %v2522, %v2584
        %v2641 = vadd.f32 %v2523, %v2585
        %v2642 = vadd.f32 %v2524, %v2586
        %v2643 = vadd.f32 %v2525, %v2587
        %v2644 = vadd.f32 %v2526, %v2588
        %v2646 = vlaneseq
        %v2647 = vshrl.u32 %v2646, 7
        %v2648 = vsub.s32 0, %v2647
        %v2649 = vrot.slane %v324, %v2648
        %v2651 = vmul.f32 %v1491, %v2649
        %v2652 = vmul.f32 %v1492, %v2649
        %v2653 = vmul.f32 %v1493, %v2649
        %v2654 = vmul.f32 %v1494, %v2649
        %v2655 = vmul.f32 %v1495, %v2649
        %v2656 = vmul.f32 %v1496, %v2649
        %v2657 = vmul.f32 %v1497, %v2649
        %v2658 = vmul.f32 %v1498, %v2649
        %v2659 = vmul.f32 %v1499, %v2649
        %v2660 = vmul.f32 %v1500, %v2649
        %v2661 = vmul.f32 %v1501, %v2649
        %v2662 = vmul.f32 %v1502, %v2649
        %v2663 = vmul.f32 %v1503, %v2649
        %v2664 = vmul.f32 %v1504, %v2649
        %v2665 = vmul.f32 %v1505, %v2649
        %v2666 = vmul.f32 %v1506, %v2649
        %v2667 = vmul.f32 %v1507, %v2649
        %v2668 = vmul.f32 %v1508, %v2649
        %v2669 = vmul.f32 %v1509, %v2649
        %v2670 = vmul.f32 %v1510, %v2649
        %v2671 = vmul.f32 %v1511, %v2649
        %v2672 = vmul.f32 %v1512, %v2649
        %v2673 = vmul.f32 %v1513, %v2649
        %v2674 = vmul.f32 %v1514, %v2649
        %v2675 = vmul.f32 %v1515, %v2649
        %v2676 = vmul.f32 %v1516, %v2649
        %v2677 = vmul.f32 %v1517, %v2649
        %v2678 = vmul.f32 %v1518, %v2649
        %v2679 = vmul.f32 %v1553, %v2649
        %v2680 = vmul.f32 %v1554, %v2649
        %v2681 = vmul.f32 %v1555, %v2649
        %v2682 = vmul.f32 %v1556, %v2649
        %v2683 = vmul.f32 %v1557, %v2649
        %v2684 = vmul.f32 %v1558, %v2649
        %v2685 = vmul.f32 %v1559, %v2649
        %v2686 = vmul.f32 %v1560, %v2649
        %v2687 = vmul.f32 %v1561, %v2649
        %v2688 = vmul.f32 %v1562, %v2649
        %v2689 = vmul.f32 %v1563, %v2649
        %v2690 = vmul.f32 %v1564, %v2649
        %v2691 = vmul.f32 %v1565, %v2649
        %v2692 = vmul.f32 %v1566, %v2649
        %v2693 = vmul.f32 %v1567, %v2649
        %v2694 = vmul.f32 %v1568, %v2649
        %v2695 = vmul.f32 %v1569, %v2649
        %v2696 = vmul.f32 %v1570, %v2649
        %v2697 = vmul.f32 %v1571, %v2649
        %v2698 = vmul.f32 %v1572, %v2649
        %v2699 = vmul.f32 %v1573, %v2649
        %v2700 = vmul.f32 %v1574, %v2649
        %v2701 = vmul.f32 %v1575, %v2649
        %v2702 = vmul.f32 %v1576, %v2649
        %v2703 = vmul.f32 %v1577, %v2649
        %v2704 = vmul.f32 %v1578, %v2649
        %v2705 = vmul.f32 %v1579, %v2649
        %v2706 = vmul.f32 %v1580, %v2649
        %v2707 = vadd.f32 %v2589, %v2651
        %v2708 = vadd.f32 %v2590, %v2652
        %v2709 = vadd.f32 %v2591, %v2653
        %v2710 = vadd.f32 %v2592, %v2654
        %v2711 = vadd.f32 %v2593, %v2655
        %v2712 = vadd.f32 %v2594, %v2656
        %v2713 = vadd.f32 %v2595, %v2657
        %v2714 = vadd.f32 %v2596, %v2658
        %v2715 = vadd.f32 %v2597, %v2659
        %v2716 = vadd.f32 %v2598, %v2660
        %v2717 = vadd.f32 %v2599, %v2661
        %v2718 = vadd.f32 %v2600, %v2662
        %v2719 = vadd.f32 %v2601, %v2663
        %v2720 = vadd.f32 %v2602, %v2664
        %v2721 = vadd.f32 %v2603, %v2665
        %v2722 = vadd.f32 %v2604, %v2666
        %v2723 = vadd.f32 %v2605, %v2667
        %v2724 = vadd.f32 %v2606, %v2668
        %v2725 = vadd.f32 %v2607, %v2669
        %v2726 = vadd.f32 %v2608, %v2670
        %v2727 = vadd.f32 %v2609, %v2671
        %v2728 = vadd.f32 %v2610, %v2672
        %v2729 = vadd.f32 %v2611, %v2673
        %v2730 = vadd.f32 %v2612, %v2674
        %v2731 = vadd.f32 %v2613, %v2675
        %v2732 = vadd.f32 %v2614, %v2676
        %v2733 = vadd.f32 %v2615, %v2677
        %v2734 = vadd.f32 %v2616, %v2678
        %v2735 = vadd.f32 %v2617, %v2679
        %v2736 = vadd.f32 %v2618, %v2680
        %v2737 = vadd.f32 %v2619, %v2681
        %v2738 = vadd.f32 %v2620, %v2682
        %v2739 = vadd.f32 %v2621, %v2683
        %v2740 = vadd.f32 %v2622, %v2684
        %v2741 = vadd.f32 %v2623, %v2685
        %v2742 = vadd.f32 %v2624, %v2686
        %v2743 = vadd.f32 %v2625, %v2687
        %v2744 = vadd.f32 %v2626, %v2688
        %v2745 = vadd.f32 %v2627, %v2689
        %v2746 = vadd.f32 %v2628, %v2690
        %v2747 = vadd.f32 %v2629, %v2691
        %v2748 = vadd.f32 %v2630, %v2692
        %v2749 = vadd.f32 %v2631, %v2693
        %v2750 = vadd.f32 %v2632, %v2694
        %v2751 = vadd.f32 %v2633, %v2695
        %v2752 = vadd.f32 %v2634, %v2696
        %v2753 = vadd.f32 %v2635, %v2697
        %v2754 = vadd.f32 %v2636, %v2698
        %v2755 = vadd.f32 %v2637, %v2699
        %v2756 = vadd.f32 %v2638, %v2700
        %v2757 = vadd.f32 %v2639, %v2701
        %v2758 = vadd.f32 %v2640, %v2702
        %v2759 = vadd.f32 %v2641, %v2703
        %v2760 = vadd.f32 %v2642, %v2704
        %v2761 = vadd.f32 %v2643, %v2705
        %v2762 = vadd.f32 %v2644, %v2706
        %v2764 = vlaneseq
        %v2765 = vshrl.u32 %v2764, 7
        %v2766 = vsub.s32 0, %v2765
        %v2767 = vrot.slane %v325, %v2766
        %v2769 = vmul.f32 %v468, %v2767
        %v2770 = vmul.f32 %v469, %v2767
        %v2771 = vmul.f32 %v470, %v2767
        %v2772 = vmul.f32 %v471, %v2767
        %v2773 = vmul.f32 %v472, %v2767
        %v2774 = vmul.f32 %v473, %v2767
        %v2775 = vmul.f32 %v474, %v2767
        %v2776 = vmul.f32 %v475, %v2767
        %v2777 = vmul.f32 %v476, %v2767
        %v2778 = vmul.f32 %v477, %v2767
        %v2779 = vmul.f32 %v478, %v2767
        %v2780 = vmul.f32 %v479, %v2767
        %v2781 = vmul.f32 %v480, %v2767
        %v2782 = vmul.f32 %v481, %v2767
        %v2783 = vmul.f32 %v482, %v2767
        %v2784 = vmul.f32 %v483, %v2767
        %v2785 = vmul.f32 %v484, %v2767
        %v2786 = vmul.f32 %v485, %v2767
        %v2787 = vmul.f32 %v486, %v2767
        %v2788 = vmul.f32 %v487, %v2767
        %v2789 = vmul.f32 %v488, %v2767
        %v2790 = vmul.f32 %v489, %v2767
        %v2791 = vmul.f32 %v490, %v2767
        %v2792 = vmul.f32 %v491, %v2767
        %v2793 = vmul.f32 %v492, %v2767
        %v2794 = vmul.f32 %v493, %v2767
        %v2795 = vmul.f32 %v494, %v2767
        %v2796 = vmul.f32 %v495, %v2767
        %v2797 = vmul.f32 %v530, %v2767
        %v2798 = vmul.f32 %v531, %v2767
        %v2799 = vmul.f32 %v532, %v2767
        %v2800 = vmul.f32 %v533, %v2767
        %v2801 = vmul.f32 %v534, %v2767
        %v2802 = vmul.f32 %v535, %v2767
        %v2803 = vmul.f32 %v536, %v2767
        %v2804 = vmul.f32 %v537, %v2767
        %v2805 = vmul.f32 %v538, %v2767
        %v2806 = vmul.f32 %v539, %v2767
        %v2807 = vmul.f32 %v540, %v2767
        %v2808 = vmul.f32 %v541, %v2767
        %v2809 = vmul.f32 %v542, %v2767
        %v2810 = vmul.f32 %v543, %v2767
        %v2811 = vmul.f32 %v544, %v2767
        %v2812 = vmul.f32 %v545, %v2767
        %v2813 = vmul.f32 %v546, %v2767
        %v2814 = vmul.f32 %v547, %v2767
        %v2815 = vmul.f32 %v548, %v2767
        %v2816 = vmul.f32 %v549, %v2767
        %v2817 = vmul.f32 %v550, %v2767
        %v2818 = vmul.f32 %v551, %v2767
        %v2819 = vmul.f32 %v552, %v2767
        %v2820 = vmul.f32 %v553, %v2767
        %v2821 = vmul.f32 %v554, %v2767
        %v2822 = vmul.f32 %v555, %v2767
        %v2823 = vmul.f32 %v556, %v2767
        %v2824 = vmul.f32 %v557, %v2767
        %v2825 = vadd.f32 %v2707, %v2769
        %v2826 = vadd.f32 %v2708, %v2770
        %v2827 = vadd.f32 %v2709, %v2771
        %v2828 = vadd.f32 %v2710, %v2772
        %v2829 = vadd.f32 %v2711, %v2773
        %v2830 = vadd.f32 %v2712, %v2774
        %v2831 = vadd.f32 %v2713, %v2775
        %v2832 = vadd.f32 %v2714, %v2776
        %v2833 = vadd.f32 %v2715, %v2777
        %v2834 = vadd.f32 %v2716, %v2778
        %v2835 = vadd.f32 %v2717, %v2779
        %v2836 = vadd.f32 %v2718, %v2780
        %v2837 = vadd.f32 %v2719, %v2781
        %v2838 = vadd.f32 %v2720, %v2782
        %v2839 = vadd.f32 %v2721, %v2783
        %v2840 = vadd.f32 %v2722, %v2784
        %v2841 = vadd.f32 %v2723, %v2785
        %v2842 = vadd.f32 %v2724, %v2786
        %v2843 = vadd.f32 %v2725, %v2787
        %v2844 = vadd.f32 %v2726, %v2788
        %v2845 = vadd.f32 %v2727, %v2789
        %v2846 = vadd.f32 %v2728, %v2790
        %v2847 = vadd.f32 %v2729, %v2791
        %v2848 = vadd.f32 %v2730, %v2792
        %v2849 = vadd.f32 %v2731, %v2793
        %v2850 = vadd.f32 %v2732, %v2794
        %v2851 = vadd.f32 %v2733, %v2795
        %v2852 = vadd.f32 %v2734, %v2796
        %v2853 = vadd.f32 %v2735, %v2797
        %v2854 = vadd.f32 %v2736, %v2798
        %v2855 = vadd.f32 %v2737, %v2799
        %v2856 = vadd.f32 %v2738, %v2800
        %v2857 = vadd.f32 %v2739, %v2801
        %v2858 = vadd.f32 %v2740, %v2802
        %v2859 = vadd.f32 %v2741, %v2803
        %v2860 = vadd.f32 %v2742, %v2804
        %v2861 = vadd.f32 %v2743, %v2805
        %v2862 = vadd.f32 %v2744, %v2806
        %v2863 = vadd.f32 %v2745, %v2807
        %v2864 = vadd.f32 %v2746, %v2808
        %v2865 = vadd.f32 %v2747, %v2809
        %v2866 = vadd.f32 %v2748, %v2810
        %v2867 = vadd.f32 %v2749, %v2811
        %v2868 = vadd.f32 %v2750, %v2812
        %v2869 = vadd.f32 %v2751, %v2813
        %v2870 = vadd.f32 %v2752, %v2814
        %v2871 = vadd.f32 %v2753, %v2815
        %v2872 = vadd.f32 %v2754, %v2816
        %v2873 = vadd.f32 %v2755, %v2817
        %v2874 = vadd.f32 %v2756, %v2818
        %v2875 = vadd.f32 %v2757, %v2819
        %v2876 = vadd.f32 %v2758, %v2820
        %v2877 = vadd.f32 %v2759, %v2821
        %v2878 = vadd.f32 %v2760, %v2822
        %v2879 = vadd.f32 %v2761, %v2823
        %v2880 = vadd.f32 %v2762, %v2824
        %v2882 = vlaneseq
        %v2883 = vshrl.u32 %v2882, 7
        %v2884 = vsub.s32 0, %v2883
        %v2885 = vrot.slane %v326, %v2884
        %v2887 = vmul.f32 %v717, %v2885
        %v2888 = vmul.f32 %v718, %v2885
        %v2889 = vmul.f32 %v719, %v2885
        %v2890 = vmul.f32 %v720, %v2885
        %v2891 = vmul.f32 %v721, %v2885
        %v2892 = vmul.f32 %v722, %v2885
        %v2893 = vmul.f32 %v723, %v2885
        %v2894 = vmul.f32 %v724, %v2885
        %v2895 = vmul.f32 %v725, %v2885
        %v2896 = vmul.f32 %v726, %v2885
        %v2897 = vmul.f32 %v727, %v2885
        %v2898 = vmul.f32 %v728, %v2885
        %v2899 = vmul.f32 %v729, %v2885
        %v2900 = vmul.f32 %v730, %v2885
        %v2901 = vmul.f32 %v731, %v2885
        %v2902 = vmul.f32 %v732, %v2885
        %v2903 = vmul.f32 %v733, %v2885
        %v2904 = vmul.f32 %v734, %v2885
        %v2905 = vmul.f32 %v735, %v2885
        %v2906 = vmul.f32 %v736, %v2885
        %v2907 = vmul.f32 %v737, %v2885
        %v2908 = vmul.f32 %v738, %v2885
        %v2909 = vmul.f32 %v739, %v2885
        %v2910 = vmul.f32 %v740, %v2885
        %v2911 = vmul.f32 %v741, %v2885
        %v2912 = vmul.f32 %v742, %v2885
        %v2913 = vmul.f32 %v743, %v2885
        %v2914 = vmul.f32 %v744, %v2885
        %v2915 = vmul.f32 %v779, %v2885
        %v2916 = vmul.f32 %v780, %v2885
        %v2917 = vmul.f32 %v781, %v2885
        %v2918 = vmul.f32 %v782, %v2885
        %v2919 = vmul.f32 %v783, %v2885
        %v2920 = vmul.f32 %v784, %v2885
        %v2921 = vmul.f32 %v785, %v2885
        %v2922 = vmul.f32 %v786, %v2885
        %v2923 = vmul.f32 %v787, %v2885
        %v2924 = vmul.f32 %v788, %v2885
        %v2925 = vmul.f32 %v789, %v2885
        %v2926 = vmul.f32 %v790, %v2885
        %v2927 = vmul.f32 %v791, %v2885
        %v2928 = vmul.f32 %v792, %v2885
        %v2929 = vmul.f32 %v793, %v2885
        %v2930 = vmul.f32 %v794, %v2885
        %v2931 = vmul.f32 %v795, %v2885
        %v2932 = vmul.f32 %v796, %v2885
        %v2933 = vmul.f32 %v797, %v2885
        %v2934 = vmul.f32 %v798, %v2885
        %v2935 = vmul.f32 %v799, %v2885
        %v2936 = vmul.f32 %v800, %v2885
        %v2937 = vmul.f32 %v801, %v2885
        %v2938 = vmul.f32 %v802, %v2885
        %v2939 = vmul.f32 %v803, %v2885
        %v2940 = vmul.f32 %v804, %v2885
        %v2941 = vmul.f32 %v805, %v2885
        %v2942 = vmul.f32 %v806, %v2885
        %v2943 = vadd.f32 %v2825, %v2887
        %v2944 = vadd.f32 %v2826, %v2888
        %v2945 = vadd.f32 %v2827, %v2889
        %v2946 = vadd.f32 %v2828, %v2890
        %v2947 = vadd.f32 %v2829, %v2891
        %v2948 = vadd.f32 %v2830, %v2892
        %v2949 = vadd.f32 %v2831, %v2893
        %v2950 = vadd.f32 %v2832, %v2894
        %v2951 = vadd.f32 %v2833, %v2895
        %v2952 = vadd.f32 %v2834, %v2896
        %v2953 = vadd.f32 %v2835, %v2897
        %v2954 = vadd.f32 %v2836, %v2898
        %v2955 = vadd.f32 %v2837, %v2899
        %v2956 = vadd.f32 %v2838, %v2900
        %v2957 = vadd.f32 %v2839, %v2901
        %v2958 = vadd.f32 %v2840, %v2902
        %v2959 = vadd.f32 %v2841, %v2903
        %v2960 = vadd.f32 %v2842, %v2904
        %v2961 = vadd.f32 %v2843, %v2905
        %v2962 = vadd.f32 %v2844, %v2906
        %v2963 = vadd.f32 %v2845, %v2907
        %v2964 = vadd.f32 %v2846, %v2908
        %v2965 = vadd.f32 %v2847, %v2909
        %v2966 = vadd.f32 %v2848, %v2910
        %v2967 = vadd.f32 %v2849, %v2911
        %v2968 = vadd.f32 %v2850, %v2912
        %v2969 = vadd.f32 %v2851, %v2913
        %v2970 = vadd.f32 %v2852, %v2914
        %v2971 = vadd.f32 %v2853, %v2915
        %v2972 = vadd.f32 %v2854, %v2916
        %v2973 = vadd.f32 %v2855, %v2917
        %v2974 = vadd.f32 %v2856, %v2918
        %v2975 = vadd.f32 %v2857, %v2919
        %v2976 = vadd.f32 %v2858, %v2920
        %v2977 = vadd.f32 %v2859, %v2921
        %v2978 = vadd.f32 %v2860, %v2922
        %v2979 = vadd.f32 %v2861, %v2923
        %v2980 = vadd.f32 %v2862, %v2924
        %v2981 = vadd.f32 %v2863, %v2925
        %v2982 = vadd.f32 %v2864, %v2926
        %v2983 = vadd.f32 %v2865, %v2927
        %v2984 = vadd.f32 %v2866, %v2928
        %v2985 = vadd.f32 %v2867, %v2929
        %v2986 = vadd.f32 %v2868, %v2930
        %v2987 = vadd.f32 %v2869, %v2931
        %v2988 = vadd.f32 %v2870, %v2932
        %v2989 = vadd.f32 %v2871, %v2933
        %v2990 = vadd.f32 %v2872, %v2934
        %v2991 = vadd.f32 %v2873, %v2935
        %v2992 = vadd.f32 %v2874, %v2936
        %v2993 = vadd.f32 %v2875, %v2937
        %v2994 = vadd.f32 %v2876, %v2938
        %v2995 = vadd.f32 %v2877, %v2939
        %v2996 = vadd.f32 %v2878, %v2940
        %v2997 = vadd.f32 %v2879, %v2941
        %v2998 = vadd.f32 %v2880, %v2942
        %v3000 = vlaneseq
        %v3001 = vshrl.u32 %v3000, 7
        %v3002 = vsub.s32 0, %v3001
        %v3003 = vrot.slane %v327, %v3002
        %v3005 = vmul.f32 %v965, %v3003
        %v3006 = vmul.f32 %v966, %v3003
        %v3007 = vmul.f32 %v967, %v3003
        %v3008 = vmul.f32 %v968, %v3003
        %v3009 = vmul.f32 %v969, %v3003
        %v3010 = vmul.f32 %v970, %v3003
        %v3011 = vmul.f32 %v971, %v3003
        %v3012 = vmul.f32 %v972, %v3003
        %v3013 = vmul.f32 %v973, %v3003
        %v3014 = vmul.f32 %v974, %v3003
        %v3015 = vmul.f32 %v975, %v3003
        %v3016 = vmul.f32 %v976, %v3003
        %v3017 = vmul.f32 %v977, %v3003
        %v3018 = vmul.f32 %v978, %v3003
        %v3019 = vmul.f32 %v979, %v3003
        %v3020 = vmul.f32 %v980, %v3003
        %v3021 = vmul.f32 %v981, %v3003
        %v3022 = vmul.f32 %v982, %v3003
        %v3023 = vmul.f32 %v983, %v3003
        %v3024 = vmul.f32 %v984, %v3003
        %v3025 = vmul.f32 %v985, %v3003
        %v3026 = vmul.f32 %v986, %v3003
        %v3027 = vmul.f32 %v987, %v3003
        %v3028 = vmul.f32 %v988, %v3003
        %v3029 = vmul.f32 %v989, %v3003
        %v3030 = vmul.f32 %v990, %v3003
        %v3031 = vmul.f32 %v991, %v3003
        %v3032 = vmul.f32 %v992, %v3003
        %v3033 = vmul.f32 %v1027, %v3003
        %v3034 = vmul.f32 %v1028, %v3003
        %v3035 = vmul.f32 %v1029, %v3003
        %v3036 = vmul.f32 %v1030, %v3003
        %v3037 = vmul.f32 %v1031, %v3003
        %v3038 = vmul.f32 %v1032, %v3003
        %v3039 = vmul.f32 %v1033, %v3003
        %v3040 = vmul.f32 %v1034, %v3003
        %v3041 = vmul.f32 %v1035, %v3003
        %v3042 = vmul.f32 %v1036, %v3003
        %v3043 = vmul.f32 %v1037, %v3003
        %v3044 = vmul.f32 %v1038, %v3003
        %v3045 = vmul.f32 %v1039, %v3003
        %v3046 = vmul.f32 %v1040, %v3003
        %v3047 = vmul.f32 %v1041, %v3003
        %v3048 = vmul.f32 %v1042, %v3003
        %v3049 = vmul.f32 %v1043, %v3003
        %v3050 = vmul.f32 %v1044, %v3003
        %v3051 = vmul.f32 %v1045, %v3003
        %v3052 = vmul.f32 %v1046, %v3003
        %v3053 = vmul.f32 %v1047, %v3003
        %v3054 = vmul.f32 %v1048, %v3003
        %v3055 = vmul.f32 %v1049, %v3003
        %v3056 = vmul.f32 %v1050, %v3003
        %v3057 = vmul.f32 %v1051, %v3003
        %v3058 = vmul.f32 %v1052, %v3003
        %v3059 = vmul.f32 %v1053, %v3003
        %v3060 = vmul.f32 %v1054, %v3003
        %v3061 = vadd.f32 %v2943, %v3005
        %v3062 = vadd.f32 %v2944, %v3006
        %v3063 = vadd.f32 %v2945, %v3007
        %v3064 = vadd.f32 %v2946, %v3008
        %v3065 = vadd.f32 %v2947, %v3009
        %v3066 = vadd.f32 %v2948, %v3010
        %v3067 = vadd.f32 %v2949, %v3011
        %v3068 = vadd.f32 %v2950, %v3012
        %v3069 = vadd.f32 %v2951, %v3013
        %v3070 = vadd.f32 %v2952, %v3014
        %v3071 = vadd.f32 %v2953, %v3015
        %v3072 = vadd.f32 %v2954, %v3016
        %v3073 = vadd.f32 %v2955, %v3017
        %v3074 = vadd.f32 %v2956, %v3018
        %v3075 = vadd.f32 %v2957, %v3019
        %v3076 = vadd.f32 %v2958, %v3020
        %v3077 = vadd.f32 %v2959, %v3021
        %v3078 = vadd.f32 %v2960, %v3022
        %v3079 = vadd.f32 %v2961, %v3023
        %v3080 = vadd.f32 %v2962, %v3024
        %v3081 = vadd.f32 %v2963, %v3025
        %v3082 = vadd.f32 %v2964, %v3026
        %v3083 = vadd.f32 %v2965, %v3027
        %v3084 = vadd.f32 %v2966, %v3028
        %v3085 = vadd.f32 %v2967, %v3029
        %v3086 = vadd.f32 %v2968, %v3030
        %v3087 = vadd.f32 %v2969, %v3031
        %v3088 = vadd.f32 %v2970, %v3032
        %v3089 = vadd.f32 %v2971, %v3033
        %v3090 = vadd.f32 %v2972, %v3034
        %v3091 = vadd.f32 %v2973, %v3035
        %v3092 = vadd.f32 %v2974, %v3036
        %v3093 = vadd.f32 %v2975, %v3037
        %v3094 = vadd.f32 %v2976, %v3038
        %v3095 = vadd.f32 %v2977, %v3039
        %v3096 = vadd.f32 %v2978, %v3040
        %v3097 = vadd.f32 %v2979, %v3041
        %v3098 = vadd.f32 %v2980, %v3042
        %v3099 = vadd.f32 %v2981, %v3043
        %v3100 = vadd.f32 %v2982, %v3044
        %v3101 = vadd.f32 %v2983, %v3045
        %v3102 = vadd.f32 %v2984, %v3046
        %v3103 = vadd.f32 %v2985, %v3047
        %v3104 = vadd.f32 %v2986, %v3048
        %v3105 = vadd.f32 %v2987, %v3049
        %v3106 = vadd.f32 %v2988, %v3050
        %v3107 = vadd.f32 %v2989, %v3051
        %v3108 = vadd.f32 %v2990, %v3052
        %v3109 = vadd.f32 %v2991, %v3053
        %v3110 = vadd.f32 %v2992, %v3054
        %v3111 = vadd.f32 %v2993, %v3055
        %v3112 = vadd.f32 %v2994, %v3056
        %v3113 = vadd.f32 %v2995, %v3057
        %v3114 = vadd.f32 %v2996, %v3058
        %v3115 = vadd.f32 %v2997, %v3059
        %v3116 = vadd.f32 %v2998, %v3060
        %v3118 = vlaneseq
        %v3119 = vshrl.u32 %v3118, 7
        %v3120 = vsub.s32 0, %v3119
        %v3121 = vrot.slane %v328, %v3120
        %v3123 = vmul.f32 %v1213, %v3121
        %v3124 = vmul.f32 %v1214, %v3121
        %v3125 = vmul.f32 %v1215, %v3121
        %v3126 = vmul.f32 %v1216, %v3121
        %v3127 = vmul.f32 %v1217, %v3121
        %v3128 = vmul.f32 %v1218, %v3121
        %v3129 = vmul.f32 %v1219, %v3121
        %v3130 = vmul.f32 %v1220, %v3121
        %v3131 = vmul.f32 %v1221, %v3121
        %v3132 = vmul.f32 %v1222, %v3121
        %v3133 = vmul.f32 %v1223, %v3121
        %v3134 = vmul.f32 %v1224, %v3121
        %v3135 = vmul.f32 %v1225, %v3121
        %v3136 = vmul.f32 %v1226, %v3121
        %v3137 = vmul.f32 %v1227, %v3121
        %v3138 = vmul.f32 %v1228, %v3121
        %v3139 = vmul.f32 %v1229, %v3121
        %v3140 = vmul.f32 %v1230, %v3121
        %v3141 = vmul.f32 %v1231, %v3121
        %v3142 = vmul.f32 %v1232, %v3121
        %v3143 = vmul.f32 %v1233, %v3121
        %v3144 = vmul.f32 %v1234, %v3121
        %v3145 = vmul.f32 %v1235, %v3121
        %v3146 = vmul.f32 %v1236, %v3121
        %v3147 = vmul.f32 %v1237, %v3121
        %v3148 = vmul.f32 %v1238, %v3121
        %v3149 = vmul.f32 %v1239, %v3121
        %v3150 = vmul.f32 %v1240, %v3121
        %v3151 = vmul.f32 %v1275, %v3121
        %v3152 = vmul.f32 %v1276, %v3121
        %v3153 = vmul.f32 %v1277, %v3121
        %v3154 = vmul.f32 %v1278, %v3121
        %v3155 = vmul.f32 %v1279, %v3121
        %v3156 = vmul.f32 %v1280, %v3121
        %v3157 = vmul.f32 %v1281, %v3121
        %v3158 = vmul.f32 %v1282, %v3121
        %v3159 = vmul.f32 %v1283, %v3121
        %v3160 = vmul.f32 %v1284, %v3121
        %v3161 = vmul.f32 %v1285, %v3121
        %v3162 = vmul.f32 %v1286, %v3121
        %v3163 = vmul.f32 %v1287, %v3121
        %v3164 = vmul.f32 %v1288, %v3121
        %v3165 = vmul.f32 %v1289, %v3121
        %v3166 = vmul.f32 %v1290, %v3121
        %v3167 = vmul.f32 %v1291, %v3121
        %v3168 = vmul.f32 %v1292, %v3121
        %v3169 = vmul.f32 %v1293, %v3121
        %v3170 = vmul.f32 %v1294, %v3121
        %v3171 = vmul.f32 %v1295, %v3121
        %v3172 = vmul.f32 %v1296, %v3121
        %v3173 = vmul.f32 %v1297, %v3121
        %v3174 = vmul.f32 %v1298, %v3121
        %v3175 = vmul.f32 %v1299, %v3121
        %v3176 = vmul.f32 %v1300, %v3121
        %v3177 = vmul.f32 %v1301, %v3121
        %v3178 = vmul.f32 %v1302, %v3121
        %v3179 = vadd.f32 %v3061, %v3123
        %v3180 = vadd.f32 %v3062, %v3124
        %v3181 = vadd.f32 %v3063, %v3125
        %v3182 = vadd.f32 %v3064, %v3126
        %v3183 = vadd.f32 %v3065, %v3127
        %v3184 = vadd.f32 %v3066, %v3128
        %v3185 = vadd.f32 %v3067, %v3129
        %v3186 = vadd.f32 %v3068, %v3130
        %v3187 = vadd.f32 %v3069, %v3131
        %v3188 = vadd.f32 %v3070, %v3132
        %v3189 = vadd.f32 %v3071, %v3133
        %v3190 = vadd.f32 %v3072, %v3134
        %v3191 = vadd.f32 %v3073, %v3135
        %v3192 = vadd.f32 %v3074, %v3136
        %v3193 = vadd.f32 %v3075, %v3137
        %v3194 = vadd.f32 %v3076, %v3138
        %v3195 = vadd.f32 %v3077, %v3139
        %v3196 = vadd.f32 %v3078, %v3140
        %v3197 = vadd.f32 %v3079, %v3141
        %v3198 = vadd.f32 %v3080, %v3142
        %v3199 = vadd.f32 %v3081, %v3143
        %v3200 = vadd.f32 %v3082, %v3144
        %v3201 = vadd.f32 %v3083, %v3145
        %v3202 = vadd.f32 %v3084, %v3146
        %v3203 = vadd.f32 %v3085, %v3147
        %v3204 = vadd.f32 %v3086, %v3148
        %v3205 = vadd.f32 %v3087, %v3149
        %v3206 = vadd.f32 %v3088, %v3150
        %v3207 = vadd.f32 %v3089, %v3151
        %v3208 = vadd.f32 %v3090, %v3152
        %v3209 = vadd.f32 %v3091, %v3153
        %v3210 = vadd.f32 %v3092, %v3154
        %v3211 = vadd.f32 %v3093, %v3155
        %v3212 = vadd.f32 %v3094, %v3156
        %v3213 = vadd.f32 %v3095, %v3157
        %v3214 = vadd.f32 %v3096, %v3158
        %v3215 = vadd.f32 %v3097, %v3159
        %v3216 = vadd.f32 %v3098, %v3160
        %v3217 = vadd.f32 %v3099, %v3161
        %v3218 = vadd.f32 %v3100, %v3162
        %v3219 = vadd.f32 %v3101, %v3163
        %v3220 = vadd.f32 %v3102, %v3164
        %v3221 = vadd.f32 %v3103, %v3165
        %v3222 = vadd.f32 %v3104, %v3166
        %v3223 = vadd.f32 %v3105, %v3167
        %v3224 = vadd.f32 %v3106, %v3168
        %v3225 = vadd.f32 %v3107, %v3169
        %v3226 = vadd.f32 %v3108, %v3170
        %v3227 = vadd.f32 %v3109, %v3171
        %v3228 = vadd.f32 %v3110, %v3172
        %v3229 = vadd.f32 %v3111, %v3173
        %v3230 = vadd.f32 %v3112, %v3174
        %v3231 = vadd.f32 %v3113, %v3175
        %v3232 = vadd.f32 %v3114, %v3176
        %v3233 = vadd.f32 %v3115, %v3177
        %v3234 = vadd.f32 %v3116, %v3178
        %v3236 = vlaneseq
        %v3237 = vshrl.u32 %v3236, 7
        %v3238 = vsub.s32 0, %v3237
        %v3239 = vrot.slane %v329, %v3238
        %v3241 = vmul.f32 %v1461, %v3239
        %v3242 = vmul.f32 %v1462, %v3239
        %v3243 = vmul.f32 %v1463, %v3239
        %v3244 = vmul.f32 %v1464, %v3239
        %v3245 = vmul.f32 %v1465, %v3239
        %v3246 = vmul.f32 %v1466, %v3239
        %v3247 = vmul.f32 %v1467, %v3239
        %v3248 = vmul.f32 %v1468, %v3239
        %v3249 = vmul.f32 %v1469, %v3239
        %v3250 = vmul.f32 %v1470, %v3239
        %v3251 = vmul.f32 %v1471, %v3239
        %v3252 = vmul.f32 %v1472, %v3239
        %v3253 = vmul.f32 %v1473, %v3239
        %v3254 = vmul.f32 %v1474, %v3239
        %v3255 = vmul.f32 %v1475, %v3239
        %v3256 = vmul.f32 %v1476, %v3239
        %v3257 = vmul.f32 %v1477, %v3239
        %v3258 = vmul.f32 %v1478, %v3239
        %v3259 = vmul.f32 %v1479, %v3239
        %v3260 = vmul.f32 %v1480, %v3239
        %v3261 = vmul.f32 %v1481, %v3239
        %v3262 = vmul.f32 %v1482, %v3239
        %v3263 = vmul.f32 %v1483, %v3239
        %v3264 = vmul.f32 %v1484, %v3239
        %v3265 = vmul.f32 %v1485, %v3239
        %v3266 = vmul.f32 %v1486, %v3239
        %v3267 = vmul.f32 %v1487, %v3239
        %v3268 = vmul.f32 %v1488, %v3239
        %v3269 = vmul.f32 %v1523, %v3239
        %v3270 = vmul.f32 %v1524, %v3239
        %v3271 = vmul.f32 %v1525, %v3239
        %v3272 = vmul.f32 %v1526, %v3239
        %v3273 = vmul.f32 %v1527, %v3239
        %v3274 = vmul.f32 %v1528, %v3239
        %v3275 = vmul.f32 %v1529, %v3239
        %v3276 = vmul.f32 %v1530, %v3239
        %v3277 = vmul.f32 %v1531, %v3239
        %v3278 = vmul.f32 %v1532, %v3239
        %v3279 = vmul.f32 %v1533, %v3239
        %v3280 = vmul.f32 %v1534, %v3239
        %v3281 = vmul.f32 %v1535, %v3239
        %v3282 = vmul.f32 %v1536, %v3239
        %v3283 = vmul.f32 %v1537, %v3239
        %v3284 = vmul.f32 %v1538, %v3239
        %v3285 = vmul.f32 %v1539, %v3239
        %v3286 = vmul.f32 %v1540, %v3239
        %v3287 = vmul.f32 %v1541, %v3239
        %v3288 = vmul.f32 %v1542, %v3239
        %v3289 = vmul.f32 %v1543, %v3239
        %v3290 = vmul.f32 %v1544, %v3239
        %v3291 = vmul.f32 %v1545, %v3239
        %v3292 = vmul.f32 %v1546, %v3239
        %v3293 = vmul.f32 %v1547, %v3239
        %v3294 = vmul.f32 %v1548, %v3239
        %v3295 = vmul.f32 %v1549, %v3239
        %v3296 = vmul.f32 %v1550, %v3239
        %v3297 = vadd.f32 %v3179, %v3241
        %v3298 = vadd.f32 %v3180, %v3242
        %v3299 = vadd.f32 %v3181, %v3243
        %v3300 = vadd.f32 %v3182, %v3244
        %v3301 = vadd.f32 %v3183, %v3245
        %v3302 = vadd.f32 %v3184, %v3246
        %v3303 = vadd.f32 %v3185, %v3247
        %v3304 = vadd.f32 %v3186, %v3248
        %v3305 = vadd.f32 %v3187, %v3249
        %v3306 = vadd.f32 %v3188, %v3250
        %v3307 = vadd.f32 %v3189, %v3251
        %v3308 = vadd.f32 %v3190, %v3252
        %v3309 = vadd.f32 %v3191, %v3253
        %v3310 = vadd.f32 %v3192, %v3254
        %v3311 = vadd.f32 %v3193, %v3255
        %v3312 = vadd.f32 %v3194, %v3256
        %v3313 = vadd.f32 %v3195, %v3257
        %v3314 = vadd.f32 %v3196, %v3258
        %v3315 = vadd.f32 %v3197, %v3259
        %v3316 = vadd.f32 %v3198, %v3260
        %v3317 = vadd.f32 %v3199, %v3261
        %v3318 = vadd.f32 %v3200, %v3262
        %v3319 = vadd.f32 %v3201, %v3263
        %v3320 = vadd.f32 %v3202, %v3264
        %v3321 = vadd.f32 %v3203, %v3265
        %v3322 = vadd.f32 %v3204, %v3266
        %v3323 = vadd.f32 %v3205, %v3267
        %v3324 = vadd.f32 %v3206, %v3268
        %v3325 = vadd.f32 %v3207, %v3269
        %v3326 = vadd.f32 %v3208, %v3270
        %v3327 = vadd.f32 %v3209, %v3271
        %v3328 = vadd.f32 %v3210, %v3272
        %v3329 = vadd.f32 %v3211, %v3273
        %v3330 = vadd.f32 %v3212, %v3274
        %v3331 = vadd.f32 %v3213, %v3275
        %v3332 = vadd.f32 %v3214, %v3276
        %v3333 = vadd.f32 %v3215, %v3277
        %v3334 = vadd.f32 %v3216, %v3278
        %v3335 = vadd.f32 %v3217, %v3279
        %v3336 = vadd.f32 %v3218, %v3280
        %v3337 = vadd.f32 %v3219, %v3281
        %v3338 = vadd.f32 %v3220, %v3282
        %v3339 = vadd.f32 %v3221, %v3283
        %v3340 = vadd.f32 %v3222, %v3284
        %v3341 = vadd.f32 %v3223, %v3285
        %v3342 = vadd.f32 %v3224, %v3286
        %v3343 = vadd.f32 %v3225, %v3287
        %v3344 = vadd.f32 %v3226, %v3288
        %v3345 = vadd.f32 %v3227, %v3289
        %v3346 = vadd.f32 %v3228, %v3290
        %v3347 = vadd.f32 %v3229, %v3291
        %v3348 = vadd.f32 %v3230, %v3292
        %v3349 = vadd.f32 %v3231, %v3293
        %v3350 = vadd.f32 %v3232, %v3294
        %v3351 = vadd.f32 %v3233, %v3295
        %v3352 = vadd.f32 %v3234, %v3296
        %v3354 = vlaneseq
        %v3355 = vshrl.u32 %v3354, 7
        %v3356 = vsub.s32 0, %v3355
        %v3357 = vrot.slane %v330, %v3356
        %v3359 = vmul.f32 %v500, %v3357
        %v3360 = vmul.f32 %v501, %v3357
        %v3361 = vmul.f32 %v502, %v3357
        %v3362 = vmul.f32 %v503, %v3357
        %v3363 = vmul.f32 %v504, %v3357
        %v3364 = vmul.f32 %v505, %v3357
        %v3365 = vmul.f32 %v506, %v3357
        %v3366 = vmul.f32 %v507, %v3357
        %v3367 = vmul.f32 %v508, %v3357
        %v3368 = vmul.f32 %v509, %v3357
        %v3369 = vmul.f32 %v510, %v3357
        %v3370 = vmul.f32 %v511, %v3357
        %v3371 = vmul.f32 %v512, %v3357
        %v3372 = vmul.f32 %v513, %v3357
        %v3373 = vmul.f32 %v514, %v3357
        %v3374 = vmul.f32 %v515, %v3357
        %v3375 = vmul.f32 %v516, %v3357
        %v3376 = vmul.f32 %v517, %v3357
        %v3377 = vmul.f32 %v518, %v3357
        %v3378 = vmul.f32 %v519, %v3357
        %v3379 = vmul.f32 %v520, %v3357
        %v3380 = vmul.f32 %v521, %v3357
        %v3381 = vmul.f32 %v522, %v3357
        %v3382 = vmul.f32 %v523, %v3357
        %v3383 = vmul.f32 %v524, %v3357
        %v3384 = vmul.f32 %v525, %v3357
        %v3385 = vmul.f32 %v526, %v3357
        %v3386 = vmul.f32 %v527, %v3357
        %v3387 = vmul.f32 %v562, %v3357
        %v3388 = vmul.f32 %v563, %v3357
        %v3389 = vmul.f32 %v564, %v3357
        %v3390 = vmul.f32 %v565, %v3357
        %v3391 = vmul.f32 %v566, %v3357
        %v3392 = vmul.f32 %v567, %v3357
        %v3393 = vmul.f32 %v568, %v3357
        %v3394 = vmul.f32 %v569, %v3357
        %v3395 = vmul.f32 %v570, %v3357
        %v3396 = vmul.f32 %v571, %v3357
        %v3397 = vmul.f32 %v572, %v3357
        %v3398 = vmul.f32 %v573, %v3357
        %v3399 = vmul.f32 %v574, %v3357
        %v3400 = vmul.f32 %v575, %v3357
        %v3401 = vmul.f32 %v576, %v3357
        %v3402 = vmul.f32 %v577, %v3357
        %v3403 = vmul.f32 %v578, %v3357
        %v3404 = vmul.f32 %v579, %v3357
        %v3405 = vmul.f32 %v580, %v3357
        %v3406 = vmul.f32 %v581, %v3357
        %v3407 = vmul.f32 %v582, %v3357
        %v3408 = vmul.f32 %v583, %v3357
        %v3409 = vmul.f32 %v584, %v3357
        %v3410 = vmul.f32 %v585, %v3357
        %v3411 = vmul.f32 %v586, %v3357
        %v3412 = vmul.f32 %v587, %v3357
        %v3413 = vmul.f32 %v588, %v3357
        %v3414 = vmul.f32 %v589, %v3357
        %v3415 = vadd.f32 %v3297, %v3359
        %v3416 = vadd.f32 %v3298, %v3360
        %v3417 = vadd.f32 %v3299, %v3361
        %v3418 = vadd.f32 %v3300, %v3362
        %v3419 = vadd.f32 %v3301, %v3363
        %v3420 = vadd.f32 %v3302, %v3364
        %v3421 = vadd.f32 %v3303, %v3365
        %v3422 = vadd.f32 %v3304, %v3366
        %v3423 = vadd.f32 %v3305, %v3367
        %v3424 = vadd.f32 %v3306, %v3368
        %v3425 = vadd.f32 %v3307, %v3369
        %v3426 = vadd.f32 %v3308, %v3370
        %v3427 = vadd.f32 %v3309, %v3371
        %v3428 = vadd.f32 %v3310, %v3372
        %v3429 = vadd.f32 %v3311, %v3373
        %v3430 = vadd.f32 %v3312, %v3374
        %v3431 = vadd.f32 %v3313, %v3375
        %v3432 = vadd.f32 %v3314, %v3376
        %v3433 = vadd.f32 %v3315, %v3377
        %v3434 = vadd.f32 %v3316, %v3378
        %v3435 = vadd.f32 %v3317, %v3379
        %v3436 = vadd.f32 %v3318, %v3380
        %v3437 = vadd.f32 %v3319, %v3381
        %v3438 = vadd.f32 %v3320, %v3382
        %v3439 = vadd.f32 %v3321, %v3383
        %v3440 = vadd.f32 %v3322, %v3384
        %v3441 = vadd.f32 %v3323, %v3385
        %v3442 = vadd.f32 %v3324, %v3386
        %v3443 = vadd.f32 %v3325, %v3387
        %v3444 = vadd.f32 %v3326, %v3388
        %v3445 = vadd.f32 %v3327, %v3389
        %v3446 = vadd.f32 %v3328, %v3390
        %v3447 = vadd.f32 %v3329, %v3391
        %v3448 = vadd.f32 %v3330, %v3392
        %v3449 = vadd.f32 %v3331, %v3393
        %v3450 = vadd.f32 %v3332, %v3394
        %v3451 = vadd.f32 %v3333, %v3395
        %v3452 = vadd.f32 %v3334, %v3396
        %v3453 = vadd.f32 %v3335, %v3397
        %v3454 = vadd.f32 %v3336, %v3398
        %v3455 = vadd.f32 %v3337, %v3399
        %v3456 = vadd.f32 %v3338, %v3400
        %v3457 = vadd.f32 %v3339, %v3401
        %v3458 = vadd.f32 %v3340, %v3402
        %v3459 = vadd.f32 %v3341, %v3403
        %v3460 = vadd.f32 %v3342, %v3404
        %v3461 = vadd.f32 %v3343, %v3405
        %v3462 = vadd.f32 %v3344, %v3406
        %v3463 = vadd.f32 %v3345, %v3407
        %v3464 = vadd.f32 %v3346, %v3408
        %v3465 = vadd.f32 %v3347, %v3409
        %v3466 = vadd.f32 %v3348, %v3410
        %v3467 = vadd.f32 %v3349, %v3411
        %v3468 = vadd.f32 %v3350, %v3412
        %v3469 = vadd.f32 %v3351, %v3413
        %v3470 = vadd.f32 %v3352, %v3414
        %v3472 = vlaneseq
        %v3473 = vshrl.u32 %v3472, 7
        %v3474 = vsub.s32 0, %v3473
        %v3475 = vrot.slane %v331, %v3474
        %v3477 = vmul.f32 %v749, %v3475
        %v3478 = vmul.f32 %v750, %v3475
        %v3479 = vmul.f32 %v751, %v3475
        %v3480 = vmul.f32 %v752, %v3475
        %v3481 = vmul.f32 %v753, %v3475
        %v3482 = vmul.f32 %v754, %v3475
        %v3483 = vmul.f32 %v755, %v3475
        %v3484 = vmul.f32 %v756, %v3475
        %v3485 = vmul.f32 %v757, %v3475
        %v3486 = vmul.f32 %v758, %v3475
        %v3487 = vmul.f32 %v759, %v3475
        %v3488 = vmul.f32 %v760, %v3475
        %v3489 = vmul.f32 %v761, %v3475
        %v3490 = vmul.f32 %v762, %v3475
        %v3491 = vmul.f32 %v763, %v3475
        %v3492 = vmul.f32 %v764, %v3475
        %v3493 = vmul.f32 %v765, %v3475
        %v3494 = vmul.f32 %v766, %v3475
        %v3495 = vmul.f32 %v767, %v3475
        %v3496 = vmul.f32 %v768, %v3475
        %v3497 = vmul.f32 %v769, %v3475
        %v3498 = vmul.f32 %v770, %v3475
        %v3499 = vmul.f32 %v771, %v3475
        %v3500 = vmul.f32 %v772, %v3475
        %v3501 = vmul.f32 %v773, %v3475
        %v3502 = vmul.f32 %v774, %v3475
        %v3503 = vmul.f32 %v775, %v3475
        %v3504 = vmul.f32 %v776, %v3475
        %v3505 = vmul.f32 %v811, %v3475
        %v3506 = vmul.f32 %v812, %v3475
        %v3507 = vmul.f32 %v813, %v3475
        %v3508 = vmul.f32 %v814, %v3475
        %v3509 = vmul.f32 %v815, %v3475
        %v3510 = vmul.f32 %v816, %v3475
        %v3511 = vmul.f32 %v817, %v3475
        %v3512 = vmul.f32 %v818, %v3475
        %v3513 = vmul.f32 %v819, %v3475
        %v3514 = vmul.f32 %v820, %v3475
        %v3515 = vmul.f32 %v821, %v3475
        %v3516 = vmul.f32 %v822, %v3475
        %v3517 = vmul.f32 %v823, %v3475
        %v3518 = vmul.f32 %v824, %v3475
        %v3519 = vmul.f32 %v825, %v3475
        %v3520 = vmul.f32 %v826, %v3475
        %v3521 = vmul.f32 %v827, %v3475
        %v3522 = vmul.f32 %v828, %v3475
        %v3523 = vmul.f32 %v829, %v3475
        %v3524 = vmul.f32 %v830, %v3475
        %v3525 = vmul.f32 %v831, %v3475
        %v3526 = vmul.f32 %v832, %v3475
        %v3527 = vmul.f32 %v833, %v3475
        %v3528 = vmul.f32 %v834, %v3475
        %v3529 = vmul.f32 %v835, %v3475
        %v3530 = vmul.f32 %v836, %v3475
        %v3531 = vmul.f32 %v837, %v3475
        %v3532 = vmul.f32 %v838, %v3475
        %v3533 = vadd.f32 %v3415, %v3477
        %v3534 = vadd.f32 %v3416, %v3478
        %v3535 = vadd.f32 %v3417, %v3479
        %v3536 = vadd.f32 %v3418, %v3480
        %v3537 = vadd.f32 %v3419, %v3481
        %v3538 = vadd.f32 %v3420, %v3482
        %v3539 = vadd.f32 %v3421, %v3483
        %v3540 = vadd.f32 %v3422, %v3484
        %v3541 = vadd.f32 %v3423, %v3485
        %v3542 = vadd.f32 %v3424, %v3486
        %v3543 = vadd.f32 %v3425, %v3487
        %v3544 = vadd.f32 %v3426, %v3488
        %v3545 = vadd.f32 %v3427, %v3489
        %v3546 = vadd.f32 %v3428, %v3490
        %v3547 = vadd.f32 %v3429, %v3491
        %v3548 = vadd.f32 %v3430, %v3492
        %v3549 = vadd.f32 %v3431, %v3493
        %v3550 = vadd.f32 %v3432, %v3494
        %v3551 = vadd.f32 %v3433, %v3495
        %v3552 = vadd.f32 %v3434, %v3496
        %v3553 = vadd.f32 %v3435, %v3497
        %v3554 = vadd.f32 %v3436, %v3498
        %v3555 = vadd.f32 %v3437, %v3499
        %v3556 = vadd.f32 %v3438, %v3500
        %v3557 = vadd.f32 %v3439, %v3501
        %v3558 = vadd.f32 %v3440, %v3502
        %v3559 = vadd.f32 %v3441, %v3503
        %v3560 = vadd.f32 %v3442, %v3504
        %v3561 = vadd.f32 %v3443, %v3505
        %v3562 = vadd.f32 %v3444, %v3506
        %v3563 = vadd.f32 %v3445, %v3507
        %v3564 = vadd.f32 %v3446, %v3508
        %v3565 = vadd.f32 %v3447, %v3509
        %v3566 = vadd.f32 %v3448, %v3510
        %v3567 = vadd.f32 %v3449, %v3511
        %v3568 = vadd.f32 %v3450, %v3512
        %v3569 = vadd.f32 %v3451, %v3513
        %v3570 = vadd.f32 %v3452, %v3514
        %v3571 = vadd.f32 %v3453, %v3515
        %v3572 = vadd.f32 %v3454, %v3516
        %v3573 = vadd.f32 %v3455, %v3517
        %v3574 = vadd.f32 %v3456, %v3518
        %v3575 = vadd.f32 %v3457, %v3519
        %v3576 = vadd.f32 %v3458, %v3520
        %v3577 = vadd.f32 %v3459, %v3521
        %v3578 = vadd.f32 %v3460, %v3522
        %v3579 = vadd.f32 %v3461, %v3523
        %v3580 = vadd.f32 %v3462, %v3524
        %v3581 = vadd.f32 %v3463, %v3525
        %v3582 = vadd.f32 %v3464, %v3526
        %v3583 = vadd.f32 %v3465, %v3527
        %v3584 = vadd.f32 %v3466, %v3528
        %v3585 = vadd.f32 %v3467, %v3529
        %v3586 = vadd.f32 %v3468, %v3530
        %v3587 = vadd.f32 %v3469, %v3531
        %v3588 = vadd.f32 %v3470, %v3532
        %v3590 = vlaneseq
        %v3591 = vshrl.u32 %v3590, 7
        %v3592 = vsub.s32 0, %v3591
        %v3593 = vrot.slane %v332, %v3592
        %v3595 = vmul.f32 %v997, %v3593
        %v3596 = vmul.f32 %v998, %v3593
        %v3597 = vmul.f32 %v999, %v3593
        %v3598 = vmul.f32 %v1000, %v3593
        %v3599 = vmul.f32 %v1001, %v3593
        %v3600 = vmul.f32 %v1002, %v3593
        %v3601 = vmul.f32 %v1003, %v3593
        %v3602 = vmul.f32 %v1004, %v3593
        %v3603 = vmul.f32 %v1005, %v3593
        %v3604 = vmul.f32 %v1006, %v3593
        %v3605 = vmul.f32 %v1007, %v3593
        %v3606 = vmul.f32 %v1008, %v3593
        %v3607 = vmul.f32 %v1009, %v3593
        %v3608 = vmul.f32 %v1010, %v3593
        %v3609 = vmul.f32 %v1011, %v3593
        %v3610 = vmul.f32 %v1012, %v3593
        %v3611 = vmul.f32 %v1013, %v3593
        %v3612 = vmul.f32 %v1014, %v3593
        %v3613 = vmul.f32 %v1015, %v3593
        %v3614 = vmul.f32 %v1016, %v3593
        %v3615 = vmul.f32 %v1017, %v3593
        %v3616 = vmul.f32 %v1018, %v3593
        %v3617 = vmul.f32 %v1019, %v3593
        %v3618 = vmul.f32 %v1020, %v3593
        %v3619 = vmul.f32 %v1021, %v3593
        %v3620 = vmul.f32 %v1022, %v3593
        %v3621 = vmul.f32 %v1023, %v3593
        %v3622 = vmul.f32 %v1024, %v3593
        %v3623 = vmul.f32 %v1059, %v3593
        %v3624 = vmul.f32 %v1060, %v3593
        %v3625 = vmul.f32 %v1061, %v3593
        %v3626 = vmul.f32 %v1062, %v3593
        %v3627 = vmul.f32 %v1063, %v3593
        %v3628 = vmul.f32 %v1064, %v3593
        %v3629 = vmul.f32 %v1065, %v3593
        %v3630 = vmul.f32 %v1066, %v3593
        %v3631 = vmul.f32 %v1067, %v3593
        %v3632 = vmul.f32 %v1068, %v3593
        %v3633 = vmul.f32 %v1069, %v3593
        %v3634 = vmul.f32 %v1070, %v3593
        %v3635 = vmul.f32 %v1071, %v3593
        %v3636 = vmul.f32 %v1072, %v3593
        %v3637 = vmul.f32 %v1073, %v3593
        %v3638 = vmul.f32 %v1074, %v3593
        %v3639 = vmul.f32 %v1075, %v3593
        %v3640 = vmul.f32 %v1076, %v3593
        %v3641 = vmul.f32 %v1077, %v3593
        %v3642 = vmul.f32 %v1078, %v3593
        %v3643 = vmul.f32 %v1079, %v3593
        %v3644 = vmul.f32 %v1080, %v3593
        %v3645 = vmul.f32 %v1081, %v3593
        %v3646 = vmul.f32 %v1082, %v3593
        %v3647 = vmul.f32 %v1083, %v3593
        %v3648 = vmul.f32 %v1084, %v3593
        %v3649 = vmul.f32 %v1085, %v3593
        %v3650 = vmul.f32 %v1086, %v3593
        %v3651 = vadd.f32 %v3533, %v3595
        %v3652 = vadd.f32 %v3534, %v3596
        %v3653 = vadd.f32 %v3535, %v3597
        %v3654 = vadd.f32 %v3536, %v3598
        %v3655 = vadd.f32 %v3537, %v3599
        %v3656 = vadd.f32 %v3538, %v3600
        %v3657 = vadd.f32 %v3539, %v3601
        %v3658 = vadd.f32 %v3540, %v3602
        %v3659 = vadd.f32 %v3541, %v3603
        %v3660 = vadd.f32 %v3542, %v3604
        %v3661 = vadd.f32 %v3543, %v3605
        %v3662 = vadd.f32 %v3544, %v3606
        %v3663 = vadd.f32 %v3545, %v3607
        %v3664 = vadd.f32 %v3546, %v3608
        %v3665 = vadd.f32 %v3547, %v3609
        %v3666 = vadd.f32 %v3548, %v3610
        %v3667 = vadd.f32 %v3549, %v3611
        %v3668 = vadd.f32 %v3550, %v3612
        %v3669 = vadd.f32 %v3551, %v3613
        %v3670 = vadd.f32 %v3552, %v3614
        %v3671 = vadd.f32 %v3553, %v3615
        %v3672 = vadd.f32 %v3554, %v3616
        %v3673 = vadd.f32 %v3555, %v3617
        %v3674 = vadd.f32 %v3556, %v3618
        %v3675 = vadd.f32 %v3557, %v3619
        %v3676 = vadd.f32 %v3558, %v3620
        %v3677 = vadd.f32 %v3559, %v3621
        %v3678 = vadd.f32 %v3560, %v3622
        %v3679 = vadd.f32 %v3561, %v3623
        %v3680 = vadd.f32 %v3562, %v3624
        %v3681 = vadd.f32 %v3563, %v3625
        %v3682 = vadd.f32 %v3564, %v3626
        %v3683 = vadd.f32 %v3565, %v3627
        %v3684 = vadd.f32 %v3566, %v3628
        %v3685 = vadd.f32 %v3567, %v3629
        %v3686 = vadd.f32 %v3568, %v3630
        %v3687 = vadd.f32 %v3569, %v3631
        %v3688 = vadd.f32 %v3570, %v3632
        %v3689 = vadd.f32 %v3571, %v3633
        %v3690 = vadd.f32 %v3572, %v3634
        %v3691 = vadd.f32 %v3573, %v3635
        %v3692 = vadd.f32 %v3574, %v3636
        %v3693 = vadd.f32 %v3575, %v3637
        %v3694 = vadd.f32 %v3576, %v3638
        %v3695 = vadd.f32 %v3577, %v3639
        %v3696 = vadd.f32 %v3578, %v3640
        %v3697 = vadd.f32 %v3579, %v3641
        %v3698 = vadd.f32 %v3580, %v3642
        %v3699 = vadd.f32 %v3581, %v3643
        %v3700 = vadd.f32 %v3582, %v3644
        %v3701 = vadd.f32 %v3583, %v3645
        %v3702 = vadd.f32 %v3584, %v3646
        %v3703 = vadd.f32 %v3585, %v3647
        %v3704 = vadd.f32 %v3586, %v3648
        %v3705 = vadd.f32 %v3587, %v3649
        %v3706 = vadd.f32 %v3588, %v3650
        %v3708 = vlaneseq
        %v3709 = vshrl.u32 %v3708, 7
        %v3710 = vsub.s32 0, %v3709
        %v3711 = vrot.slane %v333, %v3710
        %v3713 = vmul.f32 %v1245, %v3711
        %v3714 = vmul.f32 %v1246, %v3711
        %v3715 = vmul.f32 %v1247, %v3711
        %v3716 = vmul.f32 %v1248, %v3711
        %v3717 = vmul.f32 %v1249, %v3711
        %v3718 = vmul.f32 %v1250, %v3711
        %v3719 = vmul.f32 %v1251, %v3711
        %v3720 = vmul.f32 %v1252, %v3711
        %v3721 = vmul.f32 %v1253, %v3711
        %v3722 = vmul.f32 %v1254, %v3711
        %v3723 = vmul.f32 %v1255, %v3711
        %v3724 = vmul.f32 %v1256, %v3711
        %v3725 = vmul.f32 %v1257, %v3711
        %v3726 = vmul.f32 %v1258, %v3711
        %v3727 = vmul.f32 %v1259, %v3711
        %v3728 = vmul.f32 %v1260, %v3711
        %v3729 = vmul.f32 %v1261, %v3711
        %v3730 = vmul.f32 %v1262, %v3711
        %v3731 = vmul.f32 %v1263, %v3711
        %v3732 = vmul.f32 %v1264, %v3711
        %v3733 = vmul.f32 %v1265, %v3711
        %v3734 = vmul.f32 %v1266, %v3711
        %v3735 = vmul.f32 %v1267, %v3711
        %v3736 = vmul.f32 %v1268, %v3711
        %v3737 = vmul.f32 %v1269, %v3711
        %v3738 = vmul.f32 %v1270, %v3711
        %v3739 = vmul.f32 %v1271, %v3711
        %v3740 = vmul.f32 %v1272, %v3711
        %v3741 = vmul.f32 %v1307, %v3711
        %v3742 = vmul.f32 %v1308, %v3711
        %v3743 = vmul.f32 %v1309, %v3711
        %v3744 = vmul.f32 %v1310, %v3711
        %v3745 = vmul.f32 %v1311, %v3711
        %v3746 = vmul.f32 %v1312, %v3711
        %v3747 = vmul.f32 %v1313, %v3711
        %v3748 = vmul.f32 %v1314, %v3711
        %v3749 = vmul.f32 %v1315, %v3711
        %v3750 = vmul.f32 %v1316, %v3711
        %v3751 = vmul.f32 %v1317, %v3711
        %v3752 = vmul.f32 %v1318, %v3711
        %v3753 = vmul.f32 %v1319, %v3711
        %v3754 = vmul.f32 %v1320, %v3711
        %v3755 = vmul.f32 %v1321, %v3711
        %v3756 = vmul.f32 %v1322, %v3711
        %v3757 = vmul.f32 %v1323, %v3711
        %v3758 = vmul.f32 %v1324, %v3711
        %v3759 = vmul.f32 %v1325, %v3711
        %v3760 = vmul.f32 %v1326, %v3711
        %v3761 = vmul.f32 %v1327, %v3711
        %v3762 = vmul.f32 %v1328, %v3711
        %v3763 = vmul.f32 %v1329, %v3711
        %v3764 = vmul.f32 %v1330, %v3711
        %v3765 = vmul.f32 %v1331, %v3711
        %v3766 = vmul.f32 %v1332, %v3711
        %v3767 = vmul.f32 %v1333, %v3711
        %v3768 = vmul.f32 %v1334, %v3711
        %v3769 = vadd.f32 %v3651, %v3713
        %v3770 = vadd.f32 %v3652, %v3714
        %v3771 = vadd.f32 %v3653, %v3715
        %v3772 = vadd.f32 %v3654, %v3716
        %v3773 = vadd.f32 %v3655, %v3717
        %v3774 = vadd.f32 %v3656, %v3718
        %v3775 = vadd.f32 %v3657, %v3719
        %v3776 = vadd.f32 %v3658, %v3720
        %v3777 = vadd.f32 %v3659, %v3721
        %v3778 = vadd.f32 %v3660, %v3722
        %v3779 = vadd.f32 %v3661, %v3723
        %v3780 = vadd.f32 %v3662, %v3724
        %v3781 = vadd.f32 %v3663, %v3725
        %v3782 = vadd.f32 %v3664, %v3726
        %v3783 = vadd.f32 %v3665, %v3727
        %v3784 = vadd.f32 %v3666, %v3728
        %v3785 = vadd.f32 %v3667, %v3729
        %v3786 = vadd.f32 %v3668, %v3730
        %v3787 = vadd.f32 %v3669, %v3731
        %v3788 = vadd.f32 %v3670, %v3732
        %v3789 = vadd.f32 %v3671, %v3733
        %v3790 = vadd.f32 %v3672, %v3734
        %v3791 = vadd.f32 %v3673, %v3735
        %v3792 = vadd.f32 %v3674, %v3736
        %v3793 = vadd.f32 %v3675, %v3737
        %v3794 = vadd.f32 %v3676, %v3738
        %v3795 = vadd.f32 %v3677, %v3739
        %v3796 = vadd.f32 %v3678, %v3740
        %v3797 = vadd.f32 %v3679, %v3741
        %v3798 = vadd.f32 %v3680, %v3742
        %v3799 = vadd.f32 %v3681, %v3743
        %v3800 = vadd.f32 %v3682, %v3744
        %v3801 = vadd.f32 %v3683, %v3745
        %v3802 = vadd.f32 %v3684, %v3746
        %v3803 = vadd.f32 %v3685, %v3747
        %v3804 = vadd.f32 %v3686, %v3748
        %v3805 = vadd.f32 %v3687, %v3749
        %v3806 = vadd.f32 %v3688, %v3750
        %v3807 = vadd.f32 %v3689, %v3751
        %v3808 = vadd.f32 %v3690, %v3752
        %v3809 = vadd.f32 %v3691, %v3753
        %v3810 = vadd.f32 %v3692, %v3754
        %v3811 = vadd.f32 %v3693, %v3755
        %v3812 = vadd.f32 %v3694, %v3756
        %v3813 = vadd.f32 %v3695, %v3757
        %v3814 = vadd.f32 %v3696, %v3758
        %v3815 = vadd.f32 %v3697, %v3759
        %v3816 = vadd.f32 %v3698, %v3760
        %v3817 = vadd.f32 %v3699, %v3761
        %v3818 = vadd.f32 %v3700, %v3762
        %v3819 = vadd.f32 %v3701, %v3763
        %v3820 = vadd.f32 %v3702, %v3764
        %v3821 = vadd.f32 %v3703, %v3765
        %v3822 = vadd.f32 %v3704, %v3766
        %v3823 = vadd.f32 %v3705, %v3767
        %v3824 = vadd.f32 %v3706, %v3768
        %v3826 = vlaneseq
        %v3827 = vshrl.u32 %v3826, 7
        %v3828 = vsub.s32 0, %v3827
        %v3829 = vrot.slane %v334, %v3828
        %v3831 = vmul.f32 %v1493, %v3829
        %v3832 = vmul.f32 %v1494, %v3829
        %v3833 = vmul.f32 %v1495, %v3829
        %v3834 = vmul.f32 %v1496, %v3829
        %v3835 = vmul.f32 %v1497, %v3829
        %v3836 = vmul.f32 %v1498, %v3829
        %v3837 = vmul.f32 %v1499, %v3829
        %v3838 = vmul.f32 %v1500, %v3829
        %v3839 = vmul.f32 %v1501, %v3829
        %v3840 = vmul.f32 %v1502, %v3829
        %v3841 = vmul.f32 %v1503, %v3829
        %v3842 = vmul.f32 %v1504, %v3829
        %v3843 = vmul.f32 %v1505, %v3829
        %v3844 = vmul.f32 %v1506, %v3829
        %v3845 = vmul.f32 %v1507, %v3829
        %v3846 = vmul.f32 %v1508, %v3829
        %v3847 = vmul.f32 %v1509, %v3829
        %v3848 = vmul.f32 %v1510, %v3829
        %v3849 = vmul.f32 %v1511, %v3829
        %v3850 = vmul.f32 %v1512, %v3829
        %v3851 = vmul.f32 %v1513, %v3829
        %v3852 = vmul.f32 %v1514, %v3829
        %v3853 = vmul.f32 %v1515, %v3829
        %v3854 = vmul.f32 %v1516, %v3829
        %v3855 = vmul.f32 %v1517, %v3829
        %v3856 = vmul.f32 %v1518, %v3829
        %v3857 = vmul.f32 %v1519, %v3829
        %v3858 = vmul.f32 %v1520, %v3829
        %v3859 = vmul.f32 %v1555, %v3829
        %v3860 = vmul.f32 %v1556, %v3829
        %v3861 = vmul.f32 %v1557, %v3829
        %v3862 = vmul.f32 %v1558, %v3829
        %v3863 = vmul.f32 %v1559, %v3829
        %v3864 = vmul.f32 %v1560, %v3829
        %v3865 = vmul.f32 %v1561, %v3829
        %v3866 = vmul.f32 %v1562, %v3829
        %v3867 = vmul.f32 %v1563, %v3829
        %v3868 = vmul.f32 %v1564, %v3829
        %v3869 = vmul.f32 %v1565, %v3829
        %v3870 = vmul.f32 %v1566, %v3829
        %v3871 = vmul.f32 %v1567, %v3829
        %v3872 = vmul.f32 %v1568, %v3829
        %v3873 = vmul.f32 %v1569, %v3829
        %v3874 = vmul.f32 %v1570, %v3829
        %v3875 = vmul.f32 %v1571, %v3829
        %v3876 = vmul.f32 %v1572, %v3829
        %v3877 = vmul.f32 %v1573, %v3829
        %v3878 = vmul.f32 %v1574, %v3829
        %v3879 = vmul.f32 %v1575, %v3829
        %v3880 = vmul.f32 %v1576, %v3829
        %v3881 = vmul.f32 %v1577, %v3829
        %v3882 = vmul.f32 %v1578, %v3829
        %v3883 = vmul.f32 %v1579, %v3829
        %v3884 = vmul.f32 %v1580, %v3829
        %v3885 = vmul.f32 %v1581, %v3829
        %v3886 = vmul.f32 %v1582, %v3829
        %v3887 = vadd.f32 %v3769, %v3831
        %v3888 = vadd.f32 %v3770, %v3832
        %v3889 = vadd.f32 %v3771, %v3833
        %v3890 = vadd.f32 %v3772, %v3834
        %v3891 = vadd.f32 %v3773, %v3835
        %v3892 = vadd.f32 %v3774, %v3836
        %v3893 = vadd.f32 %v3775, %v3837
        %v3894 = vadd.f32 %v3776, %v3838
        %v3895 = vadd.f32 %v3777, %v3839
        %v3896 = vadd.f32 %v3778, %v3840
        %v3897 = vadd.f32 %v3779, %v3841
        %v3898 = vadd.f32 %v3780, %v3842
        %v3899 = vadd.f32 %v3781, %v3843
        %v3900 = vadd.f32 %v3782, %v3844
        %v3901 = vadd.f32 %v3783, %v3845
        %v3902 = vadd.f32 %v3784, %v3846
        %v3903 = vadd.f32 %v3785, %v3847
        %v3904 = vadd.f32 %v3786, %v3848
        %v3905 = vadd.f32 %v3787, %v3849
        %v3906 = vadd.f32 %v3788, %v3850
        %v3907 = vadd.f32 %v3789, %v3851
        %v3908 = vadd.f32 %v3790, %v3852
        %v3909 = vadd.f32 %v3791, %v3853
        %v3910 = vadd.f32 %v3792, %v3854
        %v3911 = vadd.f32 %v3793, %v3855
        %v3912 = vadd.f32 %v3794, %v3856
        %v3913 = vadd.f32 %v3795, %v3857
        %v3914 = vadd.f32 %v3796, %v3858
        %v3915 = vadd.f32 %v3797, %v3859
        %v3916 = vadd.f32 %v3798, %v3860
        %v3917 = vadd.f32 %v3799, %v3861
        %v3918 = vadd.f32 %v3800, %v3862
        %v3919 = vadd.f32 %v3801, %v3863
        %v3920 = vadd.f32 %v3802, %v3864
        %v3921 = vadd.f32 %v3803, %v3865
        %v3922 = vadd.f32 %v3804, %v3866
        %v3923 = vadd.f32 %v3805, %v3867
        %v3924 = vadd.f32 %v3806, %v3868
        %v3925 = vadd.f32 %v3807, %v3869
        %v3926 = vadd.f32 %v3808, %v3870
        %v3927 = vadd.f32 %v3809, %v3871
        %v3928 = vadd.f32 %v3810, %v3872
        %v3929 = vadd.f32 %v3811, %v3873
        %v3930 = vadd.f32 %v3812, %v3874
        %v3931 = vadd.f32 %v3813, %v3875
        %v3932 = vadd.f32 %v3814, %v3876
        %v3933 = vadd.f32 %v3815, %v3877
        %v3934 = vadd.f32 %v3816, %v3878
        %v3935 = vadd.f32 %v3817, %v3879
        %v3936 = vadd.f32 %v3818, %v3880
        %v3937 = vadd.f32 %v3819, %v3881
        %v3938 = vadd.f32 %v3820, %v3882
        %v3939 = vadd.f32 %v3821, %v3883
        %v3940 = vadd.f32 %v3822, %v3884
        %v3941 = vadd.f32 %v3823, %v3885
        %v3942 = vadd.f32 %v3824, %v3886
        %v3944 = vlaneseq
        %v3945 = vshrl.u32 %v3944, 7
        %v3946 = vsub.s32 0, %v3945
        %v3947 = vrot.slane %v335, %v3946
        %v3949 = vmul.f32 %v470, %v3947
        %v3950 = vmul.f32 %v471, %v3947
        %v3951 = vmul.f32 %v472, %v3947
        %v3952 = vmul.f32 %v473, %v3947
        %v3953 = vmul.f32 %v474, %v3947
        %v3954 = vmul.f32 %v475, %v3947
        %v3955 = vmul.f32 %v476, %v3947
        %v3956 = vmul.f32 %v477, %v3947
        %v3957 = vmul.f32 %v478, %v3947
        %v3958 = vmul.f32 %v479, %v3947
        %v3959 = vmul.f32 %v480, %v3947
        %v3960 = vmul.f32 %v481, %v3947
        %v3961 = vmul.f32 %v482, %v3947
        %v3962 = vmul.f32 %v483, %v3947
        %v3963 = vmul.f32 %v484, %v3947
        %v3964 = vmul.f32 %v485, %v3947
        %v3965 = vmul.f32 %v486, %v3947
        %v3966 = vmul.f32 %v487, %v3947
        %v3967 = vmul.f32 %v488, %v3947
        %v3968 = vmul.f32 %v489, %v3947
        %v3969 = vmul.f32 %v490, %v3947
        %v3970 = vmul.f32 %v491, %v3947
        %v3971 = vmul.f32 %v492, %v3947
        %v3972 = vmul.f32 %v493, %v3947
        %v3973 = vmul.f32 %v494, %v3947
        %v3974 = vmul.f32 %v495, %v3947
        %v3975 = vmul.f32 %v496, %v3947
        %v3976 = vmul.f32 %v497, %v3947
        %v3977 = vmul.f32 %v532, %v3947
        %v3978 = vmul.f32 %v533, %v3947
        %v3979 = vmul.f32 %v534, %v3947
        %v3980 = vmul.f32 %v535, %v3947
        %v3981 = vmul.f32 %v536, %v3947
        %v3982 = vmul.f32 %v537, %v3947
        %v3983 = vmul.f32 %v538, %v3947
        %v3984 = vmul.f32 %v539, %v3947
        %v3985 = vmul.f32 %v540, %v3947
        %v3986 = vmul.f32 %v541, %v3947
        %v3987 = vmul.f32 %v542, %v3947
        %v3988 = vmul.f32 %v543, %v3947
        %v3989 = vmul.f32 %v544, %v3947
        %v3990 = vmul.f32 %v545, %v3947
        %v3991 = vmul.f32 %v546, %v3947
        %v3992 = vmul.f32 %v547, %v3947
        %v3993 = vmul.f32 %v548, %v3947
        %v3994 = vmul.f32 %v549, %v3947
        %v3995 = vmul.f32 %v550, %v3947
        %v3996 = vmul.f32 %v551, %v3947
        %v3997 = vmul.f32 %v552, %v3947
        %v3998 = vmul.f32 %v553, %v3947
        %v3999 = vmul.f32 %v554, %v3947
        %v4000 = vmul.f32 %v555, %v3947
        %v4001 = vmul.f32 %v556, %v3947
        %v4002 = vmul.f32 %v557, %v3947
        %v4003 = vmul.f32 %v558, %v3947
        %v4004 = vmul.f32 %v559, %v3947
        %v4005 = vadd.f32 %v3887, %v3949
        %v4006 = vadd.f32 %v3888, %v3950
        %v4007 = vadd.f32 %v3889, %v3951
        %v4008 = vadd.f32 %v3890, %v3952
        %v4009 = vadd.f32 %v3891, %v3953
        %v4010 = vadd.f32 %v3892, %v3954
        %v4011 = vadd.f32 %v3893, %v3955
        %v4012 = vadd.f32 %v3894, %v3956
        %v4013 = vadd.f32 %v3895, %v3957
        %v4014 = vadd.f32 %v3896, %v3958
        %v4015 = vadd.f32 %v3897, %v3959
        %v4016 = vadd.f32 %v3898, %v3960
        %v4017 = vadd.f32 %v3899, %v3961
        %v4018 = vadd.f32 %v3900, %v3962
        %v4019 = vadd.f32 %v3901, %v3963
        %v4020 = vadd.f32 %v3902, %v3964
        %v4021 = vadd.f32 %v3903, %v3965
        %v4022 = vadd.f32 %v3904, %v3966
        %v4023 = vadd.f32 %v3905, %v3967
        %v4024 = vadd.f32 %v3906, %v3968
        %v4025 = vadd.f32 %v3907, %v3969
        %v4026 = vadd.f32 %v3908, %v3970
        %v4027 = vadd.f32 %v3909, %v3971
        %v4028 = vadd.f32 %v3910, %v3972
        %v4029 = vadd.f32 %v3911, %v3973
        %v4030 = vadd.f32 %v3912, %v3974
        %v4031 = vadd.f32 %v3913, %v3975
        %v4032 = vadd.f32 %v3914, %v3976
        %v4033 = vadd.f32 %v3915, %v3977
        %v4034 = vadd.f32 %v3916, %v3978
        %v4035 = vadd.f32 %v3917, %v3979
        %v4036 = vadd.f32 %v3918, %v3980
        %v4037 = vadd.f32 %v3919, %v3981
        %v4038 = vadd.f32 %v3920, %v3982
        %v4039 = vadd.f32 %v3921, %v3983
        %v4040 = vadd.f32 %v3922, %v3984
        %v4041 = vadd.f32 %v3923, %v3985
        %v4042 = vadd.f32 %v3924, %v3986
        %v4043 = vadd.f32 %v3925, %v3987
        %v4044 = vadd.f32 %v3926, %v3988
        %v4045 = vadd.f32 %v3927, %v3989
        %v4046 = vadd.f32 %v3928, %v3990
        %v4047 = vadd.f32 %v3929, %v3991
        %v4048 = vadd.f32 %v3930, %v3992
        %v4049 = vadd.f32 %v3931, %v3993
        %v4050 = vadd.f32 %v3932, %v3994
        %v4051 = vadd.f32 %v3933, %v3995
        %v4052 = vadd.f32 %v3934, %v3996
        %v4053 = vadd.f32 %v3935, %v3997
        %v4054 = vadd.f32 %v3936, %v3998
        %v4055 = vadd.f32 %v3937, %v3999
        %v4056 = vadd.f32 %v3938, %v4000
        %v4057 = vadd.f32 %v3939, %v4001
        %v4058 = vadd.f32 %v3940, %v4002
        %v4059 = vadd.f32 %v3941, %v4003
        %v4060 = vadd.f32 %v3942, %v4004
        %v4062 = vlaneseq
        %v4063 = vshrl.u32 %v4062, 7
        %v4064 = vsub.s32 0, %v4063
        %v4065 = vrot.slane %v336, %v4064
        %v4067 = vmul.f32 %v719, %v4065
        %v4068 = vmul.f32 %v720, %v4065
        %v4069 = vmul.f32 %v721, %v4065
        %v4070 = vmul.f32 %v722, %v4065
        %v4071 = vmul.f32 %v723, %v4065
        %v4072 = vmul.f32 %v724, %v4065
        %v4073 = vmul.f32 %v725, %v4065
        %v4074 = vmul.f32 %v726, %v4065
        %v4075 = vmul.f32 %v727, %v4065
        %v4076 = vmul.f32 %v728, %v4065
        %v4077 = vmul.f32 %v729, %v4065
        %v4078 = vmul.f32 %v730, %v4065
        %v4079 = vmul.f32 %v731, %v4065
        %v4080 = vmul.f32 %v732, %v4065
        %v4081 = vmul.f32 %v733, %v4065
        %v4082 = vmul.f32 %v734, %v4065
        %v4083 = vmul.f32 %v735, %v4065
        %v4084 = vmul.f32 %v736, %v4065
        %v4085 = vmul.f32 %v737, %v4065
        %v4086 = vmul.f32 %v738, %v4065
        %v4087 = vmul.f32 %v739, %v4065
        %v4088 = vmul.f32 %v740, %v4065
        %v4089 = vmul.f32 %v741, %v4065
        %v4090 = vmul.f32 %v742, %v4065
        %v4091 = vmul.f32 %v743, %v4065
        %v4092 = vmul.f32 %v744, %v4065
        %v4093 = vmul.f32 %v745, %v4065
        %v4094 = vmul.f32 %v746, %v4065
        %v4095 = vmul.f32 %v781, %v4065
        %v4096 = vmul.f32 %v782, %v4065
        %v4097 = vmul.f32 %v783, %v4065
        %v4098 = vmul.f32 %v784, %v4065
        %v4099 = vmul.f32 %v785, %v4065
        %v4100 = vmul.f32 %v786, %v4065
        %v4101 = vmul.f32 %v787, %v4065
        %v4102 = vmul.f32 %v788, %v4065
        %v4103 = vmul.f32 %v789, %v4065
        %v4104 = vmul.f32 %v790, %v4065
        %v4105 = vmul.f32 %v791, %v4065
        %v4106 = vmul.f32 %v792, %v4065
        %v4107 = vmul.f32 %v793, %v4065
        %v4108 = vmul.f32 %v794, %v4065
        %v4109 = vmul.f32 %v795, %v4065
        %v4110 = vmul.f32 %v796, %v4065
        %v4111 = vmul.f32 %v797, %v4065
        %v4112 = vmul.f32 %v798, %v4065
        %v4113 = vmul.f32 %v799, %v4065
        %v4114 = vmul.f32 %v800, %v4065
        %v4115 = vmul.f32 %v801, %v4065
        %v4116 = vmul.f32 %v802, %v4065
        %v4117 = vmul.f32 %v803, %v4065
        %v4118 = vmul.f32 %v804, %v4065
        %v4119 = vmul.f32 %v805, %v4065
        %v4120 = vmul.f32 %v806, %v4065
        %v4121 = vmul.f32 %v807, %v4065
        %v4122 = vmul.f32 %v808, %v4065
        %v4123 = vadd.f32 %v4005, %v4067
        %v4124 = vadd.f32 %v4006, %v4068
        %v4125 = vadd.f32 %v4007, %v4069
        %v4126 = vadd.f32 %v4008, %v4070
        %v4127 = vadd.f32 %v4009, %v4071
        %v4128 = vadd.f32 %v4010, %v4072
        %v4129 = vadd.f32 %v4011, %v4073
        %v4130 = vadd.f32 %v4012, %v4074
        %v4131 = vadd.f32 %v4013, %v4075
        %v4132 = vadd.f32 %v4014, %v4076
        %v4133 = vadd.f32 %v4015, %v4077
        %v4134 = vadd.f32 %v4016, %v4078
        %v4135 = vadd.f32 %v4017, %v4079
        %v4136 = vadd.f32 %v4018, %v4080
        %v4137 = vadd.f32 %v4019, %v4081
        %v4138 = vadd.f32 %v4020, %v4082
        %v4139 = vadd.f32 %v4021, %v4083
        %v4140 = vadd.f32 %v4022, %v4084
        %v4141 = vadd.f32 %v4023, %v4085
        %v4142 = vadd.f32 %v4024, %v4086
        %v4143 = vadd.f32 %v4025, %v4087
        %v4144 = vadd.f32 %v4026, %v4088
        %v4145 = vadd.f32 %v4027, %v4089
        %v4146 = vadd.f32 %v4028, %v4090
        %v4147 = vadd.f32 %v4029, %v4091
        %v4148 = vadd.f32 %v4030, %v4092
        %v4149 = vadd.f32 %v4031, %v4093
        %v4150 = vadd.f32 %v4032, %v4094
        %v4151 = vadd.f32 %v4033, %v4095
        %v4152 = vadd.f32 %v4034, %v4096
        %v4153 = vadd.f32 %v4035, %v4097
        %v4154 = vadd.f32 %v4036, %v4098
        %v4155 = vadd.f32 %v4037, %v4099
        %v4156 = vadd.f32 %v4038, %v4100
        %v4157 = vadd.f32 %v4039, %v4101
        %v4158 = vadd.f32 %v4040, %v4102
        %v4159 = vadd.f32 %v4041, %v4103
        %v4160 = vadd.f32 %v4042, %v4104
        %v4161 = vadd.f32 %v4043, %v4105
        %v4162 = vadd.f32 %v4044, %v4106
        %v4163 = vadd.f32 %v4045, %v4107
        %v4164 = vadd.f32 %v4046, %v4108
        %v4165 = vadd.f32 %v4047, %v4109
        %v4166 = vadd.f32 %v4048, %v4110
        %v4167 = vadd.f32 %v4049, %v4111
        %v4168 = vadd.f32 %v4050, %v4112
        %v4169 = vadd.f32 %v4051, %v4113
        %v4170 = vadd.f32 %v4052, %v4114
        %v4171 = vadd.f32 %v4053, %v4115
        %v4172 = vadd.f32 %v4054, %v4116
        %v4173 = vadd.f32 %v4055, %v4117
        %v4174 = vadd.f32 %v4056, %v4118
        %v4175 = vadd.f32 %v4057, %v4119
        %v4176 = vadd.f32 %v4058, %v4120
        %v4177 = vadd.f32 %v4059, %v4121
        %v4178 = vadd.f32 %v4060, %v4122
        %v4180 = vlaneseq
        %v4181 = vshrl.u32 %v4180, 7
        %v4182 = vsub.s32 0, %v4181
        %v4183 = vrot.slane %v337, %v4182
        %v4185 = vmul.f32 %v967, %v4183
        %v4186 = vmul.f32 %v968, %v4183
        %v4187 = vmul.f32 %v969, %v4183
        %v4188 = vmul.f32 %v970, %v4183
        %v4189 = vmul.f32 %v971, %v4183
        %v4190 = vmul.f32 %v972, %v4183
        %v4191 = vmul.f32 %v973, %v4183
        %v4192 = vmul.f32 %v974, %v4183
        %v4193 = vmul.f32 %v975, %v4183
        %v4194 = vmul.f32 %v976, %v4183
        %v4195 = vmul.f32 %v977, %v4183
        %v4196 = vmul.f32 %v978, %v4183
        %v4197 = vmul.f32 %v979, %v4183
        %v4198 = vmul.f32 %v980, %v4183
        %v4199 = vmul.f32 %v981, %v4183
        %v4200 = vmul.f32 %v982, %v4183
        %v4201 = vmul.f32 %v983, %v4183
        %v4202 = vmul.f32 %v984, %v4183
        %v4203 = vmul.f32 %v985, %v4183
        %v4204 = vmul.f32 %v986, %v4183
        %v4205 = vmul.f32 %v987, %v4183
        %v4206 = vmul.f32 %v988, %v4183
        %v4207 = vmul.f32 %v989, %v4183
        %v4208 = vmul.f32 %v990, %v4183
        %v4209 = vmul.f32 %v991, %v4183
        %v4210 = vmul.f32 %v992, %v4183
        %v4211 = vmul.f32 %v993, %v4183
        %v4212 = vmul.f32 %v994, %v4183
        %v4213 = vmul.f32 %v1029, %v4183
        %v4214 = vmul.f32 %v1030, %v4183
        %v4215 = vmul.f32 %v1031, %v4183
        %v4216 = vmul.f32 %v1032, %v4183
        %v4217 = vmul.f32 %v1033, %v4183
        %v4218 = vmul.f32 %v1034, %v4183
        %v4219 = vmul.f32 %v1035, %v4183
        %v4220 = vmul.f32 %v1036, %v4183
        %v4221 = vmul.f32 %v1037, %v4183
        %v4222 = vmul.f32 %v1038, %v4183
        %v4223 = vmul.f32 %v1039, %v4183
        %v4224 = vmul.f32 %v1040, %v4183
        %v4225 = vmul.f32 %v1041, %v4183
        %v4226 = vmul.f32 %v1042, %v4183
        %v4227 = vmul.f32 %v1043, %v4183
        %v4228 = vmul.f32 %v1044, %v4183
        %v4229 = vmul.f32 %v1045, %v4183
        %v4230 = vmul.f32 %v1046, %v4183
        %v4231 = vmul.f32 %v1047, %v4183
        %v4232 = vmul.f32 %v1048, %v4183
        %v4233 = vmul.f32 %v1049, %v4183
        %v4234 = vmul.f32 %v1050, %v4183
        %v4235 = vmul.f32 %v1051, %v4183
        %v4236 = vmul.f32 %v1052, %v4183
        %v4237 = vmul.f32 %v1053, %v4183
        %v4238 = vmul.f32 %v1054, %v4183
        %v4239 = vmul.f32 %v1055, %v4183
        %v4240 = vmul.f32 %v1056, %v4183
        %v4241 = vadd.f32 %v4123, %v4185
        %v4242 = vadd.f32 %v4124, %v4186
        %v4243 = vadd.f32 %v4125, %v4187
        %v4244 = vadd.f32 %v4126, %v4188
        %v4245 = vadd.f32 %v4127, %v4189
        %v4246 = vadd.f32 %v4128, %v4190
        %v4247 = vadd.f32 %v4129, %v4191
        %v4248 = vadd.f32 %v4130, %v4192
        %v4249 = vadd.f32 %v4131, %v4193
        %v4250 = vadd.f32 %v4132, %v4194
        %v4251 = vadd.f32 %v4133, %v4195
        %v4252 = vadd.f32 %v4134, %v4196
        %v4253 = vadd.f32 %v4135, %v4197
        %v4254 = vadd.f32 %v4136, %v4198
        %v4255 = vadd.f32 %v4137, %v4199
        %v4256 = vadd.f32 %v4138, %v4200
        %v4257 = vadd.f32 %v4139, %v4201
        %v4258 = vadd.f32 %v4140, %v4202
        %v4259 = vadd.f32 %v4141, %v4203
        %v4260 = vadd.f32 %v4142, %v4204
        %v4261 = vadd.f32 %v4143, %v4205
        %v4262 = vadd.f32 %v4144, %v4206
        %v4263 = vadd.f32 %v4145, %v4207
        %v4264 = vadd.f32 %v4146, %v4208
        %v4265 = vadd.f32 %v4147, %v4209
        %v4266 = vadd.f32 %v4148, %v4210
        %v4267 = vadd.f32 %v4149, %v4211
        %v4268 = vadd.f32 %v4150, %v4212
        %v4269 = vadd.f32 %v4151, %v4213
        %v4270 = vadd.f32 %v4152, %v4214
        %v4271 = vadd.f32 %v4153, %v4215
        %v4272 = vadd.f32 %v4154, %v4216
        %v4273 = vadd.f32 %v4155, %v4217
        %v4274 = vadd.f32 %v4156, %v4218
        %v4275 = vadd.f32 %v4157, %v4219
        %v4276 = vadd.f32 %v4158, %v4220
        %v4277 = vadd.f32 %v4159, %v4221
        %v4278 = vadd.f32 %v4160, %v4222
        %v4279 = vadd.f32 %v4161, %v4223
        %v4280 = vadd.f32 %v4162, %v4224
        %v4281 = vadd.f32 %v4163, %v4225
        %v4282 = vadd.f32 %v4164, %v4226
        %v4283 = vadd.f32 %v4165, %v4227
        %v4284 = vadd.f32 %v4166, %v4228
        %v4285 = vadd.f32 %v4167, %v4229
        %v4286 = vadd.f32 %v4168, %v4230
        %v4287 = vadd.f32 %v4169, %v4231
        %v4288 = vadd.f32 %v4170, %v4232
        %v4289 = vadd.f32 %v4171, %v4233
        %v4290 = vadd.f32 %v4172, %v4234
        %v4291 = vadd.f32 %v4173, %v4235
        %v4292 = vadd.f32 %v4174, %v4236
        %v4293 = vadd.f32 %v4175, %v4237
        %v4294 = vadd.f32 %v4176, %v4238
        %v4295 = vadd.f32 %v4177, %v4239
        %v4296 = vadd.f32 %v4178, %v4240
        %v4298 = vlaneseq
        %v4299 = vshrl.u32 %v4298, 7
        %v4300 = vsub.s32 0, %v4299
        %v4301 = vrot.slane %v338, %v4300
        %v4303 = vmul.f32 %v1215, %v4301
        %v4304 = vmul.f32 %v1216, %v4301
        %v4305 = vmul.f32 %v1217, %v4301
        %v4306 = vmul.f32 %v1218, %v4301
        %v4307 = vmul.f32 %v1219, %v4301
        %v4308 = vmul.f32 %v1220, %v4301
        %v4309 = vmul.f32 %v1221, %v4301
        %v4310 = vmul.f32 %v1222, %v4301
        %v4311 = vmul.f32 %v1223, %v4301
        %v4312 = vmul.f32 %v1224, %v4301
        %v4313 = vmul.f32 %v1225, %v4301
        %v4314 = vmul.f32 %v1226, %v4301
        %v4315 = vmul.f32 %v1227, %v4301
        %v4316 = vmul.f32 %v1228, %v4301
        %v4317 = vmul.f32 %v1229, %v4301
        %v4318 = vmul.f32 %v1230, %v4301
        %v4319 = vmul.f32 %v1231, %v4301
        %v4320 = vmul.f32 %v1232, %v4301
        %v4321 = vmul.f32 %v1233, %v4301
        %v4322 = vmul.f32 %v1234, %v4301
        %v4323 = vmul.f32 %v1235, %v4301
        %v4324 = vmul.f32 %v1236, %v4301
        %v4325 = vmul.f32 %v1237, %v4301
        %v4326 = vmul.f32 %v1238, %v4301
        %v4327 = vmul.f32 %v1239, %v4301
        %v4328 = vmul.f32 %v1240, %v4301
        %v4329 = vmul.f32 %v1241, %v4301
        %v4330 = vmul.f32 %v1242, %v4301
        %v4331 = vmul.f32 %v1277, %v4301
        %v4332 = vmul.f32 %v1278, %v4301
        %v4333 = vmul.f32 %v1279, %v4301
        %v4334 = vmul.f32 %v1280, %v4301
        %v4335 = vmul.f32 %v1281, %v4301
        %v4336 = vmul.f32 %v1282, %v4301
        %v4337 = vmul.f32 %v1283, %v4301
        %v4338 = vmul.f32 %v1284, %v4301
        %v4339 = vmul.f32 %v1285, %v4301
        %v4340 = vmul.f32 %v1286, %v4301
        %v4341 = vmul.f32 %v1287, %v4301
        %v4342 = vmul.f32 %v1288, %v4301
        %v4343 = vmul.f32 %v1289, %v4301
        %v4344 = vmul.f32 %v1290, %v4301
        %v4345 = vmul.f32 %v1291, %v4301
        %v4346 = vmul.f32 %v1292, %v4301
        %v4347 = vmul.f32 %v1293, %v4301
        %v4348 = vmul.f32 %v1294, %v4301
        %v4349 = vmul.f32 %v1295, %v4301
        %v4350 = vmul.f32 %v1296, %v4301
        %v4351 = vmul.f32 %v1297, %v4301
        %v4352 = vmul.f32 %v1298, %v4301
        %v4353 = vmul.f32 %v1299, %v4301
        %v4354 = vmul.f32 %v1300, %v4301
        %v4355 = vmul.f32 %v1301, %v4301
        %v4356 = vmul.f32 %v1302, %v4301
        %v4357 = vmul.f32 %v1303, %v4301
        %v4358 = vmul.f32 %v1304, %v4301
        %v4359 = vadd.f32 %v4241, %v4303
        %v4360 = vadd.f32 %v4242, %v4304
        %v4361 = vadd.f32 %v4243, %v4305
        %v4362 = vadd.f32 %v4244, %v4306
        %v4363 = vadd.f32 %v4245, %v4307
        %v4364 = vadd.f32 %v4246, %v4308
        %v4365 = vadd.f32 %v4247, %v4309
        %v4366 = vadd.f32 %v4248, %v4310
        %v4367 = vadd.f32 %v4249, %v4311
        %v4368 = vadd.f32 %v4250, %v4312
        %v4369 = vadd.f32 %v4251, %v4313
        %v4370 = vadd.f32 %v4252, %v4314
        %v4371 = vadd.f32 %v4253, %v4315
        %v4372 = vadd.f32 %v4254, %v4316
        %v4373 = vadd.f32 %v4255, %v4317
        %v4374 = vadd.f32 %v4256, %v4318
        %v4375 = vadd.f32 %v4257, %v4319
        %v4376 = vadd.f32 %v4258, %v4320
        %v4377 = vadd.f32 %v4259, %v4321
        %v4378 = vadd.f32 %v4260, %v4322
        %v4379 = vadd.f32 %v4261, %v4323
        %v4380 = vadd.f32 %v4262, %v4324
        %v4381 = vadd.f32 %v4263, %v4325
        %v4382 = vadd.f32 %v4264, %v4326
        %v4383 = vadd.f32 %v4265, %v4327
        %v4384 = vadd.f32 %v4266, %v4328
        %v4385 = vadd.f32 %v4267, %v4329
        %v4386 = vadd.f32 %v4268, %v4330
        %v4387 = vadd.f32 %v4269, %v4331
        %v4388 = vadd.f32 %v4270, %v4332
        %v4389 = vadd.f32 %v4271, %v4333
        %v4390 = vadd.f32 %v4272, %v4334
        %v4391 = vadd.f32 %v4273, %v4335
        %v4392 = vadd.f32 %v4274, %v4336
        %v4393 = vadd.f32 %v4275, %v4337
        %v4394 = vadd.f32 %v4276, %v4338
        %v4395 = vadd.f32 %v4277, %v4339
        %v4396 = vadd.f32 %v4278, %v4340
        %v4397 = vadd.f32 %v4279, %v4341
        %v4398 = vadd.f32 %v4280, %v4342
        %v4399 = vadd.f32 %v4281, %v4343
        %v4400 = vadd.f32 %v4282, %v4344
        %v4401 = vadd.f32 %v4283, %v4345
        %v4402 = vadd.f32 %v4284, %v4346
        %v4403 = vadd.f32 %v4285, %v4347
        %v4404 = vadd.f32 %v4286, %v4348
        %v4405 = vadd.f32 %v4287, %v4349
        %v4406 = vadd.f32 %v4288, %v4350
        %v4407 = vadd.f32 %v4289, %v4351
        %v4408 = vadd.f32 %v4290, %v4352
        %v4409 = vadd.f32 %v4291, %v4353
        %v4410 = vadd.f32 %v4292, %v4354
        %v4411 = vadd.f32 %v4293, %v4355
        %v4412 = vadd.f32 %v4294, %v4356
        %v4413 = vadd.f32 %v4295, %v4357
        %v4414 = vadd.f32 %v4296, %v4358
        %v4416 = vlaneseq
        %v4417 = vshrl.u32 %v4416, 7
        %v4418 = vsub.s32 0, %v4417
        %v4419 = vrot.slane %v339, %v4418
        %v4421 = vmul.f32 %v1463, %v4419
        %v4422 = vmul.f32 %v1464, %v4419
        %v4423 = vmul.f32 %v1465, %v4419
        %v4424 = vmul.f32 %v1466, %v4419
        %v4425 = vmul.f32 %v1467, %v4419
        %v4426 = vmul.f32 %v1468, %v4419
        %v4427 = vmul.f32 %v1469, %v4419
        %v4428 = vmul.f32 %v1470, %v4419
        %v4429 = vmul.f32 %v1471, %v4419
        %v4430 = vmul.f32 %v1472, %v4419
        %v4431 = vmul.f32 %v1473, %v4419
        %v4432 = vmul.f32 %v1474, %v4419
        %v4433 = vmul.f32 %v1475, %v4419
        %v4434 = vmul.f32 %v1476, %v4419
        %v4435 = vmul.f32 %v1477, %v4419
        %v4436 = vmul.f32 %v1478, %v4419
        %v4437 = vmul.f32 %v1479, %v4419
        %v4438 = vmul.f32 %v1480, %v4419
        %v4439 = vmul.f32 %v1481, %v4419
        %v4440 = vmul.f32 %v1482, %v4419
        %v4441 = vmul.f32 %v1483, %v4419
        %v4442 = vmul.f32 %v1484, %v4419
        %v4443 = vmul.f32 %v1485, %v4419
        %v4444 = vmul.f32 %v1486, %v4419
        %v4445 = vmul.f32 %v1487, %v4419
        %v4446 = vmul.f32 %v1488, %v4419
        %v4447 = vmul.f32 %v1489, %v4419
        %v4448 = vmul.f32 %v1490, %v4419
        %v4449 = vmul.f32 %v1525, %v4419
        %v4450 = vmul.f32 %v1526, %v4419
        %v4451 = vmul.f32 %v1527, %v4419
        %v4452 = vmul.f32 %v1528, %v4419
        %v4453 = vmul.f32 %v1529, %v4419
        %v4454 = vmul.f32 %v1530, %v4419
        %v4455 = vmul.f32 %v1531, %v4419
        %v4456 = vmul.f32 %v1532, %v4419
        %v4457 = vmul.f32 %v1533, %v4419
        %v4458 = vmul.f32 %v1534, %v4419
        %v4459 = vmul.f32 %v1535, %v4419
        %v4460 = vmul.f32 %v1536, %v4419
        %v4461 = vmul.f32 %v1537, %v4419
        %v4462 = vmul.f32 %v1538, %v4419
        %v4463 = vmul.f32 %v1539, %v4419
        %v4464 = vmul.f32 %v1540, %v4419
        %v4465 = vmul.f32 %v1541, %v4419
        %v4466 = vmul.f32 %v1542, %v4419
        %v4467 = vmul.f32 %v1543, %v4419
        %v4468 = vmul.f32 %v1544, %v4419
        %v4469 = vmul.f32 %v1545, %v4419
        %v4470 = vmul.f32 %v1546, %v4419
        %v4471 = vmul.f32 %v1547, %v4419
        %v4472 = vmul.f32 %v1548, %v4419
        %v4473 = vmul.f32 %v1549, %v4419
        %v4474 = vmul.f32 %v1550, %v4419
        %v4475 = vmul.f32 %v1551, %v4419
        %v4476 = vmul.f32 %v1552, %v4419
        %v4477 = vadd.f32 %v4359, %v4421
        %v4478 = vadd.f32 %v4360, %v4422
        %v4479 = vadd.f32 %v4361, %v4423
        %v4480 = vadd.f32 %v4362, %v4424
        %v4481 = vadd.f32 %v4363, %v4425
        %v4482 = vadd.f32 %v4364, %v4426
        %v4483 = vadd.f32 %v4365, %v4427
        %v4484 = vadd.f32 %v4366, %v4428
        %v4485 = vadd.f32 %v4367, %v4429
        %v4486 = vadd.f32 %v4368, %v4430
        %v4487 = vadd.f32 %v4369, %v4431
        %v4488 = vadd.f32 %v4370, %v4432
        %v4489 = vadd.f32 %v4371, %v4433
        %v4490 = vadd.f32 %v4372, %v4434
        %v4491 = vadd.f32 %v4373, %v4435
        %v4492 = vadd.f32 %v4374, %v4436
        %v4493 = vadd.f32 %v4375, %v4437
        %v4494 = vadd.f32 %v4376, %v4438
        %v4495 = vadd.f32 %v4377, %v4439
        %v4496 = vadd.f32 %v4378, %v4440
        %v4497 = vadd.f32 %v4379, %v4441
        %v4498 = vadd.f32 %v4380, %v4442
        %v4499 = vadd.f32 %v4381, %v4443
        %v4500 = vadd.f32 %v4382, %v4444
        %v4501 = vadd.f32 %v4383, %v4445
        %v4502 = vadd.f32 %v4384, %v4446
        %v4503 = vadd.f32 %v4385, %v4447
        %v4504 = vadd.f32 %v4386, %v4448
        %v4505 = vadd.f32 %v4387, %v4449
        %v4506 = vadd.f32 %v4388, %v4450
        %v4507 = vadd.f32 %v4389, %v4451
        %v4508 = vadd.f32 %v4390, %v4452
        %v4509 = vadd.f32 %v4391, %v4453
        %v4510 = vadd.f32 %v4392, %v4454
        %v4511 = vadd.f32 %v4393, %v4455
        %v4512 = vadd.f32 %v4394, %v4456
        %v4513 = vadd.f32 %v4395, %v4457
        %v4514 = vadd.f32 %v4396, %v4458
        %v4515 = vadd.f32 %v4397, %v4459
        %v4516 = vadd.f32 %v4398, %v4460
        %v4517 = vadd.f32 %v4399, %v4461
        %v4518 = vadd.f32 %v4400, %v4462
        %v4519 = vadd.f32 %v4401, %v4463
        %v4520 = vadd.f32 %v4402, %v4464
        %v4521 = vadd.f32 %v4403, %v4465
        %v4522 = vadd.f32 %v4404, %v4466
        %v4523 = vadd.f32 %v4405, %v4467
        %v4524 = vadd.f32 %v4406, %v4468
        %v4525 = vadd.f32 %v4407, %v4469
        %v4526 = vadd.f32 %v4408, %v4470
        %v4527 = vadd.f32 %v4409, %v4471
        %v4528 = vadd.f32 %v4410, %v4472
        %v4529 = vadd.f32 %v4411, %v4473
        %v4530 = vadd.f32 %v4412, %v4474
        %v4531 = vadd.f32 %v4413, %v4475
        %v4532 = vadd.f32 %v4414, %v4476
        %v4534 = vlaneseq
        %v4535 = vshrl.u32 %v4534, 7
        %v4536 = vsub.s32 0, %v4535
        %v4537 = vrot.slane %v340, %v4536
        %v4539 = vmul.f32 %v4477, %v4537
        %v4540 = vmul.f32 %v4478, %v4537
        %v4541 = vmul.f32 %v4479, %v4537
        %v4542 = vmul.f32 %v4480, %v4537
        %v4543 = vmul.f32 %v4481, %v4537
        %v4544 = vmul.f32 %v4482, %v4537
        %v4545 = vmul.f32 %v4483, %v4537
        %v4546 = vmul.f32 %v4484, %v4537
        %v4547 = vmul.f32 %v4485, %v4537
        %v4548 = vmul.f32 %v4486, %v4537
        %v4549 = vmul.f32 %v4487, %v4537
        %v4550 = vmul.f32 %v4488, %v4537
        %v4551 = vmul.f32 %v4489, %v4537
        %v4552 = vmul.f32 %v4490, %v4537
        %v4553 = vmul.f32 %v4491, %v4537
        %v4554 = vmul.f32 %v4492, %v4537
        %v4555 = vmul.f32 %v4493, %v4537
        %v4556 = vmul.f32 %v4494, %v4537
        %v4557 = vmul.f32 %v4495, %v4537
        %v4558 = vmul.f32 %v4496, %v4537
        %v4559 = vmul.f32 %v4497, %v4537
        %v4560 = vmul.f32 %v4498, %v4537
        %v4561 = vmul.f32 %v4499, %v4537
        %v4562 = vmul.f32 %v4500, %v4537
        %v4563 = vmul.f32 %v4501, %v4537
        %v4564 = vmul.f32 %v4502, %v4537
        %v4565 = vmul.f32 %v4503, %v4537
        %v4566 = vmul.f32 %v4504, %v4537
        %v4567 = vmul.f32 %v4505, %v4537
        %v4568 = vmul.f32 %v4506, %v4537
        %v4569 = vmul.f32 %v4507, %v4537
        %v4570 = vmul.f32 %v4508, %v4537
        %v4571 = vmul.f32 %v4509, %v4537
        %v4572 = vmul.f32 %v4510, %v4537
        %v4573 = vmul.f32 %v4511, %v4537
        %v4574 = vmul.f32 %v4512, %v4537
        %v4575 = vmul.f32 %v4513, %v4537
        %v4576 = vmul.f32 %v4514, %v4537
        %v4577 = vmul.f32 %v4515, %v4537
        %v4578 = vmul.f32 %v4516, %v4537
        %v4579 = vmul.f32 %v4517, %v4537
        %v4580 = vmul.f32 %v4518, %v4537
        %v4581 = vmul.f32 %v4519, %v4537
        %v4582 = vmul.f32 %v4520, %v4537
        %v4583 = vmul.f32 %v4521, %v4537
        %v4584 = vmul.f32 %v4522, %v4537
        %v4585 = vmul.f32 %v4523, %v4537
        %v4586 = vmul.f32 %v4524, %v4537
        %v4587 = vmul.f32 %v4525, %v4537
        %v4588 = vmul.f32 %v4526, %v4537
        %v4589 = vmul.f32 %v4527, %v4537
        %v4590 = vmul.f32 %v4528, %v4537
        %v4591 = vmul.f32 %v4529, %v4537
        %v4592 = vmul.f32 %v4530, %v4537
        %v4593 = vmul.f32 %v4531, %v4537
        %v4594 = vmul.f32 %v4532, %v4537
        %v4596 = vlaneseq
        %v4597 = vshrl.u32 %v4596, 7
        %v4598 = vsub.s32 0, %v4597
        %v4599 = vrot.slane %v341, %v4598
        %v4601 = vadd.f32 %v4539, %v4599
        %v4602 = vadd.f32 %v4540, %v4599
        %v4603 = vadd.f32 %v4541, %v4599
        %v4604 = vadd.f32 %v4542, %v4599
        %v4605 = vadd.f32 %v4543, %v4599
        %v4606 = vadd.f32 %v4544, %v4599
        %v4607 = vadd.f32 %v4545, %v4599
        %v4608 = vadd.f32 %v4546, %v4599
        %v4609 = vadd.f32 %v4547, %v4599
        %v4610 = vadd.f32 %v4548, %v4599
        %v4611 = vadd.f32 %v4549, %v4599
        %v4612 = vadd.f32 %v4550, %v4599
        %v4613 = vadd.f32 %v4551, %v4599
        %v4614 = vadd.f32 %v4552, %v4599
        %v4615 = vadd.f32 %v4553, %v4599
        %v4616 = vadd.f32 %v4554, %v4599
        %v4617 = vadd.f32 %v4555, %v4599
        %v4618 = vadd.f32 %v4556, %v4599
        %v4619 = vadd.f32 %v4557, %v4599
        %v4620 = vadd.f32 %v4558, %v4599
        %v4621 = vadd.f32 %v4559, %v4599
        %v4622 = vadd.f32 %v4560, %v4599
        %v4623 = vadd.f32 %v4561, %v4599
        %v4624 = vadd.f32 %v4562, %v4599
        %v4625 = vadd.f32 %v4563, %v4599
        %v4626 = vadd.f32 %v4564, %v4599
        %v4627 = vadd.f32 %v4565, %v4599
        %v4628 = vadd.f32 %v4566, %v4599
        %v4629 = vadd.f32 %v4567, %v4599
        %v4630 = vadd.f32 %v4568, %v4599
        %v4631 = vadd.f32 %v4569, %v4599
        %v4632 = vadd.f32 %v4570, %v4599
        %v4633 = vadd.f32 %v4571, %v4599
        %v4634 = vadd.f32 %v4572, %v4599
        %v4635 = vadd.f32 %v4573, %v4599
        %v4636 = vadd.f32 %v4574, %v4599
        %v4637 = vadd.f32 %v4575, %v4599
        %v4638 = vadd.f32 %v4576, %v4599
        %v4639 = vadd.f32 %v4577, %v4599
        %v4640 = vadd.f32 %v4578, %v4599
        %v4641 = vadd.f32 %v4579, %v4599
        %v4642 = vadd.f32 %v4580, %v4599
        %v4643 = vadd.f32 %v4581, %v4599
        %v4644 = vadd.f32 %v4582, %v4599
        %v4645 = vadd.f32 %v4583, %v4599
        %v4646 = vadd.f32 %v4584, %v4599
        %v4647 = vadd.f32 %v4585, %v4599
        %v4648 = vadd.f32 %v4586, %v4599
        %v4649 = vadd.f32 %v4587, %v4599
        %v4650 = vadd.f32 %v4588, %v4599
        %v4651 = vadd.f32 %v4589, %v4599
        %v4652 = vadd.f32 %v4590, %v4599
        %v4653 = vadd.f32 %v4591, %v4599
        %v4654 = vadd.f32 %v4592, %v4599
        %v4655 = vadd.f32 %v4593, %v4599
        %v4656 = vadd.f32 %v4594, %v4599
        %v4657 = vmax.f32 %v4601, 0.0
        %v4658 = vmax.f32 %v4602, 0.0
        %v4659 = vmax.f32 %v4603, 0.0
        %v4660 = vmax.f32 %v4604, 0.0
        %v4661 = vmax.f32 %v4605, 0.0
        %v4662 = vmax.f32 %v4606, 0.0
        %v4663 = vmax.f32 %v4607, 0.0
        %v4664 = vmax.f32 %v4608, 0.0
        %v4665 = vmax.f32 %v4609, 0.0
        %v4666 = vmax.f32 %v4610, 0.0
        %v4667 = vmax.f32 %v4611, 0.0
        %v4668 = vmax.f32 %v4612, 0.0
        %v4669 = vmax.f32 %v4613, 0.0
        %v4670 = vmax.f32 %v4614, 0.0
        %v4671 = vmax.f32 %v4615, 0.0
        %v4672 = vmax.f32 %v4616, 0.0
        %v4673 = vmax.f32 %v4617, 0.0
        %v4674 = vmax.f32 %v4618, 0.0
        %v4675 = vmax.f32 %v4619, 0.0
        %v4676 = vmax.f32 %v4620, 0.0
        %v4677 = vmax.f32 %v4621, 0.0
        %v4678 = vmax.f32 %v4622, 0.0
        %v4679 = vmax.f32 %v4623, 0.0
        %v4680 = vmax.f32 %v4624, 0.0
        %v4681 = vmax.f32 %v4625, 0.0
        %v4682 = vmax.f32 %v4626, 0.0
        %v4683 = vmax.f32 %v4627, 0.0
        %v4684 = vmax.f32 %v4628, 0.0
        %v4685 = vmax.f32 %v4629, 0.0
        %v4686 = vmax.f32 %v4630, 0.0
        %v4687 = vmax.f32 %v4631, 0.0
        %v4688 = vmax.f32 %v4632, 0.0
        %v4689 = vmax.f32 %v4633, 0.0
        %v4690 = vmax.f32 %v4634, 0.0
        %v4691 = vmax.f32 %v4635, 0.0
        %v4692 = vmax.f32 %v4636, 0.0
        %v4693 = vmax.f32 %v4637, 0.0
        %v4694 = vmax.f32 %v4638, 0.0
        %v4695 = vmax.f32 %v4639, 0.0
        %v4696 = vmax.f32 %v4640, 0.0
        %v4697 = vmax.f32 %v4641, 0.0
        %v4698 = vmax.f32 %v4642, 0.0
        %v4699 = vmax.f32 %v4643, 0.0
        %v4700 = vmax.f32 %v4644, 0.0
        %v4701 = vmax.f32 %v4645, 0.0
        %v4702 = vmax.f32 %v4646, 0.0
        %v4703 = vmax.f32 %v4647, 0.0
        %v4704 = vmax.f32 %v4648, 0.0
        %v4705 = vmax.f32 %v4649, 0.0
        %v4706 = vmax.f32 %v4650, 0.0
        %v4707 = vmax.f32 %v4651, 0.0
        %v4708 = vmax.f32 %v4652, 0.0
        %v4709 = vmax.f32 %v4653, 0.0
        %v4710 = vmax.f32 %v4654, 0.0
        %v4711 = vmax.f32 %v4655, 0.0
        %v4712 = vmax.f32 %v4656, 0.0
        %4713 = vst [vmem:[%s314] sm:$0xff] %v4657
        %4714 = vst [vmem:[%s314 + $0x8] sm:$0x3f] %v4658
        %4715 = vst [vmem:[%s314 + $0x10] sm:$0xff] %v4659
        %4716 = vst [vmem:[%s314 + $0x18] sm:$0x3f] %v4660
        %4717 = vst [vmem:[%s314 + $0x20] sm:$0xff] %v4661
        %4718 = vst [vmem:[%s314 + $0x28] sm:$0x3f] %v4662
        %4719 = vst [vmem:[%s314 + $0x30] sm:$0xff] %v4663
        %4720 = vst [vmem:[%s314 + $0x38] sm:$0x3f] %v4664
        %4721 = vst [vmem:[%s314 + $0x40] sm:$0xff] %v4665
        %4722 = vst [vmem:[%s314 + $0x48] sm:$0x3f] %v4666
        %4723 = vst [vmem:[%s314 + $0x50] sm:$0xff] %v4667
        %4724 = vst [vmem:[%s314 + $0x58] sm:$0x3f] %v4668
        %4725 = vst [vmem:[%s314 + $0x60] sm:$0xff] %v4669
        %4726 = vst [vmem:[%s314 + $0x68] sm:$0x3f] %v4670
        %4727 = vst [vmem:[%s314 + $0x70] sm:$0xff] %v4671
        %4728 = vst [vmem:[%s314 + $0x78] sm:$0x3f] %v4672
        %4729 = vst [vmem:[%s314 + $0x80] sm:$0xff] %v4673
        %4730 = vst [vmem:[%s314 + $0x88] sm:$0x3f] %v4674
        %4731 = vst [vmem:[%s314 + $0x90] sm:$0xff] %v4675
        %4732 = vst [vmem:[%s314 + $0x98] sm:$0x3f] %v4676
        %4733 = vst [vmem:[%s314 + $0xa0] sm:$0xff] %v4677
        %4734 = vst [vmem:[%s314 + $0xa8] sm:$0x3f] %v4678
        %4735 = vst [vmem:[%s314 + $0xb0] sm:$0xff] %v4679
        %4736 = vst [vmem:[%s314 + $0xb8] sm:$0x3f] %v4680
        %4737 = vst [vmem:[%s314 + $0xc0] sm:$0xff] %v4681
        %4738 = vst [vmem:[%s314 + $0xc8] sm:$0x3f] %v4682
        %4739 = vst [vmem:[%s314 + $0xd0] sm:$0xff] %v4683
        %4740 = vst [vmem:[%s314 + $0xd8] sm:$0x3f] %v4684
        %4741 = vst [vmem:[%s314 + $0xe0] sm:$0xff] %v4685
        %4742 = vst [vmem:[%s314 + $0xe8] sm:$0x3f] %v4686
        %4743 = vst [vmem:[%s314 + $0xf0] sm:$0xff] %v4687
        %4744 = vst [vmem:[%s314 + $0xf8] sm:$0x3f] %v4688
        %4745 = vst [vmem:[%s314 + $0x100] sm:$0xff] %v4689
        %4746 = vst [vmem:[%s314 + $0x108] sm:$0x3f] %v4690
        %4747 = vst [vmem:[%s314 + $0x110] sm:$0xff] %v4691
        %4748 = vst [vmem:[%s314 + $0x118] sm:$0x3f] %v4692
        %4749 = vst [vmem:[%s314 + $0x120] sm:$0xff] %v4693
        %4750 = vst [vmem:[%s314 + $0x128] sm:$0x3f] %v4694
        %4751 = vst [vmem:[%s314 + $0x130] sm:$0xff] %v4695
        %4752 = vst [vmem:[%s314 + $0x138] sm:$0x3f] %v4696
        %4753 = vst [vmem:[%s314 + $0x140] sm:$0xff] %v4697
        %4754 = vst [vmem:[%s314 + $0x148] sm:$0x3f] %v4698
        %4755 = vst [vmem:[%s314 + $0x150] sm:$0xff] %v4699
        %4756 = vst [vmem:[%s314 + $0x158] sm:$0x3f] %v4700
        %4757 = vst [vmem:[%s314 + $0x160] sm:$0xff] %v4701
        %4758 = vst [vmem:[%s314 + $0x168] sm:$0x3f] %v4702
        %4759 = vst [vmem:[%s314 + $0x170] sm:$0xff] %v4703
        %4760 = vst [vmem:[%s314 + $0x178] sm:$0x3f] %v4704
        %4761 = vst [vmem:[%s314 + $0x180] sm:$0xff] %v4705
        %4762 = vst [vmem:[%s314 + $0x188] sm:$0x3f] %v4706
        %4763 = vst [vmem:[%s314 + $0x190] sm:$0xff] %v4707
        %4764 = vst [vmem:[%s314 + $0x198] sm:$0x3f] %v4708
        %4765 = vst [vmem:[%s314 + $0x1a0] sm:$0xff] %v4709
        %4766 = vst [vmem:[%s314 + $0x1a8] sm:$0x3f] %v4710
        %4767 = vst [vmem:[%s314 + $0x1b0] sm:$0xff] %v4711
        %4768 = vst [vmem:[%s314 + $0x1b8] sm:$0x3f] %v4712
        %s4769 = sand.u32 %s136, 1
        %s4770 = sand.u32 %s136, 1
        %s4771 = smul.addr %s4770, 448
        %s4772 = scalar_lea.vmem [#allocation9], %s4771
        // Predicated region
        $region53: #{tpu_custom_call.1} parent=35 // pred_check
          %p4773 = pneg %p146
        $region54: #{tpu_custom_call.1} parent=35 // pred_check_branch
          %4775 = sbr.rel (%p4773) target = $region56
        $region55: #{tpu_custom_call.1} parent=35 // pred_region
          %s4776 = smul.addr %s24, 8
          %s4777 = scalar_lea.vmem %s4, %s4776
          // Predicated region
          $region57: #{tpu_custom_call.1} parent=55 // pred_check
            _
          $region58: #{tpu_custom_call.1} parent=55 // pred_check_branch
            %4779 = sbr.rel (0) target = $region60
          $region59: #{tpu_custom_call.1} parent=55 // pred_region
            // Predicated region
            $region61: #{tpu_custom_call.1} parent=59 // pred_check
              _
            $region62: #{tpu_custom_call.1} parent=59 // pred_check_branch
              %4781 = sbr.rel (0) target = $region64
            $region63: #{tpu_custom_call.1} parent=59 // pred_region
              // Predicated region
              $region76: #{tpu_custom_call.1} parent=63 // pred_check
                _
              $region77: #{tpu_custom_call.1} parent=63 // pred_check_branch
                %4907 = sbr.rel (0) target = $region79
              $region78: #{tpu_custom_call.1} parent=63 // pred_region
                loop: start=0, step=1, limit=1
                $region80: #{tpu_custom_call.1} parent=78 // loop_pre_header
                  _
                $region81: #{tpu_custom_call.1} parent=78 // loop_header
                  %s4909 = sphi 0, %s4913
                  %p4910 = scmp.ge.s32.totalorder %s4909, 1
                  %s4914 = sphi %s4772, %s4772
                  %s4915 = sphi %s4777, %s4777
                $region82: #{tpu_custom_call.1} parent=78 // loop_header_branch
                  %4912 = sbr.rel (%p4910) target = $region86
                $region83: #{tpu_custom_call.1} parent=78 // loop_body
                  %v4916 = vld [vmem:[%s4914] sm:$0xff]
                  %4917 = vst [vmem:[%s4915] sm:$0xff] %v4916
                  %v4918 = vld [vmem:[%s4914 + $0x8] sm:$0xff]
                  %4919 = vst [vmem:[%s4915 + $0x10] sm:$0xff] %v4918
                  %v4920 = vld [vmem:[%s4914 + $0x10] sm:$0xff]
                  %4921 = vst [vmem:[%s4915 + $0x20] sm:$0xff] %v4920
                  %v4922 = vld [vmem:[%s4914 + $0x18] sm:$0xff]
                  %4923 = vst [vmem:[%s4915 + $0x30] sm:$0xff] %v4922
                  %v4924 = vld [vmem:[%s4914 + $0x20] sm:$0xff]
                  %4925 = vst [vmem:[%s4915 + $0x40] sm:$0xff] %v4924
                  %v4926 = vld [vmem:[%s4914 + $0x28] sm:$0xff]
                  %4927 = vst [vmem:[%s4915 + $0x50] sm:$0xff] %v4926
                  %v4928 = vld [vmem:[%s4914 + $0x30] sm:$0xff]
                  %4929 = vst [vmem:[%s4915 + $0x60] sm:$0xff] %v4928
                  %v4930 = vld [vmem:[%s4914 + $0x38] sm:$0xff]
                  %4931 = vst [vmem:[%s4915 + $0x70] sm:$0xff] %v4930
                  %v4932 = vld [vmem:[%s4914 + $0x40] sm:$0xff]
                  %4933 = vst [vmem:[%s4915 + $0x80] sm:$0xff] %v4932
                  %v4934 = vld [vmem:[%s4914 + $0x48] sm:$0xff]
                  %4935 = vst [vmem:[%s4915 + $0x90] sm:$0xff] %v4934
                  %v4936 = vld [vmem:[%s4914 + $0x50] sm:$0xff]
                  %4937 = vst [vmem:[%s4915 + $0xa0] sm:$0xff] %v4936
                  %v4938 = vld [vmem:[%s4914 + $0x58] sm:$0xff]
                  %4939 = vst [vmem:[%s4915 + $0xb0] sm:$0xff] %v4938
                  %v4940 = vld [vmem:[%s4914 + $0x60] sm:$0xff]
                  %4941 = vst [vmem:[%s4915 + $0xc0] sm:$0xff] %v4940
                  %v4942 = vld [vmem:[%s4914 + $0x68] sm:$0xff]
                  %4943 = vst [vmem:[%s4915 + $0xd0] sm:$0xff] %v4942
                  %v4944 = vld [vmem:[%s4914 + $0x70] sm:$0xff]
                  %4945 = vst [vmem:[%s4915 + $0xe0] sm:$0xff] %v4944
                  %v4946 = vld [vmem:[%s4914 + $0x78] sm:$0xff]
                  %4947 = vst [vmem:[%s4915 + $0xf0] sm:$0xff] %v4946
                  %v4948 = vld [vmem:[%s4914 + $0x80] sm:$0xff]
                  %4949 = vst [vmem:[%s4915 + $0x100] sm:$0xff] %v4948
                  %v4950 = vld [vmem:[%s4914 + $0x88] sm:$0xff]
                  %4951 = vst [vmem:[%s4915 + $0x110] sm:$0xff] %v4950
                  %v4952 = vld [vmem:[%s4914 + $0x90] sm:$0xff]
                  %4953 = vst [vmem:[%s4915 + $0x120] sm:$0xff] %v4952
                  %v4954 = vld [vmem:[%s4914 + $0x98] sm:$0xff]
                  %4955 = vst [vmem:[%s4915 + $0x130] sm:$0xff] %v4954
                  %v4956 = vld [vmem:[%s4914 + $0xa0] sm:$0xff]
                  %4957 = vst [vmem:[%s4915 + $0x140] sm:$0xff] %v4956
                  %v4958 = vld [vmem:[%s4914 + $0xa8] sm:$0xff]
                  %4959 = vst [vmem:[%s4915 + $0x150] sm:$0xff] %v4958
                  %v4960 = vld [vmem:[%s4914 + $0xb0] sm:$0xff]
                  %4961 = vst [vmem:[%s4915 + $0x160] sm:$0xff] %v4960
                  %v4962 = vld [vmem:[%s4914 + $0xb8] sm:$0xff]
                  %4963 = vst [vmem:[%s4915 + $0x170] sm:$0xff] %v4962
                  %v4964 = vld [vmem:[%s4914 + $0xc0] sm:$0xff]
                  %4965 = vst [vmem:[%s4915 + $0x180] sm:$0xff] %v4964
                  %v4966 = vld [vmem:[%s4914 + $0xc8] sm:$0xff]
                  %4967 = vst [vmem:[%s4915 + $0x190] sm:$0xff] %v4966
                  %v4968 = vld [vmem:[%s4914 + $0xd0] sm:$0xff]
                  %4969 = vst [vmem:[%s4915 + $0x1a0] sm:$0xff] %v4968
                  %v4970 = vld [vmem:[%s4914 + $0xd8] sm:$0xff]
                  %4971 = vst [vmem:[%s4915 + $0x1b0] sm:$0xff] %v4970
                  %v4972 = vld [vmem:[%s4914 + $0xe0] sm:$0xff]
                  %4973 = vst [vmem:[%s4915 + $0x1c0] sm:$0xff] %v4972
                  %v4974 = vld [vmem:[%s4914 + $0xe8] sm:$0xff]
                  %4975 = vst [vmem:[%s4915 + $0x1d0] sm:$0xff] %v4974
                  %v4976 = vld [vmem:[%s4914 + $0xf0] sm:$0xff]
                  %4977 = vst [vmem:[%s4915 + $0x1e0] sm:$0xff] %v4976
                  %v4978 = vld [vmem:[%s4914 + $0xf8] sm:$0xff]
                  %4979 = vst [vmem:[%s4915 + $0x1f0] sm:$0xff] %v4978
                  %v4980 = vld [vmem:[%s4914 + $0x100] sm:$0xff]
                  %4981 = vst [vmem:[%s4915 + $0x200] sm:$0xff] %v4980
                  %v4982 = vld [vmem:[%s4914 + $0x108] sm:$0xff]
                  %4983 = vst [vmem:[%s4915 + $0x210] sm:$0xff] %v4982
                  %v4984 = vld [vmem:[%s4914 + $0x110] sm:$0xff]
                  %4985 = vst [vmem:[%s4915 + $0x220] sm:$0xff] %v4984
                  %v4986 = vld [vmem:[%s4914 + $0x118] sm:$0xff]
                  %4987 = vst [vmem:[%s4915 + $0x230] sm:$0xff] %v4986
                  %v4988 = vld [vmem:[%s4914 + $0x120] sm:$0xff]
                  %4989 = vst [vmem:[%s4915 + $0x240] sm:$0xff] %v4988
                  %v4990 = vld [vmem:[%s4914 + $0x128] sm:$0xff]
                  %4991 = vst [vmem:[%s4915 + $0x250] sm:$0xff] %v4990
                  %v4992 = vld [vmem:[%s4914 + $0x130] sm:$0xff]
                  %4993 = vst [vmem:[%s4915 + $0x260] sm:$0xff] %v4992
                  %v4994 = vld [vmem:[%s4914 + $0x138] sm:$0xff]
                  %4995 = vst [vmem:[%s4915 + $0x270] sm:$0xff] %v4994
                  %v4996 = vld [vmem:[%s4914 + $0x140] sm:$0xff]
                  %4997 = vst [vmem:[%s4915 + $0x280] sm:$0xff] %v4996
                  %v4998 = vld [vmem:[%s4914 + $0x148] sm:$0xff]
                  %4999 = vst [vmem:[%s4915 + $0x290] sm:$0xff] %v4998
                  %v5000 = vld [vmem:[%s4914 + $0x150] sm:$0xff]
                  %5001 = vst [vmem:[%s4915 + $0x2a0] sm:$0xff] %v5000
                  %v5002 = vld [vmem:[%s4914 + $0x158] sm:$0xff]
                  %5003 = vst [vmem:[%s4915 + $0x2b0] sm:$0xff] %v5002
                  %v5004 = vld [vmem:[%s4914 + $0x160] sm:$0xff]
                  %5005 = vst [vmem:[%s4915 + $0x2c0] sm:$0xff] %v5004
                  %v5006 = vld [vmem:[%s4914 + $0x168] sm:$0xff]
                  %5007 = vst [vmem:[%s4915 + $0x2d0] sm:$0xff] %v5006
                  %v5008 = vld [vmem:[%s4914 + $0x170] sm:$0xff]
                  %5009 = vst [vmem:[%s4915 + $0x2e0] sm:$0xff] %v5008
                  %v5010 = vld [vmem:[%s4914 + $0x178] sm:$0xff]
                  %5011 = vst [vmem:[%s4915 + $0x2f0] sm:$0xff] %v5010
                  %v5012 = vld [vmem:[%s4914 + $0x180] sm:$0xff]
                  %5013 = vst [vmem:[%s4915 + $0x300] sm:$0xff] %v5012
                  %v5014 = vld [vmem:[%s4914 + $0x188] sm:$0xff]
                  %5015 = vst [vmem:[%s4915 + $0x310] sm:$0xff] %v5014
                  %v5016 = vld [vmem:[%s4914 + $0x190] sm:$0xff]
                  %5017 = vst [vmem:[%s4915 + $0x320] sm:$0xff] %v5016
                  %v5018 = vld [vmem:[%s4914 + $0x198] sm:$0xff]
                  %5019 = vst [vmem:[%s4915 + $0x330] sm:$0xff] %v5018
                  %v5020 = vld [vmem:[%s4914 + $0x1a0] sm:$0xff]
                  %5021 = vst [vmem:[%s4915 + $0x340] sm:$0xff] %v5020
                  %v5022 = vld [vmem:[%s4914 + $0x1a8] sm:$0xff]
                  %5023 = vst [vmem:[%s4915 + $0x350] sm:$0xff] %v5022
                  %v5024 = vld [vmem:[%s4914 + $0x1b0] sm:$0xff]
                  %5025 = vst [vmem:[%s4915 + $0x360] sm:$0xff] %v5024
                  %v5026 = vld [vmem:[%s4914 + $0x1b8] sm:$0xff]
                  %5027 = vst [vmem:[%s4915 + $0x370] sm:$0xff] %v5026
                $region84: #{tpu_custom_call.1} parent=78 // loop_footer
                  %s4913 = sadd.s32 1, %s4909
                $region85: #{tpu_custom_call.1} parent=78 // loop_footer_branch
                  %4908 = sbr.rel target = $region81
                $region86: #{tpu_custom_call.1} parent=78 // loop_exit
                  _
              $region79: #{tpu_custom_call.1} parent=63 // pred_fallthru
                _
              // Predicated region
              $region87: #{tpu_custom_call.1} parent=63 // pred_check
                _
              $region88: #{tpu_custom_call.1} parent=63 // pred_check_branch
                %5029 = sbr.rel target = $region90
              $region89: #{tpu_custom_call.1} parent=63 // pred_region
                _
              $region90: #{tpu_custom_call.1} parent=63 // pred_fallthru
                _
            $region64: #{tpu_custom_call.1} parent=59 // pred_fallthru
              _
            // Predicated region
            $region65: #{tpu_custom_call.1} parent=59 // pred_check
              _
            $region66: #{tpu_custom_call.1} parent=59 // pred_check_branch
              %4783 = sbr.rel target = $region68
            $region67: #{tpu_custom_call.1} parent=59 // pred_region
              %s4785 = ssub.s32 256, 1
              loop: start=0, step=1, limit=1
              $region69: #{tpu_custom_call.1} parent=67 // loop_pre_header
                _
              $region70: #{tpu_custom_call.1} parent=67 // loop_header
                %s4787 = sphi 0, %s4791
                %p4788 = scmp.ge.s32.totalorder %s4787, 1
                %s4792 = sphi %s4772, %s4772
                %s4793 = sphi %s4777, %s4777
              $region71: #{tpu_custom_call.1} parent=67 // loop_header_branch
                %4790 = sbr.rel (%p4788) target = $region75
              $region72: #{tpu_custom_call.1} parent=67 // loop_body
                %v4794 = vld [vmem:[%s4792] sm:%s4785]
                %4795 = vst [vmem:[%s4793] sm:%s4785] %v4794
                %v4796 = vld [vmem:[%s4792 + $0x8] sm:%s4785]
                %4797 = vst [vmem:[%s4793 + $0x10] sm:%s4785] %v4796
                %v4798 = vld [vmem:[%s4792 + $0x10] sm:%s4785]
                %4799 = vst [vmem:[%s4793 + $0x20] sm:%s4785] %v4798
                %v4800 = vld [vmem:[%s4792 + $0x18] sm:%s4785]
                %4801 = vst [vmem:[%s4793 + $0x30] sm:%s4785] %v4800
                %v4802 = vld [vmem:[%s4792 + $0x20] sm:%s4785]
                %4803 = vst [vmem:[%s4793 + $0x40] sm:%s4785] %v4802
                %v4804 = vld [vmem:[%s4792 + $0x28] sm:%s4785]
                %4805 = vst [vmem:[%s4793 + $0x50] sm:%s4785] %v4804
                %v4806 = vld [vmem:[%s4792 + $0x30] sm:%s4785]
                %4807 = vst [vmem:[%s4793 + $0x60] sm:%s4785] %v4806
                %v4808 = vld [vmem:[%s4792 + $0x38] sm:%s4785]
                %4809 = vst [vmem:[%s4793 + $0x70] sm:%s4785] %v4808
                %v4810 = vld [vmem:[%s4792 + $0x40] sm:%s4785]
                %4811 = vst [vmem:[%s4793 + $0x80] sm:%s4785] %v4810
                %v4812 = vld [vmem:[%s4792 + $0x48] sm:%s4785]
                %4813 = vst [vmem:[%s4793 + $0x90] sm:%s4785] %v4812
                %v4814 = vld [vmem:[%s4792 + $0x50] sm:%s4785]
                %4815 = vst [vmem:[%s4793 + $0xa0] sm:%s4785] %v4814
                %v4816 = vld [vmem:[%s4792 + $0x58] sm:%s4785]
                %4817 = vst [vmem:[%s4793 + $0xb0] sm:%s4785] %v4816
                %v4818 = vld [vmem:[%s4792 + $0x60] sm:%s4785]
                %4819 = vst [vmem:[%s4793 + $0xc0] sm:%s4785] %v4818
                %v4820 = vld [vmem:[%s4792 + $0x68] sm:%s4785]
                %4821 = vst [vmem:[%s4793 + $0xd0] sm:%s4785] %v4820
                %v4822 = vld [vmem:[%s4792 + $0x70] sm:%s4785]
                %4823 = vst [vmem:[%s4793 + $0xe0] sm:%s4785] %v4822
                %v4824 = vld [vmem:[%s4792 + $0x78] sm:%s4785]
                %4825 = vst [vmem:[%s4793 + $0xf0] sm:%s4785] %v4824
                %v4826 = vld [vmem:[%s4792 + $0x80] sm:%s4785]
                %4827 = vst [vmem:[%s4793 + $0x100] sm:%s4785] %v4826
                %v4828 = vld [vmem:[%s4792 + $0x88] sm:%s4785]
                %4829 = vst [vmem:[%s4793 + $0x110] sm:%s4785] %v4828
                %v4830 = vld [vmem:[%s4792 + $0x90] sm:%s4785]
                %4831 = vst [vmem:[%s4793 + $0x120] sm:%s4785] %v4830
                %v4832 = vld [vmem:[%s4792 + $0x98] sm:%s4785]
                %4833 = vst [vmem:[%s4793 + $0x130] sm:%s4785] %v4832
                %v4834 = vld [vmem:[%s4792 + $0xa0] sm:%s4785]
                %4835 = vst [vmem:[%s4793 + $0x140] sm:%s4785] %v4834
                %v4836 = vld [vmem:[%s4792 + $0xa8] sm:%s4785]
                %4837 = vst [vmem:[%s4793 + $0x150] sm:%s4785] %v4836
                %v4838 = vld [vmem:[%s4792 + $0xb0] sm:%s4785]
                %4839 = vst [vmem:[%s4793 + $0x160] sm:%s4785] %v4838
                %v4840 = vld [vmem:[%s4792 + $0xb8] sm:%s4785]
                %4841 = vst [vmem:[%s4793 + $0x170] sm:%s4785] %v4840
                %v4842 = vld [vmem:[%s4792 + $0xc0] sm:%s4785]
                %4843 = vst [vmem:[%s4793 + $0x180] sm:%s4785] %v4842
                %v4844 = vld [vmem:[%s4792 + $0xc8] sm:%s4785]
                %4845 = vst [vmem:[%s4793 + $0x190] sm:%s4785] %v4844
                %v4846 = vld [vmem:[%s4792 + $0xd0] sm:%s4785]
                %4847 = vst [vmem:[%s4793 + $0x1a0] sm:%s4785] %v4846
                %v4848 = vld [vmem:[%s4792 + $0xd8] sm:%s4785]
                %4849 = vst [vmem:[%s4793 + $0x1b0] sm:%s4785] %v4848
                %v4850 = vld [vmem:[%s4792 + $0xe0] sm:%s4785]
                %4851 = vst [vmem:[%s4793 + $0x1c0] sm:%s4785] %v4850
                %v4852 = vld [vmem:[%s4792 + $0xe8] sm:%s4785]
                %4853 = vst [vmem:[%s4793 + $0x1d0] sm:%s4785] %v4852
                %v4854 = vld [vmem:[%s4792 + $0xf0] sm:%s4785]
                %4855 = vst [vmem:[%s4793 + $0x1e0] sm:%s4785] %v4854
                %v4856 = vld [vmem:[%s4792 + $0xf8] sm:%s4785]
                %4857 = vst [vmem:[%s4793 + $0x1f0] sm:%s4785] %v4856
                %v4858 = vld [vmem:[%s4792 + $0x100] sm:%s4785]
                %4859 = vst [vmem:[%s4793 + $0x200] sm:%s4785] %v4858
                %v4860 = vld [vmem:[%s4792 + $0x108] sm:%s4785]
                %4861 = vst [vmem:[%s4793 + $0x210] sm:%s4785] %v4860
                %v4862 = vld [vmem:[%s4792 + $0x110] sm:%s4785]
                %4863 = vst [vmem:[%s4793 + $0x220] sm:%s4785] %v4862
                %v4864 = vld [vmem:[%s4792 + $0x118] sm:%s4785]
                %4865 = vst [vmem:[%s4793 + $0x230] sm:%s4785] %v4864
                %v4866 = vld [vmem:[%s4792 + $0x120] sm:%s4785]
                %4867 = vst [vmem:[%s4793 + $0x240] sm:%s4785] %v4866
                %v4868 = vld [vmem:[%s4792 + $0x128] sm:%s4785]
                %4869 = vst [vmem:[%s4793 + $0x250] sm:%s4785] %v4868
                %v4870 = vld [vmem:[%s4792 + $0x130] sm:%s4785]
                %4871 = vst [vmem:[%s4793 + $0x260] sm:%s4785] %v4870
                %v4872 = vld [vmem:[%s4792 + $0x138] sm:%s4785]
                %4873 = vst [vmem:[%s4793 + $0x270] sm:%s4785] %v4872
                %v4874 = vld [vmem:[%s4792 + $0x140] sm:%s4785]
                %4875 = vst [vmem:[%s4793 + $0x280] sm:%s4785] %v4874
                %v4876 = vld [vmem:[%s4792 + $0x148] sm:%s4785]
                %4877 = vst [vmem:[%s4793 + $0x290] sm:%s4785] %v4876
                %v4878 = vld [vmem:[%s4792 + $0x150] sm:%s4785]
                %4879 = vst [vmem:[%s4793 + $0x2a0] sm:%s4785] %v4878
                %v4880 = vld [vmem:[%s4792 + $0x158] sm:%s4785]
                %4881 = vst [vmem:[%s4793 + $0x2b0] sm:%s4785] %v4880
                %v4882 = vld [vmem:[%s4792 + $0x160] sm:%s4785]
                %4883 = vst [vmem:[%s4793 + $0x2c0] sm:%s4785] %v4882
                %v4884 = vld [vmem:[%s4792 + $0x168] sm:%s4785]
                %4885 = vst [vmem:[%s4793 + $0x2d0] sm:%s4785] %v4884
                %v4886 = vld [vmem:[%s4792 + $0x170] sm:%s4785]
                %4887 = vst [vmem:[%s4793 + $0x2e0] sm:%s4785] %v4886
                %v4888 = vld [vmem:[%s4792 + $0x178] sm:%s4785]
                %4889 = vst [vmem:[%s4793 + $0x2f0] sm:%s4785] %v4888
                %v4890 = vld [vmem:[%s4792 + $0x180] sm:%s4785]
                %4891 = vst [vmem:[%s4793 + $0x300] sm:%s4785] %v4890
                %v4892 = vld [vmem:[%s4792 + $0x188] sm:%s4785]
                %4893 = vst [vmem:[%s4793 + $0x310] sm:%s4785] %v4892
                %v4894 = vld [vmem:[%s4792 + $0x190] sm:%s4785]
                %4895 = vst [vmem:[%s4793 + $0x320] sm:%s4785] %v4894
                %v4896 = vld [vmem:[%s4792 + $0x198] sm:%s4785]
                %4897 = vst [vmem:[%s4793 + $0x330] sm:%s4785] %v4896
                %v4898 = vld [vmem:[%s4792 + $0x1a0] sm:%s4785]
                %4899 = vst [vmem:[%s4793 + $0x340] sm:%s4785] %v4898
                %v4900 = vld [vmem:[%s4792 + $0x1a8] sm:%s4785]
                %4901 = vst [vmem:[%s4793 + $0x350] sm:%s4785] %v4900
                %v4902 = vld [vmem:[%s4792 + $0x1b0] sm:%s4785]
                %4903 = vst [vmem:[%s4793 + $0x360] sm:%s4785] %v4902
                %v4904 = vld [vmem:[%s4792 + $0x1b8] sm:%s4785]
                %4905 = vst [vmem:[%s4793 + $0x370] sm:%s4785] %v4904
              $region73: #{tpu_custom_call.1} parent=67 // loop_footer
                %s4791 = sadd.s32 1, %s4787
              $region74: #{tpu_custom_call.1} parent=67 // loop_footer_branch
                %4786 = sbr.rel target = $region70
              $region75: #{tpu_custom_call.1} parent=67 // loop_exit
                _
            $region68: #{tpu_custom_call.1} parent=59 // pred_fallthru
              _
          $region60: #{tpu_custom_call.1} parent=55 // pred_fallthru
            _
          %5030 = vnop
        $region56: #{tpu_custom_call.1} parent=35 // pred_fallthru
          _
      $region36: #{tpu_custom_call.1} parent=5 // pred_fallthru
        _
      %p5031 = scmp.le.s32.totalorder 2, %s19
      // Predicated region
      $region91: #{tpu_custom_call.1} parent=5 // pred_check
        %p5032 = pneg %p5031
      $region92: #{tpu_custom_call.1} parent=5 // pred_check_branch
        %5034 = sbr.rel (%p5032) target = $region94
      $region93: #{tpu_custom_call.1} parent=5 // pred_region
        %s5035 = ssub.s32 %s19, 2
        // Predicated region
        $region95: #{tpu_custom_call.1} parent=93 // pred_check
          %p5036 = pneg %p152
        $region96: #{tpu_custom_call.1} parent=93 // pred_check_branch
          %5038 = sbr.rel (%p5036) target = $region98
        $region97: #{tpu_custom_call.1} parent=93 // pred_region
          %s5039 = sand.u32 %s137, 1
          %s5040 = sand.u32 %s137, 1
          %s5041 = smul.addr %s5040, 448
          %s5042 = scalar_lea.vmem [#allocation9], %s5041
        $region98: #{tpu_custom_call.1} parent=93 // pred_fallthru
          _
      $region94: #{tpu_custom_call.1} parent=5 // pred_fallthru
        _
    $region6: #{tpu_custom_call.1} parent=1 // loop_footer
      %s23 = sadd.s32 1, %s19
    $region7: #{tpu_custom_call.1} parent=1 // loop_footer_branch
      %18 = sbr.rel target = $region3
    $region8: #{tpu_custom_call.1} parent=1 // loop_exit
      _
    %5043 = vsyncpa [#allocation3], 1
    %s5044 = scalar_lea.sflag [#allocation3], 1
    %5045 = vsyncpa %s5044, 1
    %5046 = vsyncpa [#allocation5], 1
    %s5047 = scalar_lea.sflag [#allocation5], 1
    %5048 = vsyncpa %s5047, 1
    %5049 = vsyncpa [#allocation8], 1
    %s5050 = scalar_lea.sflag [#allocation8], 1
    %5051 = vsyncpa %s5050, 1

</llo_original>
